<compile_context>
chip_gen: v7x
topology: tpu7x:2x2x1
jax: 0.10.0
libtpu: 0.0.40
codegen_flags: <defaults>
</compile_context>

<pallas_src>
import functools
import math

import jax
import jax.numpy as jnp
from jax.experimental import pallas as pl
from jax.experimental.pallas import tpu as pltpu


# ----------------------------------------------------------------------------
# In-kernel helpers
# ----------------------------------------------------------------------------
def _layer_norm(x, w, b, eps=1e-5):
    mu = jnp.mean(x, axis=-1, keepdims=True)
    var = jnp.mean((x - mu) ** 2, axis=-1, keepdims=True)
    return (x - mu) * jax.lax.rsqrt(var + eps) * w + b


# ----------------------------------------------------------------------------
# Pallas kernel: BB sequences (BB*T tokens) per grid step.
# state encoder + pos-emb (+LN) + L x TransformerEncoderLayer (post-norm,
# relu FFN) + (encoder LN) + fc + last-token select + inference BatchNorm.
# ----------------------------------------------------------------------------
def _plan_recog_kernel(
    state_ref, pos_ref, w_se_ref, vec_d_ref,
    w_qkv_ref, b_qkv_ref, w_o_ref, vec_ld_ref,
    w_ff1_ref, b_ff1_ref, w_ff2_ref,
    fc_w_ref, vec_p_ref,
    out_ref,
    *, BB, T, D, NH, HD, L, positional_normalize, encoder_normalize,
):
    f32 = jnp.float32
    N = BB * T

    vd = vec_d_ref[...]      # (5, D): b_se, lnp_w, lnp_b, encn_w, encn_b
    vld = vec_ld_ref[...]    # (L, 6, D): b_o, ln1_w, ln1_b, b_ff2, ln2_w, ln2_b
    vp = vec_p_ref[...]      # (3, P): fc_b, bn_scale, bn_shift

    # ---- state encoder + positional embedding (pos pre-tiled to (N, D)) ----
    state = state_ref[...]                                 # (BB, T, OBS_pad)
    state2d = state.reshape(N, state.shape[-1])
    x = jnp.dot(state2d, w_se_ref[...], preferred_element_type=f32) + vd[0]
    x = x + pos_ref[...]                                   # (N, D)
    if positional_normalize:
        x = _layer_norm(x, vd[1], vd[2])
    # dropout: identity (inference)

    for l in range(L):                                     # static unroll (L=2)
        # ---- multi-head self attention -----------------------------------
        # fused QKV projection: one wide matmul (lane width 3D)
        qkv = jnp.dot(x, w_qkv_ref[l], preferred_element_type=f32) + b_qkv_ref[l]
        heads = []
        for h in range(NH):                                # static unroll (NH=4)
            # 1/sqrt(HD) is pre-folded into the q slab of W_qkv / b_qkv
            qh = qkv[:, 0 * D + h * HD:0 * D + (h + 1) * HD].reshape(BB, T, HD)
            kh = qkv[:, 1 * D + h * HD:1 * D + (h + 1) * HD].reshape(BB, T, HD)
            vh = qkv[:, 2 * D + h * HD:2 * D + (h + 1) * HD].reshape(BB, T, HD)
            # sequence-batched score / softmax / PV (one MXU issue each)
            s = jnp.einsum('bqd,bkd->bqk', qh, kh, preferred_element_type=f32)
            s = s - jnp.max(s, axis=-1, keepdims=True)
            p = jnp.exp(s)
            p = p * pl.reciprocal(jnp.sum(p, axis=-1, keepdims=True), approx=True)
            pv = jnp.einsum('bqk,bkd->bqd', p, vh, preferred_element_type=f32)
            heads.append(pv.reshape(N, HD))
        attn = jnp.concatenate(heads, axis=-1)             # (N, D) lane-dense
        # single fused output projection + post-norm residual (norm_first=False)
        attn = jnp.dot(attn, w_o_ref[l], preferred_element_type=f32) + vld[l, 0]
        x = _layer_norm(x + attn, vld[l, 1], vld[l, 2])

        # ---- feed forward (relu) ------------------------------------------
        ff = jnp.dot(x, w_ff1_ref[l], preferred_element_type=f32) + b_ff1_ref[l]
        ff = jnp.maximum(ff, 0.0)
        ff = jnp.dot(ff, w_ff2_ref[l], preferred_element_type=f32) + vld[l, 3]
        x = _layer_norm(x + ff, vld[l, 4], vld[l, 5])

    # ---- tail: last token only (encoder_norm / fc / BN are per-token) ------
    x_last = x.reshape(BB, T, D)[:, T - 1, :]              # (BB, D)
    if encoder_normalize:
        x_last = _layer_norm(x_last, vd[3], vd[4])
    y = jnp.dot(x_last, fc_w_ref[...], preferred_element_type=f32) + vp[0]
    # inference BatchNorm1d, folded to y * scale + shift
    y = y * vp[1] + vp[2]
    out_ref[...] = y                                       # (BB, P)


# ----------------------------------------------------------------------------
# Wrapper: weight packing / pre-transpose, batch-blocked grid.
# ----------------------------------------------------------------------------
def forward_pallas(state, p, cfg, *, max_block_batch=8):
    B, T, OBS = state.shape
    D, NH, L, H, P = cfg["D"], cfg["NH"], cfg["L"], cfg["H"], cfg["P"]
    HD = D // NH
    scale = 1.0 / math.sqrt(HD)

    # ---- batch blocking: BB sequences per grid step -------------------------
    BB = min(B, max_block_batch)
    B_pad = ((B + BB - 1) // BB) * BB
    if B_pad != B:
        state = jnp.pad(state, ((0, B_pad - B), (0, 0), (0, 0)))
    # pad obs dim to a multiple of 8; zero rows added to W_se keep semantics
    OBS_pad = ((OBS + 7) // 8) * 8
    if OBS_pad != OBS:
        state = jnp.pad(state, ((0, 0), (0, 0), (0, OBS_pad - OBS)))

    pos = p["pos_table"][:T]                                # (T, D)
    pos_tiled = jnp.tile(pos, (BB, 1))                      # (BB*T, D)

    w_se_t = jnp.pad(p["w_se"].T, ((0, OBS_pad - OBS), (0, 0)))   # (OBS_pad, D)

    # Fused QKV weights: PyTorch in_proj_weight (3D, D) -> (D, 3D), with the
    # 1/sqrt(HD) attention scale folded into the q output features.
    w_qkv_t = jnp.transpose(p["w_qkv"], (0, 2, 1))          # (L, D, 3D)
    qkv_scale = jnp.concatenate([jnp.full((D,), scale, jnp.float32),
                                 jnp.ones((2 * D,), jnp.float32)])
    w_qkv_t = w_qkv_t * qkv_scale
    b_qkv = (p["b_qkv"] * qkv_scale).reshape(L, 1, 3 * D)

    w_o_t = jnp.transpose(p["w_o"], (0, 2, 1))              # (L, D, D)

    # Packed per-model / per-layer D-width vectors (fewer DMAs).
    vec_d = jnp.stack([p["b_se"], p["lnp_w"], p["lnp_b"],
                       p["encn_w"], p["encn_b"]])           # (5, D)
    vec_ld = jnp.stack([p["b_o"], p["ln1_w"], p["ln1_b"],
                        p["b_ff2"], p["ln2_w"], p["ln2_b"]], axis=1)  # (L, 6, D)

    w_ff1_t = jnp.transpose(p["w_ff1"], (0, 2, 1))          # (L, D, H)
    b_ff1 = p["b_ff1"].reshape(L, 1, H)
    w_ff2_t = jnp.transpose(p["w_ff2"], (0, 2, 1))          # (L, H, D)

    # Inference BatchNorm folded to a single scale/shift.
    bn_scale = p["bn_g"] * jax.lax.rsqrt(p["bn_v"] + 1e-5)
    bn_shift = p["bn_b"] - p["bn_m"] * bn_scale
    vec_p = jnp.stack([p["fc_b"], bn_scale, bn_shift])      # (3, P)
    fc_w_t = p["fc_w"].T                                    # (D, P)

    args = (state, pos_tiled, w_se_t, vec_d, w_qkv_t, b_qkv, w_o_t, vec_ld,
            w_ff1_t, b_ff1, w_ff2_t, fc_w_t, vec_p)

    def full_spec(a):
        nd = a.ndim
        return pl.BlockSpec(a.shape, lambda b, _nd=nd: (0,) * _nd)

    in_specs = [pl.BlockSpec((BB, T, OBS_pad), lambda b: (b, 0, 0))]   # state
    in_specs += [full_spec(a) for a in args[1:]]                       # weights

    kernel = functools.partial(
        _plan_recog_kernel, BB=BB, T=T, D=D, NH=NH, HD=HD, L=L,
        positional_normalize=cfg["positional_normalize"],
        encoder_normalize=cfg["encoder_normalize"],
    )
    out = pl.pallas_call(
        kernel,
        grid=(B_pad // BB,),
        out_shape=jax.ShapeDtypeStruct((B_pad, P), jnp.float32),
        in_specs=in_specs,
        out_specs=pl.BlockSpec((BB, P), lambda b: (b, 0)),
        compiler_params=pltpu.CompilerParams(
            dimension_semantics=("parallel",)),
    )(*args)
    return out[:B]


# ----------------------------------------------------------------------------
# Pure-JAX reference (mirrors the PyTorch forward, inference mode)
# ----------------------------------------------------------------------------
def forward_ref(state, p, cfg):
    B, T, _ = state.shape
    D, NH, L, P = cfg["D"], cfg["NH"], cfg["L"], cfg["P"]
    HD = D // NH

    pos = p["pos_table"][jnp.arange(T)]
    x = jnp.einsum("bto,do->btd", state, p["w_se"]) + p["b_se"]
    x = x + pos[None]
    if cfg["positional_normalize"]:
        x = _layer_norm(x, p["lnp_w"], p["lnp_b"])
    for l in range(L):
        qkv = jnp.einsum("btd,ed->bte", x, p["w_qkv"][l]) + p["b_qkv"][l]
        q, k, v = jnp.split(qkv, 3, axis=-1)
        q = q.reshape(B, T, NH, HD).transpose(0, 2, 1, 3)
        k = k.reshape(B, T, NH, HD).transpose(0, 2, 1, 3)
        v = v.reshape(B, T, NH, HD).transpose(0, 2, 1, 3)
        s = jnp.einsum("bhqd,bhkd->bhqk", q, k) / math.sqrt(HD)
        a = jax.nn.softmax(s, axis=-1)
        o = jnp.einsum("bhqk,bhkd->bhqd", a, v).transpose(0, 2, 1, 3).reshape(B, T, D)
        o = jnp.einsum("btd,ed->bte", o, p["w_o"][l]) + p["b_o"][l]
        x = _layer_norm(x + o, p["ln1_w"][l], p["ln1_b"][l])
        ff = jax.nn.relu(jnp.einsum("btd,hd->bth", x, p["w_ff1"][l]) + p["b_ff1"][l])
        ff = jnp.einsum("bth,dh->btd", ff, p["w_ff2"][l]) + p["b_ff2"][l]
        x = _layer_norm(x + ff, p["ln2_w"][l], p["ln2_b"][l])
    if cfg["encoder_normalize"]:
        x = _layer_norm(x, p["encn_w"], p["encn_b"])
    x = jnp.einsum("btd,pd->btp", x, p["fc_w"]) + p["fc_b"]
    x = x[:, -1]
    x = (x - p["bn_m"]) / jnp.sqrt(p["bn_v"] + 1e-5) * p["bn_g"] + p["bn_b"]
    return x


# ----------------------------------------------------------------------------
# Deterministic parameter init (PyTorch layouts: Linear weight = (out, in))
# ----------------------------------------------------------------------------
def init_params(key, *, obs_dim, D, L, H, P, max_pos):
    ks = jax.random.split(key, 16)
    n = lambda k, shape, s=0.05: jax.random.normal(k, shape, jnp.float32) * s
    return dict(
        pos_table=n(ks[0], (max_pos, D)),
        w_se=n(ks[1], (D, obs_dim)), b_se=n(ks[2], (D,)),
        lnp_w=jnp.ones((D,), jnp.float32), lnp_b=jnp.zeros((D,), jnp.float32),
        w_qkv=n(ks[3], (L, 3 * D, D)), b_qkv=n(ks[4], (L, 3 * D)),
        w_o=n(ks[5], (L, D, D)), b_o=n(ks[6], (L, D)),
        ln1_w=jnp.ones((L, D), jnp.float32), ln1_b=jnp.zeros((L, D), jnp.float32),
        ln2_w=jnp.ones((L, D), jnp.float32), ln2_b=jnp.zeros((L, D), jnp.float32),
        w_ff1=n(ks[7], (L, H, D)), b_ff1=n(ks[8], (L, H)),
        w_ff2=n(ks[9], (L, D, H)), b_ff2=n(ks[10], (L, D)),
        encn_w=jnp.ones((D,), jnp.float32), encn_b=jnp.zeros((D,), jnp.float32),
        fc_w=n(ks[11], (P, D)), fc_b=n(ks[12], (P,)),
        bn_g=jnp.ones((P,), jnp.float32), bn_b=jnp.zeros((P,), jnp.float32),
        bn_m=jnp.zeros((P,), jnp.float32), bn_v=jnp.ones((P,), jnp.float32),
    )


if __name__ == "__main__":
    # Module hyper-parameters (in_features divisible by num_heads -> no padding)
    cfg = dict(
        D=32,        # in_features (d_model)
        NH=4,        # num_heads
        L=2,         # num_layers
        H=64,        # encoder_hidden_size (dim_feedforward)
        P=16,        # plan_features
        positional_normalize=True,
        encoder_normalize=True,
    )
    # position_embedding=True assumed (the PyTorch forward is undefined otherwise).
    B, T, OBS, MAX_POS = 2, 8, 10, 16

    key = jax.random.PRNGKey(0)
    k_params, k_state = jax.random.split(key)
    params = init_params(k_params, obs_dim=OBS, D=cfg["D"], L=cfg["L"],
                         H=cfg["H"], P=cfg["P"], max_pos=MAX_POS)
    state = jax.random.normal(k_state, (B, T, OBS), jnp.float32)

    out = forward_pallas(state, params, cfg)
    out = jax.block_until_ready(out)
    ref = forward_ref(state, params, cfg)

    assert out.shape == (B, cfg["P"])
    assert bool(jnp.all(jnp.isfinite(out)))
    assert jnp.allclose(out, ref, rtol=5e-2, atol=5e-2), (
        f"max abs diff {float(jnp.max(jnp.abs(out - ref)))}")
    print("KERNEL_OK")
</pallas_src>

<mosaic_0001>
module attributes {stable_mosaic.version = 11 : i64} {
  func.func @_plan_recog_kernel(%arg0: i32, %arg1: memref<2x8x16xf32, #tpu.memory_space<vmem>>, %arg2: memref<16x32xf32, #tpu.memory_space<vmem>>, %arg3: memref<16x32xf32, #tpu.memory_space<vmem>>, %arg4: memref<5x32xf32, #tpu.memory_space<vmem>>, %arg5: memref<2x32x96xf32, #tpu.memory_space<vmem>>, %arg6: memref<2x1x96xf32, #tpu.memory_space<vmem>>, %arg7: memref<2x32x32xf32, #tpu.memory_space<vmem>>, %arg8: memref<2x6x32xf32, #tpu.memory_space<vmem>>, %arg9: memref<2x32x64xf32, #tpu.memory_space<vmem>>, %arg10: memref<2x1x64xf32, #tpu.memory_space<vmem>>, %arg11: memref<2x64x32xf32, #tpu.memory_space<vmem>>, %arg12: memref<32x16xf32, #tpu.memory_space<vmem>>, %arg13: memref<3x16xf32, #tpu.memory_space<vmem>>, %arg14: memref<2x16xf32, #tpu.memory_space<vmem>>) attributes {dimension_semantics = [#tpu.dimension_semantics<parallel>], iteration_bounds = array<i64: 1>, scalar_prefetch = 0 : i64, scratch_operands = 0 : i64, tpu.core_type = #tpu.core_type<tc>, window_params = [{transform_indices = @transform_0, window_bounds = array<i64: 2, 8, 16>}, {pipeline_mode = #tpu.pipeline_mode<synchronous>, transform_indices = @transform_1, window_bounds = array<i64: 16, 32>}, {pipeline_mode = #tpu.pipeline_mode<synchronous>, transform_indices = @transform_2, window_bounds = array<i64: 16, 32>}, {pipeline_mode = #tpu.pipeline_mode<synchronous>, transform_indices = @transform_3, window_bounds = array<i64: 5, 32>}, {pipeline_mode = #tpu.pipeline_mode<synchronous>, transform_indices = @transform_4, window_bounds = array<i64: 2, 32, 96>}, {pipeline_mode = #tpu.pipeline_mode<synchronous>, transform_indices = @transform_5, window_bounds = array<i64: 2, 1, 96>}, {pipeline_mode = #tpu.pipeline_mode<synchronous>, transform_indices = @transform_6, window_bounds = array<i64: 2, 32, 32>}, {pipeline_mode = #tpu.pipeline_mode<synchronous>, transform_indices = @transform_7, window_bounds = array<i64: 2, 6, 32>}, {pipeline_mode = #tpu.pipeline_mode<synchronous>, transform_indices = @transform_8, window_bounds = array<i64: 2, 32, 64>}, {pipeline_mode = #tpu.pipeline_mode<synchronous>, transform_indices = @transform_9, window_bounds = array<i64: 2, 1, 64>}, {pipeline_mode = #tpu.pipeline_mode<synchronous>, transform_indices = @transform_10, window_bounds = array<i64: 2, 64, 32>}, {pipeline_mode = #tpu.pipeline_mode<synchronous>, transform_indices = @transform_11, window_bounds = array<i64: 32, 16>}, {pipeline_mode = #tpu.pipeline_mode<synchronous>, transform_indices = @transform_12, window_bounds = array<i64: 3, 16>}, {transform_indices = @transform_13, window_bounds = array<i64: 2, 16>}]} {
    %c0 = arith.constant 0 : index
    %c0_0 = arith.constant 0 : index
    %0 = vector.load %arg4[%c0, %c0_0] : memref<5x32xf32, #tpu.memory_space<vmem>>, vector<5x32xf32>
    %c0_1 = arith.constant 0 : index
    %c0_2 = arith.constant 0 : index
    %c0_3 = arith.constant 0 : index
    %1 = vector.load %arg8[%c0_1, %c0_2, %c0_3] : memref<2x6x32xf32, #tpu.memory_space<vmem>>, vector<2x6x32xf32>
    %c0_4 = arith.constant 0 : index
    %c0_5 = arith.constant 0 : index
    %2 = vector.load %arg13[%c0_4, %c0_5] : memref<3x16xf32, #tpu.memory_space<vmem>>, vector<3x16xf32>
    %c0_6 = arith.constant 0 : index
    %c0_7 = arith.constant 0 : index
    %c0_8 = arith.constant 0 : index
    %3 = vector.load %arg1[%c0_6, %c0_7, %c0_8] : memref<2x8x16xf32, #tpu.memory_space<vmem>>, vector<2x8x16xf32>
    %4 = vector.shape_cast %3 : vector<2x8x16xf32> to vector<16x16xf32>
    %c0_9 = arith.constant 0 : index
    %c0_10 = arith.constant 0 : index
    %5 = vector.load %arg3[%c0_9, %c0_10] : memref<16x32xf32, #tpu.memory_space<vmem>>, vector<16x32xf32>
    %cst = arith.constant dense<0.000000e+00> : vector<16x32xf32>
    %6 = tpu.matmul %4, %5, %cst {dimension_numbers = #tpu.dot_dimension_numbers<[1], [0], [0], [1], [0, 0, 1, 1], [], []>} : vector<16x16xf32>, vector<16x32xf32>, vector<16x32xf32> -> vector<16x32xf32>
    %7 = vector.extract_strided_slice %0 {offsets = [0, 0], sizes = [1, 32], strides = [1, 1]} : vector<5x32xf32> to vector<1x32xf32>
    %8 = vector.shape_cast %7 : vector<1x32xf32> to vector<32xf32>
    %9 = vector.shape_cast %8 : vector<32xf32> to vector<1x32xf32>
    %10 = vector.broadcast %9 : vector<1x32xf32> to vector<16x32xf32>
    %11 = arith.addf %6, %10 : vector<16x32xf32>
    %c0_11 = arith.constant 0 : index
    %c0_12 = arith.constant 0 : index
    %12 = vector.load %arg2[%c0_11, %c0_12] : memref<16x32xf32, #tpu.memory_space<vmem>>, vector<16x32xf32>
    %13 = arith.addf %11, %12 : vector<16x32xf32>
    %14 = vector.extract_strided_slice %0 {offsets = [1, 0], sizes = [1, 32], strides = [1, 1]} : vector<5x32xf32> to vector<1x32xf32>
    %15 = vector.shape_cast %14 : vector<1x32xf32> to vector<32xf32>
    %16 = vector.extract_strided_slice %0 {offsets = [2, 0], sizes = [1, 32], strides = [1, 1]} : vector<5x32xf32> to vector<1x32xf32>
    %17 = vector.shape_cast %16 : vector<1x32xf32> to vector<32xf32>
    %cst_13 = arith.constant dense<0.000000e+00> : vector<16xf32>
    %18 = vector.multi_reduction <add>, %13, %cst_13 [1] : vector<16x32xf32> to vector<16xf32>
    %19 = vector.shape_cast %18 : vector<16xf32> to vector<16x1xf32>
    %cst_14 = arith.constant 3.200000e+01 : f32
    %20 = vector.broadcast %cst_14 : f32 to vector<16x1xf32>
    %21 = arith.divf %19, %20 : vector<16x1xf32>
    %22 = vector.broadcast %21 : vector<16x1xf32> to vector<16x32xf32>
    %23 = arith.subf %13, %22 : vector<16x32xf32>
    %24 = arith.mulf %23, %23 : vector<16x32xf32>
    %cst_15 = arith.constant dense<0.000000e+00> : vector<16xf32>
    %25 = vector.multi_reduction <add>, %24, %cst_15 [1] : vector<16x32xf32> to vector<16xf32>
    %26 = vector.shape_cast %25 : vector<16xf32> to vector<16x1xf32>
    %cst_16 = arith.constant 3.200000e+01 : f32
    %27 = vector.broadcast %cst_16 : f32 to vector<16x1xf32>
    %28 = arith.divf %26, %27 : vector<16x1xf32>
    %29 = vector.broadcast %21 : vector<16x1xf32> to vector<16x32xf32>
    %30 = arith.subf %13, %29 : vector<16x32xf32>
    %cst_17 = arith.constant 9.99999974E-6 : f32
    %31 = vector.broadcast %cst_17 : f32 to vector<16x1xf32>
    %32 = arith.addf %28, %31 : vector<16x1xf32>
    %33 = math.rsqrt %32 : vector<16x1xf32>
    %34 = vector.broadcast %33 : vector<16x1xf32> to vector<16x32xf32>
    %35 = arith.mulf %30, %34 : vector<16x32xf32>
    %36 = vector.shape_cast %15 : vector<32xf32> to vector<1x32xf32>
    %37 = vector.broadcast %36 : vector<1x32xf32> to vector<16x32xf32>
    %38 = arith.mulf %35, %37 : vector<16x32xf32>
    %39 = vector.shape_cast %17 : vector<32xf32> to vector<1x32xf32>
    %40 = vector.broadcast %39 : vector<1x32xf32> to vector<16x32xf32>
    %41 = arith.addf %38, %40 : vector<16x32xf32>
    %c0_18 = arith.constant 0 : index
    %c0_19 = arith.constant 0 : index
    %c0_20 = arith.constant 0 : index
    %42 = vector.load %arg5[%c0_18, %c0_19, %c0_20] : memref<2x32x96xf32, #tpu.memory_space<vmem>>, vector<1x32x96xf32>
    %43 = vector.shape_cast %42 : vector<1x32x96xf32> to vector<32x96xf32>
    %cst_21 = arith.constant dense<0.000000e+00> : vector<16x96xf32>
    %44 = tpu.matmul %41, %43, %cst_21 {dimension_numbers = #tpu.dot_dimension_numbers<[1], [0], [0], [1], [0, 0, 1, 1], [], []>} : vector<16x32xf32>, vector<32x96xf32>, vector<16x96xf32> -> vector<16x96xf32>
    %c0_22 = arith.constant 0 : index
    %c0_23 = arith.constant 0 : index
    %c0_24 = arith.constant 0 : index
    %45 = vector.load %arg6[%c0_22, %c0_23, %c0_24] : memref<2x1x96xf32, #tpu.memory_space<vmem>>, vector<1x1x96xf32>
    %46 = vector.shape_cast %45 : vector<1x1x96xf32> to vector<1x96xf32>
    %47 = vector.broadcast %46 : vector<1x96xf32> to vector<16x96xf32>
    %48 = arith.addf %44, %47 : vector<16x96xf32>
    %49 = vector.extract_strided_slice %48 {offsets = [0, 0], sizes = [16, 8], strides = [1, 1]} : vector<16x96xf32> to vector<16x8xf32>
    %50 = vector.shape_cast %49 : vector<16x8xf32> to vector<2x8x8xf32>
    %51 = vector.extract_strided_slice %48 {offsets = [0, 32], sizes = [16, 8], strides = [1, 1]} : vector<16x96xf32> to vector<16x8xf32>
    %52 = vector.shape_cast %51 : vector<16x8xf32> to vector<2x8x8xf32>
    %53 = vector.extract_strided_slice %48 {offsets = [0, 64], sizes = [16, 8], strides = [1, 1]} : vector<16x96xf32> to vector<16x8xf32>
    %54 = vector.shape_cast %53 : vector<16x8xf32> to vector<2x8x8xf32>
    "tpu.trace_start"() <{level = 10 : i32, message = "bqd,bkd->bqk"}> : () -> ()
    %cst_25 = arith.constant dense<0.000000e+00> : vector<2x8x8xf32>
    %55 = tpu.matmul %50, %52, %cst_25 {dimension_numbers = #tpu.dot_dimension_numbers<[2], [2], [1], [1], [0, 0, 0, 1, 1, 1], [0], [0]>} : vector<2x8x8xf32>, vector<2x8x8xf32>, vector<2x8x8xf32> -> vector<2x8x8xf32>
    "tpu.trace_stop"() : () -> ()
    %cst_26 = arith.constant dense<0xFF800000> : vector<2x8xf32>
    %56 = vector.multi_reduction <maximumf>, %55, %cst_26 [2] : vector<2x8x8xf32> to vector<2x8xf32>
    %57 = vector.shape_cast %56 : vector<2x8xf32> to vector<2x8x1xf32>
    %58 = vector.broadcast %57 : vector<2x8x1xf32> to vector<2x8x8xf32>
    %59 = arith.subf %55, %58 : vector<2x8x8xf32>
    %60 = math.exp %59 : vector<2x8x8xf32>
    %cst_27 = arith.constant dense<0.000000e+00> : vector<2x8xf32>
    %61 = vector.multi_reduction <add>, %60, %cst_27 [2] : vector<2x8x8xf32> to vector<2x8xf32>
    %62 = vector.shape_cast %61 : vector<2x8xf32> to vector<2x8x1xf32>
    %63 = tpu.reciprocal %62 {approx = true} : vector<2x8x1xf32> -> vector<2x8x1xf32>
    %64 = vector.broadcast %63 : vector<2x8x1xf32> to vector<2x8x8xf32>
    %65 = arith.mulf %60, %64 : vector<2x8x8xf32>
    "tpu.trace_start"() <{level = 10 : i32, message = "bqk,bkd->bqd"}> : () -> ()
    %cst_28 = arith.constant dense<0.000000e+00> : vector<2x8x8xf32>
    %66 = tpu.matmul %65, %54, %cst_28 {dimension_numbers = #tpu.dot_dimension_numbers<[2], [1], [1], [2], [0, 0, 0, 1, 1, 2], [0], [0]>} : vector<2x8x8xf32>, vector<2x8x8xf32>, vector<2x8x8xf32> -> vector<2x8x8xf32>
    "tpu.trace_stop"() : () -> ()
    %67 = vector.shape_cast %66 : vector<2x8x8xf32> to vector<16x8xf32>
    %68 = vector.extract_strided_slice %48 {offsets = [0, 8], sizes = [16, 8], strides = [1, 1]} : vector<16x96xf32> to vector<16x8xf32>
    %69 = vector.shape_cast %68 : vector<16x8xf32> to vector<2x8x8xf32>
    %70 = vector.extract_strided_slice %48 {offsets = [0, 40], sizes = [16, 8], strides = [1, 1]} : vector<16x96xf32> to vector<16x8xf32>
    %71 = vector.shape_cast %70 : vector<16x8xf32> to vector<2x8x8xf32>
    %72 = vector.extract_strided_slice %48 {offsets = [0, 72], sizes = [16, 8], strides = [1, 1]} : vector<16x96xf32> to vector<16x8xf32>
    %73 = vector.shape_cast %72 : vector<16x8xf32> to vector<2x8x8xf32>
    "tpu.trace_start"() <{level = 10 : i32, message = "bqd,bkd->bqk"}> : () -> ()
    %cst_29 = arith.constant dense<0.000000e+00> : vector<2x8x8xf32>
    %74 = tpu.matmul %69, %71, %cst_29 {dimension_numbers = #tpu.dot_dimension_numbers<[2], [2], [1], [1], [0, 0, 0, 1, 1, 1], [0], [0]>} : vector<2x8x8xf32>, vector<2x8x8xf32>, vector<2x8x8xf32> -> vector<2x8x8xf32>
    "tpu.trace_stop"() : () -> ()
    %cst_30 = arith.constant dense<0xFF800000> : vector<2x8xf32>
    %75 = vector.multi_reduction <maximumf>, %74, %cst_30 [2] : vector<2x8x8xf32> to vector<2x8xf32>
    %76 = vector.shape_cast %75 : vector<2x8xf32> to vector<2x8x1xf32>
    %77 = vector.broadcast %76 : vector<2x8x1xf32> to vector<2x8x8xf32>
    %78 = arith.subf %74, %77 : vector<2x8x8xf32>
    %79 = math.exp %78 : vector<2x8x8xf32>
    %cst_31 = arith.constant dense<0.000000e+00> : vector<2x8xf32>
    %80 = vector.multi_reduction <add>, %79, %cst_31 [2] : vector<2x8x8xf32> to vector<2x8xf32>
    %81 = vector.shape_cast %80 : vector<2x8xf32> to vector<2x8x1xf32>
    %82 = tpu.reciprocal %81 {approx = true} : vector<2x8x1xf32> -> vector<2x8x1xf32>
    %83 = vector.broadcast %82 : vector<2x8x1xf32> to vector<2x8x8xf32>
    %84 = arith.mulf %79, %83 : vector<2x8x8xf32>
    "tpu.trace_start"() <{level = 10 : i32, message = "bqk,bkd->bqd"}> : () -> ()
    %cst_32 = arith.constant dense<0.000000e+00> : vector<2x8x8xf32>
    %85 = tpu.matmul %84, %73, %cst_32 {dimension_numbers = #tpu.dot_dimension_numbers<[2], [1], [1], [2], [0, 0, 0, 1, 1, 2], [0], [0]>} : vector<2x8x8xf32>, vector<2x8x8xf32>, vector<2x8x8xf32> -> vector<2x8x8xf32>
    "tpu.trace_stop"() : () -> ()
    %86 = vector.shape_cast %85 : vector<2x8x8xf32> to vector<16x8xf32>
    %87 = vector.extract_strided_slice %48 {offsets = [0, 16], sizes = [16, 8], strides = [1, 1]} : vector<16x96xf32> to vector<16x8xf32>
    %88 = vector.shape_cast %87 : vector<16x8xf32> to vector<2x8x8xf32>
    %89 = vector.extract_strided_slice %48 {offsets = [0, 48], sizes = [16, 8], strides = [1, 1]} : vector<16x96xf32> to vector<16x8xf32>
    %90 = vector.shape_cast %89 : vector<16x8xf32> to vector<2x8x8xf32>
    %91 = vector.extract_strided_slice %48 {offsets = [0, 80], sizes = [16, 8], strides = [1, 1]} : vector<16x96xf32> to vector<16x8xf32>
    %92 = vector.shape_cast %91 : vector<16x8xf32> to vector<2x8x8xf32>
    "tpu.trace_start"() <{level = 10 : i32, message = "bqd,bkd->bqk"}> : () -> ()
    %cst_33 = arith.constant dense<0.000000e+00> : vector<2x8x8xf32>
    %93 = tpu.matmul %88, %90, %cst_33 {dimension_numbers = #tpu.dot_dimension_numbers<[2], [2], [1], [1], [0, 0, 0, 1, 1, 1], [0], [0]>} : vector<2x8x8xf32>, vector<2x8x8xf32>, vector<2x8x8xf32> -> vector<2x8x8xf32>
    "tpu.trace_stop"() : () -> ()
    %cst_34 = arith.constant dense<0xFF800000> : vector<2x8xf32>
    %94 = vector.multi_reduction <maximumf>, %93, %cst_34 [2] : vector<2x8x8xf32> to vector<2x8xf32>
    %95 = vector.shape_cast %94 : vector<2x8xf32> to vector<2x8x1xf32>
    %96 = vector.broadcast %95 : vector<2x8x1xf32> to vector<2x8x8xf32>
    %97 = arith.subf %93, %96 : vector<2x8x8xf32>
    %98 = math.exp %97 : vector<2x8x8xf32>
    %cst_35 = arith.constant dense<0.000000e+00> : vector<2x8xf32>
    %99 = vector.multi_reduction <add>, %98, %cst_35 [2] : vector<2x8x8xf32> to vector<2x8xf32>
    %100 = vector.shape_cast %99 : vector<2x8xf32> to vector<2x8x1xf32>
    %101 = tpu.reciprocal %100 {approx = true} : vector<2x8x1xf32> -> vector<2x8x1xf32>
    %102 = vector.broadcast %101 : vector<2x8x1xf32> to vector<2x8x8xf32>
    %103 = arith.mulf %98, %102 : vector<2x8x8xf32>
    "tpu.trace_start"() <{level = 10 : i32, message = "bqk,bkd->bqd"}> : () -> ()
    %cst_36 = arith.constant dense<0.000000e+00> : vector<2x8x8xf32>
    %104 = tpu.matmul %103, %92, %cst_36 {dimension_numbers = #tpu.dot_dimension_numbers<[2], [1], [1], [2], [0, 0, 0, 1, 1, 2], [0], [0]>} : vector<2x8x8xf32>, vector<2x8x8xf32>, vector<2x8x8xf32> -> vector<2x8x8xf32>
    "tpu.trace_stop"() : () -> ()
    %105 = vector.shape_cast %104 : vector<2x8x8xf32> to vector<16x8xf32>
    %106 = vector.extract_strided_slice %48 {offsets = [0, 24], sizes = [16, 8], strides = [1, 1]} : vector<16x96xf32> to vector<16x8xf32>
    %107 = vector.shape_cast %106 : vector<16x8xf32> to vector<2x8x8xf32>
    %108 = vector.extract_strided_slice %48 {offsets = [0, 56], sizes = [16, 8], strides = [1, 1]} : vector<16x96xf32> to vector<16x8xf32>
    %109 = vector.shape_cast %108 : vector<16x8xf32> to vector<2x8x8xf32>
    %110 = vector.extract_strided_slice %48 {offsets = [0, 88], sizes = [16, 8], strides = [1, 1]} : vector<16x96xf32> to vector<16x8xf32>
    %111 = vector.shape_cast %110 : vector<16x8xf32> to vector<2x8x8xf32>
    "tpu.trace_start"() <{level = 10 : i32, message = "bqd,bkd->bqk"}> : () -> ()
    %cst_37 = arith.constant dense<0.000000e+00> : vector<2x8x8xf32>
    %112 = tpu.matmul %107, %109, %cst_37 {dimension_numbers = #tpu.dot_dimension_numbers<[2], [2], [1], [1], [0, 0, 0, 1, 1, 1], [0], [0]>} : vector<2x8x8xf32>, vector<2x8x8xf32>, vector<2x8x8xf32> -> vector<2x8x8xf32>
    "tpu.trace_stop"() : () -> ()
    %cst_38 = arith.constant dense<0xFF800000> : vector<2x8xf32>
    %113 = vector.multi_reduction <maximumf>, %112, %cst_38 [2] : vector<2x8x8xf32> to vector<2x8xf32>
    %114 = vector.shape_cast %113 : vector<2x8xf32> to vector<2x8x1xf32>
    %115 = vector.broadcast %114 : vector<2x8x1xf32> to vector<2x8x8xf32>
    %116 = arith.subf %112, %115 : vector<2x8x8xf32>
    %117 = math.exp %116 : vector<2x8x8xf32>
    %cst_39 = arith.constant dense<0.000000e+00> : vector<2x8xf32>
    %118 = vector.multi_reduction <add>, %117, %cst_39 [2] : vector<2x8x8xf32> to vector<2x8xf32>
    %119 = vector.shape_cast %118 : vector<2x8xf32> to vector<2x8x1xf32>
    %120 = tpu.reciprocal %119 {approx = true} : vector<2x8x1xf32> -> vector<2x8x1xf32>
    %121 = vector.broadcast %120 : vector<2x8x1xf32> to vector<2x8x8xf32>
    %122 = arith.mulf %117, %121 : vector<2x8x8xf32>
    "tpu.trace_start"() <{level = 10 : i32, message = "bqk,bkd->bqd"}> : () -> ()
    %cst_40 = arith.constant dense<0.000000e+00> : vector<2x8x8xf32>
    %123 = tpu.matmul %122, %111, %cst_40 {dimension_numbers = #tpu.dot_dimension_numbers<[2], [1], [1], [2], [0, 0, 0, 1, 1, 2], [0], [0]>} : vector<2x8x8xf32>, vector<2x8x8xf32>, vector<2x8x8xf32> -> vector<2x8x8xf32>
    "tpu.trace_stop"() : () -> ()
    %124 = vector.shape_cast %123 : vector<2x8x8xf32> to vector<16x8xf32>
    %125 = tpu.concatenate %67, %86, %105, %124 in 1 : vector<16x8xf32>, vector<16x8xf32>, vector<16x8xf32>, vector<16x8xf32> -> vector<16x32xf32>
    %c0_41 = arith.constant 0 : index
    %c0_42 = arith.constant 0 : index
    %c0_43 = arith.constant 0 : index
    %126 = vector.load %arg7[%c0_41, %c0_42, %c0_43] : memref<2x32x32xf32, #tpu.memory_space<vmem>>, vector<1x32x32xf32>
    %127 = vector.shape_cast %126 : vector<1x32x32xf32> to vector<32x32xf32>
    %cst_44 = arith.constant dense<0.000000e+00> : vector<16x32xf32>
    %128 = tpu.matmul %125, %127, %cst_44 {dimension_numbers = #tpu.dot_dimension_numbers<[1], [0], [0], [1], [0, 0, 1, 1], [], []>} : vector<16x32xf32>, vector<32x32xf32>, vector<16x32xf32> -> vector<16x32xf32>
    %129 = vector.extract_strided_slice %1 {offsets = [0, 0, 0], sizes = [1, 1, 32], strides = [1, 1, 1]} : vector<2x6x32xf32> to vector<1x1x32xf32>
    %130 = vector.shape_cast %129 : vector<1x1x32xf32> to vector<32xf32>
    %131 = vector.shape_cast %130 : vector<32xf32> to vector<1x32xf32>
    %132 = vector.broadcast %131 : vector<1x32xf32> to vector<16x32xf32>
    %133 = arith.addf %128, %132 : vector<16x32xf32>
    %134 = arith.addf %41, %133 : vector<16x32xf32>
    %135 = vector.extract_strided_slice %1 {offsets = [0, 1, 0], sizes = [1, 1, 32], strides = [1, 1, 1]} : vector<2x6x32xf32> to vector<1x1x32xf32>
    %136 = vector.shape_cast %135 : vector<1x1x32xf32> to vector<32xf32>
    %137 = vector.extract_strided_slice %1 {offsets = [0, 2, 0], sizes = [1, 1, 32], strides = [1, 1, 1]} : vector<2x6x32xf32> to vector<1x1x32xf32>
    %138 = vector.shape_cast %137 : vector<1x1x32xf32> to vector<32xf32>
    %cst_45 = arith.constant dense<0.000000e+00> : vector<16xf32>
    %139 = vector.multi_reduction <add>, %134, %cst_45 [1] : vector<16x32xf32> to vector<16xf32>
    %140 = vector.shape_cast %139 : vector<16xf32> to vector<16x1xf32>
    %cst_46 = arith.constant 3.200000e+01 : f32
    %141 = vector.broadcast %cst_46 : f32 to vector<16x1xf32>
    %142 = arith.divf %140, %141 : vector<16x1xf32>
    %143 = vector.broadcast %142 : vector<16x1xf32> to vector<16x32xf32>
    %144 = arith.subf %134, %143 : vector<16x32xf32>
    %145 = arith.mulf %144, %144 : vector<16x32xf32>
    %cst_47 = arith.constant dense<0.000000e+00> : vector<16xf32>
    %146 = vector.multi_reduction <add>, %145, %cst_47 [1] : vector<16x32xf32> to vector<16xf32>
    %147 = vector.shape_cast %146 : vector<16xf32> to vector<16x1xf32>
    %cst_48 = arith.constant 3.200000e+01 : f32
    %148 = vector.broadcast %cst_48 : f32 to vector<16x1xf32>
    %149 = arith.divf %147, %148 : vector<16x1xf32>
    %150 = vector.broadcast %142 : vector<16x1xf32> to vector<16x32xf32>
    %151 = arith.subf %134, %150 : vector<16x32xf32>
    %cst_49 = arith.constant 9.99999974E-6 : f32
    %152 = vector.broadcast %cst_49 : f32 to vector<16x1xf32>
    %153 = arith.addf %149, %152 : vector<16x1xf32>
    %154 = math.rsqrt %153 : vector<16x1xf32>
    %155 = vector.broadcast %154 : vector<16x1xf32> to vector<16x32xf32>
    %156 = arith.mulf %151, %155 : vector<16x32xf32>
    %157 = vector.shape_cast %136 : vector<32xf32> to vector<1x32xf32>
    %158 = vector.broadcast %157 : vector<1x32xf32> to vector<16x32xf32>
    %159 = arith.mulf %156, %158 : vector<16x32xf32>
    %160 = vector.shape_cast %138 : vector<32xf32> to vector<1x32xf32>
    %161 = vector.broadcast %160 : vector<1x32xf32> to vector<16x32xf32>
    %162 = arith.addf %159, %161 : vector<16x32xf32>
    %c0_50 = arith.constant 0 : index
    %c0_51 = arith.constant 0 : index
    %c0_52 = arith.constant 0 : index
    %163 = vector.load %arg9[%c0_50, %c0_51, %c0_52] : memref<2x32x64xf32, #tpu.memory_space<vmem>>, vector<1x32x64xf32>
    %164 = vector.shape_cast %163 : vector<1x32x64xf32> to vector<32x64xf32>
    %cst_53 = arith.constant dense<0.000000e+00> : vector<16x64xf32>
    %165 = tpu.matmul %162, %164, %cst_53 {dimension_numbers = #tpu.dot_dimension_numbers<[1], [0], [0], [1], [0, 0, 1, 1], [], []>} : vector<16x32xf32>, vector<32x64xf32>, vector<16x64xf32> -> vector<16x64xf32>
    %c0_54 = arith.constant 0 : index
    %c0_55 = arith.constant 0 : index
    %c0_56 = arith.constant 0 : index
    %166 = vector.load %arg10[%c0_54, %c0_55, %c0_56] : memref<2x1x64xf32, #tpu.memory_space<vmem>>, vector<1x1x64xf32>
    %167 = vector.shape_cast %166 : vector<1x1x64xf32> to vector<1x64xf32>
    %168 = vector.broadcast %167 : vector<1x64xf32> to vector<16x64xf32>
    %169 = arith.addf %165, %168 : vector<16x64xf32>
    %cst_57 = arith.constant 0.000000e+00 : f32
    %170 = vector.broadcast %cst_57 : f32 to vector<16x64xf32>
    %171 = arith.maximumf %169, %170 : vector<16x64xf32>
    %c0_58 = arith.constant 0 : index
    %c0_59 = arith.constant 0 : index
    %c0_60 = arith.constant 0 : index
    %172 = vector.load %arg11[%c0_58, %c0_59, %c0_60] : memref<2x64x32xf32, #tpu.memory_space<vmem>>, vector<1x64x32xf32>
    %173 = vector.shape_cast %172 : vector<1x64x32xf32> to vector<64x32xf32>
    %cst_61 = arith.constant dense<0.000000e+00> : vector<16x32xf32>
    %174 = tpu.matmul %171, %173, %cst_61 {dimension_numbers = #tpu.dot_dimension_numbers<[1], [0], [0], [1], [0, 0, 1, 1], [], []>} : vector<16x64xf32>, vector<64x32xf32>, vector<16x32xf32> -> vector<16x32xf32>
    %175 = vector.extract_strided_slice %1 {offsets = [0, 3, 0], sizes = [1, 1, 32], strides = [1, 1, 1]} : vector<2x6x32xf32> to vector<1x1x32xf32>
    %176 = vector.shape_cast %175 : vector<1x1x32xf32> to vector<32xf32>
    %177 = vector.shape_cast %176 : vector<32xf32> to vector<1x32xf32>
    %178 = vector.broadcast %177 : vector<1x32xf32> to vector<16x32xf32>
    %179 = arith.addf %174, %178 : vector<16x32xf32>
    %180 = arith.addf %162, %179 : vector<16x32xf32>
    %181 = vector.extract_strided_slice %1 {offsets = [0, 4, 0], sizes = [1, 1, 32], strides = [1, 1, 1]} : vector<2x6x32xf32> to vector<1x1x32xf32>
    %182 = vector.shape_cast %181 : vector<1x1x32xf32> to vector<32xf32>
    %183 = vector.extract_strided_slice %1 {offsets = [0, 5, 0], sizes = [1, 1, 32], strides = [1, 1, 1]} : vector<2x6x32xf32> to vector<1x1x32xf32>
    %184 = vector.shape_cast %183 : vector<1x1x32xf32> to vector<32xf32>
    %cst_62 = arith.constant dense<0.000000e+00> : vector<16xf32>
    %185 = vector.multi_reduction <add>, %180, %cst_62 [1] : vector<16x32xf32> to vector<16xf32>
    %186 = vector.shape_cast %185 : vector<16xf32> to vector<16x1xf32>
    %cst_63 = arith.constant 3.200000e+01 : f32
    %187 = vector.broadcast %cst_63 : f32 to vector<16x1xf32>
    %188 = arith.divf %186, %187 : vector<16x1xf32>
    %189 = vector.broadcast %188 : vector<16x1xf32> to vector<16x32xf32>
    %190 = arith.subf %180, %189 : vector<16x32xf32>
    %191 = arith.mulf %190, %190 : vector<16x32xf32>
    %cst_64 = arith.constant dense<0.000000e+00> : vector<16xf32>
    %192 = vector.multi_reduction <add>, %191, %cst_64 [1] : vector<16x32xf32> to vector<16xf32>
    %193 = vector.shape_cast %192 : vector<16xf32> to vector<16x1xf32>
    %cst_65 = arith.constant 3.200000e+01 : f32
    %194 = vector.broadcast %cst_65 : f32 to vector<16x1xf32>
    %195 = arith.divf %193, %194 : vector<16x1xf32>
    %196 = vector.broadcast %188 : vector<16x1xf32> to vector<16x32xf32>
    %197 = arith.subf %180, %196 : vector<16x32xf32>
    %cst_66 = arith.constant 9.99999974E-6 : f32
    %198 = vector.broadcast %cst_66 : f32 to vector<16x1xf32>
    %199 = arith.addf %195, %198 : vector<16x1xf32>
    %200 = math.rsqrt %199 : vector<16x1xf32>
    %201 = vector.broadcast %200 : vector<16x1xf32> to vector<16x32xf32>
    %202 = arith.mulf %197, %201 : vector<16x32xf32>
    %203 = vector.shape_cast %182 : vector<32xf32> to vector<1x32xf32>
    %204 = vector.broadcast %203 : vector<1x32xf32> to vector<16x32xf32>
    %205 = arith.mulf %202, %204 : vector<16x32xf32>
    %206 = vector.shape_cast %184 : vector<32xf32> to vector<1x32xf32>
    %207 = vector.broadcast %206 : vector<1x32xf32> to vector<16x32xf32>
    %208 = arith.addf %205, %207 : vector<16x32xf32>
    %c1 = arith.constant 1 : index
    %c0_67 = arith.constant 0 : index
    %c0_68 = arith.constant 0 : index
    %209 = vector.load %arg5[%c1, %c0_67, %c0_68] : memref<2x32x96xf32, #tpu.memory_space<vmem>>, vector<1x32x96xf32>
    %210 = vector.shape_cast %209 : vector<1x32x96xf32> to vector<32x96xf32>
    %cst_69 = arith.constant dense<0.000000e+00> : vector<16x96xf32>
    %211 = tpu.matmul %208, %210, %cst_69 {dimension_numbers = #tpu.dot_dimension_numbers<[1], [0], [0], [1], [0, 0, 1, 1], [], []>} : vector<16x32xf32>, vector<32x96xf32>, vector<16x96xf32> -> vector<16x96xf32>
    %c1_70 = arith.constant 1 : index
    %c0_71 = arith.constant 0 : index
    %c0_72 = arith.constant 0 : index
    %212 = vector.load %arg6[%c1_70, %c0_71, %c0_72] : memref<2x1x96xf32, #tpu.memory_space<vmem>>, vector<1x1x96xf32>
    %213 = vector.shape_cast %212 : vector<1x1x96xf32> to vector<1x96xf32>
    %214 = vector.broadcast %213 : vector<1x96xf32> to vector<16x96xf32>
    %215 = arith.addf %211, %214 : vector<16x96xf32>
    %216 = vector.extract_strided_slice %215 {offsets = [0, 0], sizes = [16, 8], strides = [1, 1]} : vector<16x96xf32> to vector<16x8xf32>
    %217 = vector.shape_cast %216 : vector<16x8xf32> to vector<2x8x8xf32>
    %218 = vector.extract_strided_slice %215 {offsets = [0, 32], sizes = [16, 8], strides = [1, 1]} : vector<16x96xf32> to vector<16x8xf32>
    %219 = vector.shape_cast %218 : vector<16x8xf32> to vector<2x8x8xf32>
    %220 = vector.extract_strided_slice %215 {offsets = [0, 64], sizes = [16, 8], strides = [1, 1]} : vector<16x96xf32> to vector<16x8xf32>
    %221 = vector.shape_cast %220 : vector<16x8xf32> to vector<2x8x8xf32>
    "tpu.trace_start"() <{level = 10 : i32, message = "bqd,bkd->bqk"}> : () -> ()
    %cst_73 = arith.constant dense<0.000000e+00> : vector<2x8x8xf32>
    %222 = tpu.matmul %217, %219, %cst_73 {dimension_numbers = #tpu.dot_dimension_numbers<[2], [2], [1], [1], [0, 0, 0, 1, 1, 1], [0], [0]>} : vector<2x8x8xf32>, vector<2x8x8xf32>, vector<2x8x8xf32> -> vector<2x8x8xf32>
    "tpu.trace_stop"() : () -> ()
    %cst_74 = arith.constant dense<0xFF800000> : vector<2x8xf32>
    %223 = vector.multi_reduction <maximumf>, %222, %cst_74 [2] : vector<2x8x8xf32> to vector<2x8xf32>
    %224 = vector.shape_cast %223 : vector<2x8xf32> to vector<2x8x1xf32>
    %225 = vector.broadcast %224 : vector<2x8x1xf32> to vector<2x8x8xf32>
    %226 = arith.subf %222, %225 : vector<2x8x8xf32>
    %227 = math.exp %226 : vector<2x8x8xf32>
    %cst_75 = arith.constant dense<0.000000e+00> : vector<2x8xf32>
    %228 = vector.multi_reduction <add>, %227, %cst_75 [2] : vector<2x8x8xf32> to vector<2x8xf32>
    %229 = vector.shape_cast %228 : vector<2x8xf32> to vector<2x8x1xf32>
    %230 = tpu.reciprocal %229 {approx = true} : vector<2x8x1xf32> -> vector<2x8x1xf32>
    %231 = vector.broadcast %230 : vector<2x8x1xf32> to vector<2x8x8xf32>
    %232 = arith.mulf %227, %231 : vector<2x8x8xf32>
    "tpu.trace_start"() <{level = 10 : i32, message = "bqk,bkd->bqd"}> : () -> ()
    %cst_76 = arith.constant dense<0.000000e+00> : vector<2x8x8xf32>
    %233 = tpu.matmul %232, %221, %cst_76 {dimension_numbers = #tpu.dot_dimension_numbers<[2], [1], [1], [2], [0, 0, 0, 1, 1, 2], [0], [0]>} : vector<2x8x8xf32>, vector<2x8x8xf32>, vector<2x8x8xf32> -> vector<2x8x8xf32>
    "tpu.trace_stop"() : () -> ()
    %234 = vector.shape_cast %233 : vector<2x8x8xf32> to vector<16x8xf32>
    %235 = vector.extract_strided_slice %215 {offsets = [0, 8], sizes = [16, 8], strides = [1, 1]} : vector<16x96xf32> to vector<16x8xf32>
    %236 = vector.shape_cast %235 : vector<16x8xf32> to vector<2x8x8xf32>
    %237 = vector.extract_strided_slice %215 {offsets = [0, 40], sizes = [16, 8], strides = [1, 1]} : vector<16x96xf32> to vector<16x8xf32>
    %238 = vector.shape_cast %237 : vector<16x8xf32> to vector<2x8x8xf32>
    %239 = vector.extract_strided_slice %215 {offsets = [0, 72], sizes = [16, 8], strides = [1, 1]} : vector<16x96xf32> to vector<16x8xf32>
    %240 = vector.shape_cast %239 : vector<16x8xf32> to vector<2x8x8xf32>
    "tpu.trace_start"() <{level = 10 : i32, message = "bqd,bkd->bqk"}> : () -> ()
    %cst_77 = arith.constant dense<0.000000e+00> : vector<2x8x8xf32>
    %241 = tpu.matmul %236, %238, %cst_77 {dimension_numbers = #tpu.dot_dimension_numbers<[2], [2], [1], [1], [0, 0, 0, 1, 1, 1], [0], [0]>} : vector<2x8x8xf32>, vector<2x8x8xf32>, vector<2x8x8xf32> -> vector<2x8x8xf32>
    "tpu.trace_stop"() : () -> ()
    %cst_78 = arith.constant dense<0xFF800000> : vector<2x8xf32>
    %242 = vector.multi_reduction <maximumf>, %241, %cst_78 [2] : vector<2x8x8xf32> to vector<2x8xf32>
    %243 = vector.shape_cast %242 : vector<2x8xf32> to vector<2x8x1xf32>
    %244 = vector.broadcast %243 : vector<2x8x1xf32> to vector<2x8x8xf32>
    %245 = arith.subf %241, %244 : vector<2x8x8xf32>
    %246 = math.exp %245 : vector<2x8x8xf32>
    %cst_79 = arith.constant dense<0.000000e+00> : vector<2x8xf32>
    %247 = vector.multi_reduction <add>, %246, %cst_79 [2] : vector<2x8x8xf32> to vector<2x8xf32>
    %248 = vector.shape_cast %247 : vector<2x8xf32> to vector<2x8x1xf32>
    %249 = tpu.reciprocal %248 {approx = true} : vector<2x8x1xf32> -> vector<2x8x1xf32>
    %250 = vector.broadcast %249 : vector<2x8x1xf32> to vector<2x8x8xf32>
    %251 = arith.mulf %246, %250 : vector<2x8x8xf32>
    "tpu.trace_start"() <{level = 10 : i32, message = "bqk,bkd->bqd"}> : () -> ()
    %cst_80 = arith.constant dense<0.000000e+00> : vector<2x8x8xf32>
    %252 = tpu.matmul %251, %240, %cst_80 {dimension_numbers = #tpu.dot_dimension_numbers<[2], [1], [1], [2], [0, 0, 0, 1, 1, 2], [0], [0]>} : vector<2x8x8xf32>, vector<2x8x8xf32>, vector<2x8x8xf32> -> vector<2x8x8xf32>
    "tpu.trace_stop"() : () -> ()
    %253 = vector.shape_cast %252 : vector<2x8x8xf32> to vector<16x8xf32>
    %254 = vector.extract_strided_slice %215 {offsets = [0, 16], sizes = [16, 8], strides = [1, 1]} : vector<16x96xf32> to vector<16x8xf32>
    %255 = vector.shape_cast %254 : vector<16x8xf32> to vector<2x8x8xf32>
    %256 = vector.extract_strided_slice %215 {offsets = [0, 48], sizes = [16, 8], strides = [1, 1]} : vector<16x96xf32> to vector<16x8xf32>
    %257 = vector.shape_cast %256 : vector<16x8xf32> to vector<2x8x8xf32>
    %258 = vector.extract_strided_slice %215 {offsets = [0, 80], sizes = [16, 8], strides = [1, 1]} : vector<16x96xf32> to vector<16x8xf32>
    %259 = vector.shape_cast %258 : vector<16x8xf32> to vector<2x8x8xf32>
    "tpu.trace_start"() <{level = 10 : i32, message = "bqd,bkd->bqk"}> : () -> ()
    %cst_81 = arith.constant dense<0.000000e+00> : vector<2x8x8xf32>
    %260 = tpu.matmul %255, %257, %cst_81 {dimension_numbers = #tpu.dot_dimension_numbers<[2], [2], [1], [1], [0, 0, 0, 1, 1, 1], [0], [0]>} : vector<2x8x8xf32>, vector<2x8x8xf32>, vector<2x8x8xf32> -> vector<2x8x8xf32>
    "tpu.trace_stop"() : () -> ()
    %cst_82 = arith.constant dense<0xFF800000> : vector<2x8xf32>
    %261 = vector.multi_reduction <maximumf>, %260, %cst_82 [2] : vector<2x8x8xf32> to vector<2x8xf32>
    %262 = vector.shape_cast %261 : vector<2x8xf32> to vector<2x8x1xf32>
    %263 = vector.broadcast %262 : vector<2x8x1xf32> to vector<2x8x8xf32>
    %264 = arith.subf %260, %263 : vector<2x8x8xf32>
    %265 = math.exp %264 : vector<2x8x8xf32>
    %cst_83 = arith.constant dense<0.000000e+00> : vector<2x8xf32>
    %266 = vector.multi_reduction <add>, %265, %cst_83 [2] : vector<2x8x8xf32> to vector<2x8xf32>
    %267 = vector.shape_cast %266 : vector<2x8xf32> to vector<2x8x1xf32>
    %268 = tpu.reciprocal %267 {approx = true} : vector<2x8x1xf32> -> vector<2x8x1xf32>
    %269 = vector.broadcast %268 : vector<2x8x1xf32> to vector<2x8x8xf32>
    %270 = arith.mulf %265, %269 : vector<2x8x8xf32>
    "tpu.trace_start"() <{level = 10 : i32, message = "bqk,bkd->bqd"}> : () -> ()
    %cst_84 = arith.constant dense<0.000000e+00> : vector<2x8x8xf32>
    %271 = tpu.matmul %270, %259, %cst_84 {dimension_numbers = #tpu.dot_dimension_numbers<[2], [1], [1], [2], [0, 0, 0, 1, 1, 2], [0], [0]>} : vector<2x8x8xf32>, vector<2x8x8xf32>, vector<2x8x8xf32> -> vector<2x8x8xf32>
    "tpu.trace_stop"() : () -> ()
    %272 = vector.shape_cast %271 : vector<2x8x8xf32> to vector<16x8xf32>
    %273 = vector.extract_strided_slice %215 {offsets = [0, 24], sizes = [16, 8], strides = [1, 1]} : vector<16x96xf32> to vector<16x8xf32>
    %274 = vector.shape_cast %273 : vector<16x8xf32> to vector<2x8x8xf32>
    %275 = vector.extract_strided_slice %215 {offsets = [0, 56], sizes = [16, 8], strides = [1, 1]} : vector<16x96xf32> to vector<16x8xf32>
    %276 = vector.shape_cast %275 : vector<16x8xf32> to vector<2x8x8xf32>
    %277 = vector.extract_strided_slice %215 {offsets = [0, 88], sizes = [16, 8], strides = [1, 1]} : vector<16x96xf32> to vector<16x8xf32>
    %278 = vector.shape_cast %277 : vector<16x8xf32> to vector<2x8x8xf32>
    "tpu.trace_start"() <{level = 10 : i32, message = "bqd,bkd->bqk"}> : () -> ()
    %cst_85 = arith.constant dense<0.000000e+00> : vector<2x8x8xf32>
    %279 = tpu.matmul %274, %276, %cst_85 {dimension_numbers = #tpu.dot_dimension_numbers<[2], [2], [1], [1], [0, 0, 0, 1, 1, 1], [0], [0]>} : vector<2x8x8xf32>, vector<2x8x8xf32>, vector<2x8x8xf32> -> vector<2x8x8xf32>
    "tpu.trace_stop"() : () -> ()
    %cst_86 = arith.constant dense<0xFF800000> : vector<2x8xf32>
    %280 = vector.multi_reduction <maximumf>, %279, %cst_86 [2] : vector<2x8x8xf32> to vector<2x8xf32>
    %281 = vector.shape_cast %280 : vector<2x8xf32> to vector<2x8x1xf32>
    %282 = vector.broadcast %281 : vector<2x8x1xf32> to vector<2x8x8xf32>
    %283 = arith.subf %279, %282 : vector<2x8x8xf32>
    %284 = math.exp %283 : vector<2x8x8xf32>
    %cst_87 = arith.constant dense<0.000000e+00> : vector<2x8xf32>
    %285 = vector.multi_reduction <add>, %284, %cst_87 [2] : vector<2x8x8xf32> to vector<2x8xf32>
    %286 = vector.shape_cast %285 : vector<2x8xf32> to vector<2x8x1xf32>
    %287 = tpu.reciprocal %286 {approx = true} : vector<2x8x1xf32> -> vector<2x8x1xf32>
    %288 = vector.broadcast %287 : vector<2x8x1xf32> to vector<2x8x8xf32>
    %289 = arith.mulf %284, %288 : vector<2x8x8xf32>
    "tpu.trace_start"() <{level = 10 : i32, message = "bqk,bkd->bqd"}> : () -> ()
    %cst_88 = arith.constant dense<0.000000e+00> : vector<2x8x8xf32>
    %290 = tpu.matmul %289, %278, %cst_88 {dimension_numbers = #tpu.dot_dimension_numbers<[2], [1], [1], [2], [0, 0, 0, 1, 1, 2], [0], [0]>} : vector<2x8x8xf32>, vector<2x8x8xf32>, vector<2x8x8xf32> -> vector<2x8x8xf32>
    "tpu.trace_stop"() : () -> ()
    %291 = vector.shape_cast %290 : vector<2x8x8xf32> to vector<16x8xf32>
    %292 = tpu.concatenate %234, %253, %272, %291 in 1 : vector<16x8xf32>, vector<16x8xf32>, vector<16x8xf32>, vector<16x8xf32> -> vector<16x32xf32>
    %c1_89 = arith.constant 1 : index
    %c0_90 = arith.constant 0 : index
    %c0_91 = arith.constant 0 : index
    %293 = vector.load %arg7[%c1_89, %c0_90, %c0_91] : memref<2x32x32xf32, #tpu.memory_space<vmem>>, vector<1x32x32xf32>
    %294 = vector.shape_cast %293 : vector<1x32x32xf32> to vector<32x32xf32>
    %cst_92 = arith.constant dense<0.000000e+00> : vector<16x32xf32>
    %295 = tpu.matmul %292, %294, %cst_92 {dimension_numbers = #tpu.dot_dimension_numbers<[1], [0], [0], [1], [0, 0, 1, 1], [], []>} : vector<16x32xf32>, vector<32x32xf32>, vector<16x32xf32> -> vector<16x32xf32>
    %296 = vector.extract_strided_slice %1 {offsets = [1, 0, 0], sizes = [1, 1, 32], strides = [1, 1, 1]} : vector<2x6x32xf32> to vector<1x1x32xf32>
    %297 = vector.shape_cast %296 : vector<1x1x32xf32> to vector<32xf32>
    %298 = vector.shape_cast %297 : vector<32xf32> to vector<1x32xf32>
    %299 = vector.broadcast %298 : vector<1x32xf32> to vector<16x32xf32>
    %300 = arith.addf %295, %299 : vector<16x32xf32>
    %301 = arith.addf %208, %300 : vector<16x32xf32>
    %302 = vector.extract_strided_slice %1 {offsets = [1, 1, 0], sizes = [1, 1, 32], strides = [1, 1, 1]} : vector<2x6x32xf32> to vector<1x1x32xf32>
    %303 = vector.shape_cast %302 : vector<1x1x32xf32> to vector<32xf32>
    %304 = vector.extract_strided_slice %1 {offsets = [1, 2, 0], sizes = [1, 1, 32], strides = [1, 1, 1]} : vector<2x6x32xf32> to vector<1x1x32xf32>
    %305 = vector.shape_cast %304 : vector<1x1x32xf32> to vector<32xf32>
    %cst_93 = arith.constant dense<0.000000e+00> : vector<16xf32>
    %306 = vector.multi_reduction <add>, %301, %cst_93 [1] : vector<16x32xf32> to vector<16xf32>
    %307 = vector.shape_cast %306 : vector<16xf32> to vector<16x1xf32>
    %cst_94 = arith.constant 3.200000e+01 : f32
    %308 = vector.broadcast %cst_94 : f32 to vector<16x1xf32>
    %309 = arith.divf %307, %308 : vector<16x1xf32>
    %310 = vector.broadcast %309 : vector<16x1xf32> to vector<16x32xf32>
    %311 = arith.subf %301, %310 : vector<16x32xf32>
    %312 = arith.mulf %311, %311 : vector<16x32xf32>
    %cst_95 = arith.constant dense<0.000000e+00> : vector<16xf32>
    %313 = vector.multi_reduction <add>, %312, %cst_95 [1] : vector<16x32xf32> to vector<16xf32>
    %314 = vector.shape_cast %313 : vector<16xf32> to vector<16x1xf32>
    %cst_96 = arith.constant 3.200000e+01 : f32
    %315 = vector.broadcast %cst_96 : f32 to vector<16x1xf32>
    %316 = arith.divf %314, %315 : vector<16x1xf32>
    %317 = vector.broadcast %309 : vector<16x1xf32> to vector<16x32xf32>
    %318 = arith.subf %301, %317 : vector<16x32xf32>
    %cst_97 = arith.constant 9.99999974E-6 : f32
    %319 = vector.broadcast %cst_97 : f32 to vector<16x1xf32>
    %320 = arith.addf %316, %319 : vector<16x1xf32>
    %321 = math.rsqrt %320 : vector<16x1xf32>
    %322 = vector.broadcast %321 : vector<16x1xf32> to vector<16x32xf32>
    %323 = arith.mulf %318, %322 : vector<16x32xf32>
    %324 = vector.shape_cast %303 : vector<32xf32> to vector<1x32xf32>
    %325 = vector.broadcast %324 : vector<1x32xf32> to vector<16x32xf32>
    %326 = arith.mulf %323, %325 : vector<16x32xf32>
    %327 = vector.shape_cast %305 : vector<32xf32> to vector<1x32xf32>
    %328 = vector.broadcast %327 : vector<1x32xf32> to vector<16x32xf32>
    %329 = arith.addf %326, %328 : vector<16x32xf32>
    %c1_98 = arith.constant 1 : index
    %c0_99 = arith.constant 0 : index
    %c0_100 = arith.constant 0 : index
    %330 = vector.load %arg9[%c1_98, %c0_99, %c0_100] : memref<2x32x64xf32, #tpu.memory_space<vmem>>, vector<1x32x64xf32>
    %331 = vector.shape_cast %330 : vector<1x32x64xf32> to vector<32x64xf32>
    %cst_101 = arith.constant dense<0.000000e+00> : vector<16x64xf32>
    %332 = tpu.matmul %329, %331, %cst_101 {dimension_numbers = #tpu.dot_dimension_numbers<[1], [0], [0], [1], [0, 0, 1, 1], [], []>} : vector<16x32xf32>, vector<32x64xf32>, vector<16x64xf32> -> vector<16x64xf32>
    %c1_102 = arith.constant 1 : index
    %c0_103 = arith.constant 0 : index
    %c0_104 = arith.constant 0 : index
    %333 = vector.load %arg10[%c1_102, %c0_103, %c0_104] : memref<2x1x64xf32, #tpu.memory_space<vmem>>, vector<1x1x64xf32>
    %334 = vector.shape_cast %333 : vector<1x1x64xf32> to vector<1x64xf32>
    %335 = vector.broadcast %334 : vector<1x64xf32> to vector<16x64xf32>
    %336 = arith.addf %332, %335 : vector<16x64xf32>
    %cst_105 = arith.constant 0.000000e+00 : f32
    %337 = vector.broadcast %cst_105 : f32 to vector<16x64xf32>
    %338 = arith.maximumf %336, %337 : vector<16x64xf32>
    %c1_106 = arith.constant 1 : index
    %c0_107 = arith.constant 0 : index
    %c0_108 = arith.constant 0 : index
    %339 = vector.load %arg11[%c1_106, %c0_107, %c0_108] : memref<2x64x32xf32, #tpu.memory_space<vmem>>, vector<1x64x32xf32>
    %340 = vector.shape_cast %339 : vector<1x64x32xf32> to vector<64x32xf32>
    %cst_109 = arith.constant dense<0.000000e+00> : vector<16x32xf32>
    %341 = tpu.matmul %338, %340, %cst_109 {dimension_numbers = #tpu.dot_dimension_numbers<[1], [0], [0], [1], [0, 0, 1, 1], [], []>} : vector<16x64xf32>, vector<64x32xf32>, vector<16x32xf32> -> vector<16x32xf32>
    %342 = vector.extract_strided_slice %1 {offsets = [1, 3, 0], sizes = [1, 1, 32], strides = [1, 1, 1]} : vector<2x6x32xf32> to vector<1x1x32xf32>
    %343 = vector.shape_cast %342 : vector<1x1x32xf32> to vector<32xf32>
    %344 = vector.shape_cast %343 : vector<32xf32> to vector<1x32xf32>
    %345 = vector.broadcast %344 : vector<1x32xf32> to vector<16x32xf32>
    %346 = arith.addf %341, %345 : vector<16x32xf32>
    %347 = arith.addf %329, %346 : vector<16x32xf32>
    %348 = vector.extract_strided_slice %1 {offsets = [1, 4, 0], sizes = [1, 1, 32], strides = [1, 1, 1]} : vector<2x6x32xf32> to vector<1x1x32xf32>
    %349 = vector.shape_cast %348 : vector<1x1x32xf32> to vector<32xf32>
    %350 = vector.extract_strided_slice %1 {offsets = [1, 5, 0], sizes = [1, 1, 32], strides = [1, 1, 1]} : vector<2x6x32xf32> to vector<1x1x32xf32>
    %351 = vector.shape_cast %350 : vector<1x1x32xf32> to vector<32xf32>
    %cst_110 = arith.constant dense<0.000000e+00> : vector<16xf32>
    %352 = vector.multi_reduction <add>, %347, %cst_110 [1] : vector<16x32xf32> to vector<16xf32>
    %353 = vector.shape_cast %352 : vector<16xf32> to vector<16x1xf32>
    %cst_111 = arith.constant 3.200000e+01 : f32
    %354 = vector.broadcast %cst_111 : f32 to vector<16x1xf32>
    %355 = arith.divf %353, %354 : vector<16x1xf32>
    %356 = vector.broadcast %355 : vector<16x1xf32> to vector<16x32xf32>
    %357 = arith.subf %347, %356 : vector<16x32xf32>
    %358 = arith.mulf %357, %357 : vector<16x32xf32>
    %cst_112 = arith.constant dense<0.000000e+00> : vector<16xf32>
    %359 = vector.multi_reduction <add>, %358, %cst_112 [1] : vector<16x32xf32> to vector<16xf32>
    %360 = vector.shape_cast %359 : vector<16xf32> to vector<16x1xf32>
    %cst_113 = arith.constant 3.200000e+01 : f32
    %361 = vector.broadcast %cst_113 : f32 to vector<16x1xf32>
    %362 = arith.divf %360, %361 : vector<16x1xf32>
    %363 = vector.broadcast %355 : vector<16x1xf32> to vector<16x32xf32>
    %364 = arith.subf %347, %363 : vector<16x32xf32>
    %cst_114 = arith.constant 9.99999974E-6 : f32
    %365 = vector.broadcast %cst_114 : f32 to vector<16x1xf32>
    %366 = arith.addf %362, %365 : vector<16x1xf32>
    %367 = math.rsqrt %366 : vector<16x1xf32>
    %368 = vector.broadcast %367 : vector<16x1xf32> to vector<16x32xf32>
    %369 = arith.mulf %364, %368 : vector<16x32xf32>
    %370 = vector.shape_cast %349 : vector<32xf32> to vector<1x32xf32>
    %371 = vector.broadcast %370 : vector<1x32xf32> to vector<16x32xf32>
    %372 = arith.mulf %369, %371 : vector<16x32xf32>
    %373 = vector.shape_cast %351 : vector<32xf32> to vector<1x32xf32>
    %374 = vector.broadcast %373 : vector<1x32xf32> to vector<16x32xf32>
    %375 = arith.addf %372, %374 : vector<16x32xf32>
    %376 = vector.shape_cast %375 : vector<16x32xf32> to vector<2x8x32xf32>
    %377 = vector.extract_strided_slice %376 {offsets = [0, 7, 0], sizes = [2, 1, 32], strides = [1, 1, 1]} : vector<2x8x32xf32> to vector<2x1x32xf32>
    %378 = vector.shape_cast %377 : vector<2x1x32xf32> to vector<2x32xf32>
    %379 = vector.extract_strided_slice %0 {offsets = [3, 0], sizes = [1, 32], strides = [1, 1]} : vector<5x32xf32> to vector<1x32xf32>
    %380 = vector.shape_cast %379 : vector<1x32xf32> to vector<32xf32>
    %381 = vector.extract_strided_slice %0 {offsets = [4, 0], sizes = [1, 32], strides = [1, 1]} : vector<5x32xf32> to vector<1x32xf32>
    %382 = vector.shape_cast %381 : vector<1x32xf32> to vector<32xf32>
    %cst_115 = arith.constant dense<0.000000e+00> : vector<2xf32>
    %383 = vector.multi_reduction <add>, %378, %cst_115 [1] : vector<2x32xf32> to vector<2xf32>
    %384 = vector.shape_cast %383 : vector<2xf32> to vector<2x1xf32>
    %cst_116 = arith.constant 3.200000e+01 : f32
    %385 = vector.broadcast %cst_116 : f32 to vector<2x1xf32>
    %386 = arith.divf %384, %385 : vector<2x1xf32>
    %387 = vector.broadcast %386 : vector<2x1xf32> to vector<2x32xf32>
    %388 = arith.subf %378, %387 : vector<2x32xf32>
    %389 = arith.mulf %388, %388 : vector<2x32xf32>
    %cst_117 = arith.constant dense<0.000000e+00> : vector<2xf32>
    %390 = vector.multi_reduction <add>, %389, %cst_117 [1] : vector<2x32xf32> to vector<2xf32>
    %391 = vector.shape_cast %390 : vector<2xf32> to vector<2x1xf32>
    %cst_118 = arith.constant 3.200000e+01 : f32
    %392 = vector.broadcast %cst_118 : f32 to vector<2x1xf32>
    %393 = arith.divf %391, %392 : vector<2x1xf32>
    %394 = vector.broadcast %386 : vector<2x1xf32> to vector<2x32xf32>
    %395 = arith.subf %378, %394 : vector<2x32xf32>
    %cst_119 = arith.constant 9.99999974E-6 : f32
    %396 = vector.broadcast %cst_119 : f32 to vector<2x1xf32>
    %397 = arith.addf %393, %396 : vector<2x1xf32>
    %398 = math.rsqrt %397 : vector<2x1xf32>
    %399 = vector.broadcast %398 : vector<2x1xf32> to vector<2x32xf32>
    %400 = arith.mulf %395, %399 : vector<2x32xf32>
    %401 = vector.shape_cast %380 : vector<32xf32> to vector<1x32xf32>
    %402 = vector.broadcast %401 : vector<1x32xf32> to vector<2x32xf32>
    %403 = arith.mulf %400, %402 : vector<2x32xf32>
    %404 = vector.shape_cast %382 : vector<32xf32> to vector<1x32xf32>
    %405 = vector.broadcast %404 : vector<1x32xf32> to vector<2x32xf32>
    %406 = arith.addf %403, %405 : vector<2x32xf32>
    %c0_120 = arith.constant 0 : index
    %c0_121 = arith.constant 0 : index
    %407 = vector.load %arg12[%c0_120, %c0_121] : memref<32x16xf32, #tpu.memory_space<vmem>>, vector<32x16xf32>
    %cst_122 = arith.constant dense<0.000000e+00> : vector<2x16xf32>
    %408 = tpu.matmul %406, %407, %cst_122 {dimension_numbers = #tpu.dot_dimension_numbers<[1], [0], [0], [1], [0, 0, 1, 1], [], []>} : vector<2x32xf32>, vector<32x16xf32>, vector<2x16xf32> -> vector<2x16xf32>
    %409 = vector.extract_strided_slice %2 {offsets = [0, 0], sizes = [1, 16], strides = [1, 1]} : vector<3x16xf32> to vector<1x16xf32>
    %410 = vector.shape_cast %409 : vector<1x16xf32> to vector<16xf32>
    %411 = vector.shape_cast %410 : vector<16xf32> to vector<1x16xf32>
    %412 = vector.broadcast %411 : vector<1x16xf32> to vector<2x16xf32>
    %413 = arith.addf %408, %412 : vector<2x16xf32>
    %414 = vector.extract_strided_slice %2 {offsets = [1, 0], sizes = [1, 16], strides = [1, 1]} : vector<3x16xf32> to vector<1x16xf32>
    %415 = vector.shape_cast %414 : vector<1x16xf32> to vector<16xf32>
    %416 = vector.shape_cast %415 : vector<16xf32> to vector<1x16xf32>
    %417 = vector.broadcast %416 : vector<1x16xf32> to vector<2x16xf32>
    %418 = arith.mulf %413, %417 : vector<2x16xf32>
    %419 = vector.extract_strided_slice %2 {offsets = [2, 0], sizes = [1, 16], strides = [1, 1]} : vector<3x16xf32> to vector<1x16xf32>
    %420 = vector.shape_cast %419 : vector<1x16xf32> to vector<16xf32>
    %421 = vector.shape_cast %420 : vector<16xf32> to vector<1x16xf32>
    %422 = vector.broadcast %421 : vector<1x16xf32> to vector<2x16xf32>
    %423 = arith.addf %418, %422 : vector<2x16xf32>
    %c0_123 = arith.constant 0 : index
    %c0_124 = arith.constant 0 : index
    %424 = vector.load %arg14[%c0_123, %c0_124] : memref<2x16xf32, #tpu.memory_space<vmem>>, vector<2x16xf32>
    tpu.vector_store %arg14[%c0_123, %c0_124], %423 {strides = array<i32>} : memref<2x16xf32, #tpu.memory_space<vmem>>, vector<2x16xf32>,
    return
  }
  func.func @transform_0(%arg0: i32) -> (i32, i32, i32) {
    %c0_i32 = arith.constant 0 : i32
    %c0_i32_0 = arith.constant 0 : i32
    %c0_i32_1 = arith.constant 0 : i32
    return %arg0, %c0_i32, %c0_i32_0 : i32, i32, i32
  }
  func.func @transform_1(%arg0: i32) -> (i32, i32) {
    %c0_i32 = arith.constant 0 : i32
    %c0_i32_0 = arith.constant 0 : i32
    %c0_i32_1 = arith.constant 0 : i32
    return %c0_i32, %c0_i32_0 : i32, i32
  }
  func.func @transform_2(%arg0: i32) -> (i32, i32) {
    %c0_i32 = arith.constant 0 : i32
    %c0_i32_0 = arith.constant 0 : i32
    %c0_i32_1 = arith.constant 0 : i32
    return %c0_i32, %c0_i32_0 : i32, i32
  }
  func.func @transform_3(%arg0: i32) -> (i32, i32) {
    %c0_i32 = arith.constant 0 : i32
    %c0_i32_0 = arith.constant 0 : i32
    %c0_i32_1 = arith.constant 0 : i32
    return %c0_i32, %c0_i32_0 : i32, i32
  }
  func.func @transform_4(%arg0: i32) -> (i32, i32, i32) {
    %c0_i32 = arith.constant 0 : i32
    %c0_i32_0 = arith.constant 0 : i32
    %c0_i32_1 = arith.constant 0 : i32
    %c0_i32_2 = arith.constant 0 : i32
    return %c0_i32, %c0_i32_0, %c0_i32_1 : i32, i32, i32
  }
  func.func @transform_5(%arg0: i32) -> (i32, i32, i32) {
    %c0_i32 = arith.constant 0 : i32
    %c0_i32_0 = arith.constant 0 : i32
    %c0_i32_1 = arith.constant 0 : i32
    %c0_i32_2 = arith.constant 0 : i32
    return %c0_i32, %c0_i32_0, %c0_i32_1 : i32, i32, i32
  }
  func.func @transform_6(%arg0: i32) -> (i32, i32, i32) {
    %c0_i32 = arith.constant 0 : i32
    %c0_i32_0 = arith.constant 0 : i32
    %c0_i32_1 = arith.constant 0 : i32
    %c0_i32_2 = arith.constant 0 : i32
    return %c0_i32, %c0_i32_0, %c0_i32_1 : i32, i32, i32
  }
  func.func @transform_7(%arg0: i32) -> (i32, i32, i32) {
    %c0_i32 = arith.constant 0 : i32
    %c0_i32_0 = arith.constant 0 : i32
    %c0_i32_1 = arith.constant 0 : i32
    %c0_i32_2 = arith.constant 0 : i32
    return %c0_i32, %c0_i32_0, %c0_i32_1 : i32, i32, i32
  }
  func.func @transform_8(%arg0: i32) -> (i32, i32, i32) {
    %c0_i32 = arith.constant 0 : i32
    %c0_i32_0 = arith.constant 0 : i32
    %c0_i32_1 = arith.constant 0 : i32
    %c0_i32_2 = arith.constant 0 : i32
    return %c0_i32, %c0_i32_0, %c0_i32_1 : i32, i32, i32
  }
  func.func @transform_9(%arg0: i32) -> (i32, i32, i32) {
    %c0_i32 = arith.constant 0 : i32
    %c0_i32_0 = arith.constant 0 : i32
    %c0_i32_1 = arith.constant 0 : i32
    %c0_i32_2 = arith.constant 0 : i32
    return %c0_i32, %c0_i32_0, %c0_i32_1 : i32, i32, i32
  }
  func.func @transform_10(%arg0: i32) -> (i32, i32, i32) {
    %c0_i32 = arith.constant 0 : i32
    %c0_i32_0 = arith.constant 0 : i32
    %c0_i32_1 = arith.constant 0 : i32
    %c0_i32_2 = arith.constant 0 : i32
    return %c0_i32, %c0_i32_0, %c0_i32_1 : i32, i32, i32
  }
  func.func @transform_11(%arg0: i32) -> (i32, i32) {
    %c0_i32 = arith.constant 0 : i32
    %c0_i32_0 = arith.constant 0 : i32
    %c0_i32_1 = arith.constant 0 : i32
    return %c0_i32, %c0_i32_0 : i32, i32
  }
  func.func @transform_12(%arg0: i32) -> (i32, i32) {
    %c0_i32 = arith.constant 0 : i32
    %c0_i32_0 = arith.constant 0 : i32
    %c0_i32_1 = arith.constant 0 : i32
    return %c0_i32, %c0_i32_0 : i32, i32
  }
  func.func @transform_13(%arg0: i32) -> (i32, i32) {
    %c0_i32 = arith.constant 0 : i32
    %c0_i32_0 = arith.constant 0 : i32
    return %arg0, %c0_i32 : i32, i32
  }
}

</mosaic_0001>

<llo_original>
// kernel: tpu_custom_call.1
$region0: #{tpu_custom_call.1}
  #allocation0 [shape = 'u32[]', space=smem, size = 0x4, offset = 0x4, fixed_abs, tag = 'smem constant byte address 0x4 - core index']
  #allocation1 [shape = 'u32[144,128]{1,0:T(1,128)}', space=vmem, size = 0x12000, scoped, tag = 'internal scratch']
  %s0 = inlined_call_operand.vmem [shape: f32[2,8,16], index: 0, kind: input, shape index: {}]
  %s1 = inlined_call_operand.vmem [shape: f32[16,32], index: 1, kind: input, shape index: {}]
  %s2 = inlined_call_operand.vmem [shape: f32[16,32], index: 2, kind: input, shape index: {}]
  %s3 = inlined_call_operand.hbm [shape: f32[5,32], index: 3, kind: input, shape index: {}]
  %s4 = inlined_call_operand.vmem [shape: f32[2,32,96], index: 4, kind: input, shape index: {}]
  %s5 = inlined_call_operand.hbm [shape: f32[2,1,96], index: 5, kind: input, shape index: {}]
  %s6 = inlined_call_operand.vmem [shape: f32[2,32,32], index: 6, kind: input, shape index: {}]
  %s7 = inlined_call_operand.vmem [shape: f32[2,6,32], index: 7, kind: input, shape index: {}]
  %s8 = inlined_call_operand.vmem [shape: f32[2,32,64], index: 8, kind: input, shape index: {}]
  %s9 = inlined_call_operand.hbm [shape: f32[2,1,64], index: 9, kind: input, shape index: {}]
  %s10 = inlined_call_operand.vmem [shape: f32[2,64,32], index: 10, kind: input, shape index: {}]
  %s11 = inlined_call_operand.vmem [shape: f32[32,16], index: 11, kind: input, shape index: {}]
  %s12 = inlined_call_operand.vmem [shape: f32[3,16], index: 12, kind: input, shape index: {}]
  %s13 = inlined_call_operand.hbm [shape: f32[2,16], index: 13, kind: output, shape index: {}]
  %s14 = sld [smem:[#allocation0]]
  $region74: #{tpu_custom_call.1} parent=0
    _
  %s16 = ssub.s32 1, %s14
  %s17 = scalar_select 0, %s16, %s14
  $region1: #{tpu_custom_call.1} parent=0
    #allocation2 [shape = 'u8[4096]{0}', space=vmem, size = 0x1000, scoped, tag = 'input window, operand 3, single buffered']
    #allocation3 [shape = 's32[1]{0}', space=sflag, size = 0x4, scoped, tag = 'scoped memory for tpu_custom_call.1']
    #allocation4 [shape = 's32[1]{0}', space=sflag, size = 0x4, scoped, tag = 'scoped memory for tpu_custom_call.1']
    #allocation5 [shape = 'u8[1024]{0}', space=vmem, size = 0x400, scoped, tag = 'input window, operand 5, single buffered']
    #allocation6 [shape = 's32[1]{0}', space=sflag, size = 0x4, scoped, tag = 'scoped memory for tpu_custom_call.1']
    #allocation7 [shape = 'u8[1024]{0}', space=vmem, size = 0x400, scoped, tag = 'input window, operand 9, single buffered']
    #allocation8 [shape = 'u8[1024]{0}', space=vmem, size = 0x400, scoped, tag = 'output window, operand 0, single buffered']
    %18 = vsyncpa [#allocation3], 0
    %19 = vsyncpa [#allocation6], 0
    %20 = vsyncpa [#allocation4], 0
    // Predicated region
    $region2: #{tpu_custom_call.1} parent=1 // pred_check
      _
    $region3: #{tpu_custom_call.1} parent=1 // pred_check_branch
      %22 = sbr.rel (0) target = $region5
    $region4: #{tpu_custom_call.1} parent=1 // pred_region
      _
    $region5: #{tpu_custom_call.1} parent=1 // pred_fallthru
      _
    // Predicated region
    $region6: #{tpu_custom_call.1} parent=1 // pred_check
      _
    $region7: #{tpu_custom_call.1} parent=1 // pred_check_branch
      %24 = sbr.rel (0) target = $region9
    $region8: #{tpu_custom_call.1} parent=1 // pred_region
      _
    $region9: #{tpu_custom_call.1} parent=1 // pred_fallthru
      _
    // Predicated region
    $region10: #{tpu_custom_call.1} parent=1 // pred_check
      _
    $region11: #{tpu_custom_call.1} parent=1 // pred_check_branch
      %26 = sbr.rel (0) target = $region13
    $region12: #{tpu_custom_call.1} parent=1 // pred_region
      _
    $region13: #{tpu_custom_call.1} parent=1 // pred_fallthru
      _
    // Predicated region
    $region14: #{tpu_custom_call.1} parent=1 // pred_check
      _
    $region15: #{tpu_custom_call.1} parent=1 // pred_check_branch
      %28 = sbr.rel (0) target = $region17
    $region16: #{tpu_custom_call.1} parent=1 // pred_region
      %s30 = ssub.s32 128, 128
      %31 = vsyncadd [#allocation3], %s30
      %s33 = sshll.u32 [#allocation2], 4
      %s34 = int_to_ptr.vmem [resolvable:$true] %s33
      %36 = dma.hbm_to_vmem [thread:$0]  %s3, 128, %s34, [#allocation3]
    $region17: #{tpu_custom_call.1} parent=1 // pred_fallthru
      _
    // Predicated region
    $region18: #{tpu_custom_call.1} parent=1 // pred_check
      _
    $region19: #{tpu_custom_call.1} parent=1 // pred_check_branch
      %38 = sbr.rel (0) target = $region21
    $region20: #{tpu_custom_call.1} parent=1 // pred_region
      _
    $region21: #{tpu_custom_call.1} parent=1 // pred_fallthru
      _
    // Predicated region
    $region22: #{tpu_custom_call.1} parent=1 // pred_check
      _
    $region23: #{tpu_custom_call.1} parent=1 // pred_check_branch
      %40 = sbr.rel (0) target = $region25
    $region24: #{tpu_custom_call.1} parent=1 // pred_region
      %s42 = ssub.s32 32, 32
      %43 = vsyncadd [#allocation6], %s42
      %s44 = sshll.u32 [#allocation5], 4
      %s45 = int_to_ptr.vmem [resolvable:$true] %s44
      %50 = dma.hbm_to_vmem [thread:$0]  %s5, 32, %s45, [#allocation6], 16, 16, 1
    $region25: #{tpu_custom_call.1} parent=1 // pred_fallthru
      _
    // Predicated region
    $region26: #{tpu_custom_call.1} parent=1 // pred_check
      _
    $region27: #{tpu_custom_call.1} parent=1 // pred_check_branch
      %52 = sbr.rel (0) target = $region29
    $region28: #{tpu_custom_call.1} parent=1 // pred_region
      _
    $region29: #{tpu_custom_call.1} parent=1 // pred_fallthru
      _
    // Predicated region
    $region30: #{tpu_custom_call.1} parent=1 // pred_check
      _
    $region31: #{tpu_custom_call.1} parent=1 // pred_check_branch
      %54 = sbr.rel (0) target = $region33
    $region32: #{tpu_custom_call.1} parent=1 // pred_region
      _
    $region33: #{tpu_custom_call.1} parent=1 // pred_fallthru
      _
    // Predicated region
    $region34: #{tpu_custom_call.1} parent=1 // pred_check
      _
    $region35: #{tpu_custom_call.1} parent=1 // pred_check_branch
      %56 = sbr.rel (0) target = $region37
    $region36: #{tpu_custom_call.1} parent=1 // pred_region
      _
    $region37: #{tpu_custom_call.1} parent=1 // pred_fallthru
      _
    // Predicated region
    $region38: #{tpu_custom_call.1} parent=1 // pred_check
      _
    $region39: #{tpu_custom_call.1} parent=1 // pred_check_branch
      %58 = sbr.rel (0) target = $region41
    $region40: #{tpu_custom_call.1} parent=1 // pred_region
      %s60 = ssub.s32 32, 32
      %61 = vsyncadd [#allocation6], %s60
      %s62 = sshll.u32 [#allocation7], 4
      %s63 = int_to_ptr.vmem [resolvable:$true] %s62
      %68 = dma.hbm_to_vmem [thread:$0]  %s9, 32, %s63, [#allocation6], 16, 16, 1
    $region41: #{tpu_custom_call.1} parent=1 // pred_fallthru
      _
    // Predicated region
    $region42: #{tpu_custom_call.1} parent=1 // pred_check
      _
    $region43: #{tpu_custom_call.1} parent=1 // pred_check_branch
      %70 = sbr.rel (0) target = $region45
    $region44: #{tpu_custom_call.1} parent=1 // pred_region
      _
    $region45: #{tpu_custom_call.1} parent=1 // pred_fallthru
      _
    // Predicated region
    $region46: #{tpu_custom_call.1} parent=1 // pred_check
      _
    $region47: #{tpu_custom_call.1} parent=1 // pred_check_branch
      %72 = sbr.rel (0) target = $region49
    $region48: #{tpu_custom_call.1} parent=1 // pred_region
      _
    $region49: #{tpu_custom_call.1} parent=1 // pred_fallthru
      _
    // Predicated region
    $region50: #{tpu_custom_call.1} parent=1 // pred_check
      _
    $region51: #{tpu_custom_call.1} parent=1 // pred_check_branch
      %74 = sbr.rel (0) target = $region53
    $region52: #{tpu_custom_call.1} parent=1 // pred_region
      _
    $region53: #{tpu_custom_call.1} parent=1 // pred_fallthru
      _
    // Predicated region
    $region54: #{tpu_custom_call.1} parent=1 // pred_check
      _
    $region55: #{tpu_custom_call.1} parent=1 // pred_check_branch
      %76 = sbr.rel (0) target = $region57
    $region56: #{tpu_custom_call.1} parent=1 // pred_region
      %77 = dma.done [#allocation3], 128
    $region57: #{tpu_custom_call.1} parent=1 // pred_fallthru
      _
    // Predicated region
    $region58: #{tpu_custom_call.1} parent=1 // pred_check
      _
    $region59: #{tpu_custom_call.1} parent=1 // pred_check_branch
      %79 = sbr.rel (0) target = $region61
    $region60: #{tpu_custom_call.1} parent=1 // pred_region
      %80 = dma.done [#allocation6], 32
    $region61: #{tpu_custom_call.1} parent=1 // pred_fallthru
      _
    // Predicated region
    $region62: #{tpu_custom_call.1} parent=1 // pred_check
      _
    $region63: #{tpu_custom_call.1} parent=1 // pred_check_branch
      %82 = sbr.rel (0) target = $region65
    $region64: #{tpu_custom_call.1} parent=1 // pred_region
      %83 = dma.done [#allocation6], 32
    $region65: #{tpu_custom_call.1} parent=1 // pred_fallthru
      _
    %v84 = vld [vmem:[#allocation2] sm:$0x1f]
    %v85 = vld [vmem:[%s7] sm:$0x3f]
    %v86 = vld [vmem:[%s7 + $0x8] sm:$0x3f]
    %v87 = vld [vmem:[%s12] sm:$0x7]
    %v88 = vld [vmem:[%s0] sm:$0xff]
    %v89 = vld [vmem:[%s0 + $0x8] sm:$0xff]
    %v90 = vld [vmem:[%s2] sm:$0xff]
    %v91 = vld [vmem:[%s2 + $0x8] sm:$0xff]
    %v92 = vlaneseq
    %v93 = vshrl.u32 %v92, 7
    %v94 = vsub.s32 0, %v93
    %v95 = vrot.slane %v84, %v94
    %vm96 = vcmask 130048
    %v98 = vsel %vm96, %v88, 0
    %v101 = vsel %vm96, %v89, 0
    %103 = vmatprep.subr.mxu0 0.0
    %104 = vmatpush1.msra.mxu0 %v90
    %105 = vmatprep.subr.mxu0 0.0
    %106 = vmatpush1.msra.mxu0 %v91
    %107 = vmatprep.subr.mxu0 0.0
    %108 = vmatpush1.msra.mxu0 0.0
    %109 = vmatprep.subr.mxu0 0.0
    %110 = vmatpush1.msra.mxu0 0.0
    %111 = vmatprep.subr.mxu0 0.0
    %112 = vmatpush1.msra.mxu0 0.0
    %113 = vmatprep.subr.mxu0 0.0
    %114 = vmatpush1.msra.mxu0 0.0
    %115 = vmatprep.subr.mxu0 0.0
    %116 = vmatpush1.msra.mxu0 0.0
    %117 = vmatprep.subr.mxu0 0.0
    %118 = vmatpush1.msra.mxu0 0.0
    %119 = vmatprep.subr.mxu0 0.0
    %120 = vmatpush1.msra.mxu0 0.0
    %121 = vmatprep.subr.mxu0 0.0
    %122 = vmatpush1.msra.mxu0 0.0
    %123 = vmatprep.subr.mxu0 0.0
    %124 = vmatpush1.msra.mxu0 0.0
    %125 = vmatprep.subr.mxu0 0.0
    %126 = vmatpush1.msra.mxu0 0.0
    %127 = vmatprep.subr.mxu0 0.0
    %128 = vmatpush1.msra.mxu0 0.0
    %129 = vmatprep.subr.mxu0 0.0
    %130 = vmatpush1.msra.mxu0 0.0
    %131 = vmatprep.subr.mxu0 0.0
    %132 = vmatpush1.msra.mxu0 0.0
    %133 = vmatprep.subr.mxu0 0.0
    %134 = vmatpush1.msra.mxu0 0.0
    %135 = vmatprep.subr.mxu0 0.0
    %136 = vmatpush1.msra.mxu0 0.0
    %137 = vmatprep.subr.mxu0 0.0
    %138 = vmatpush1.msra.mxu0 0.0
    %139 = vmatprep.subr.mxu0 0.0
    %140 = vmatpush1.msra.mxu0 0.0
    %141 = vmatprep.subr.mxu0 0.0
    %142 = vmatpush1.msra.mxu0 0.0
    %143 = vmatprep.subr.mxu0 0.0
    %144 = vmatpush1.msra.mxu0 0.0
    %145 = vmatprep.subr.mxu0 0.0
    %146 = vmatpush1.msra.mxu0 0.0
    %147 = vmatprep.subr.mxu0 0.0
    %148 = vmatpush1.msra.mxu0 0.0
    %149 = vmatprep.subr.mxu0 0.0
    %150 = vmatpush1.msra.mxu0 0.0
    %151 = vmatprep.subr.mxu0 0.0
    %152 = vmatpush1.msra.mxu0 0.0
    %153 = vmatprep.subr.mxu0 0.0
    %154 = vmatpush1.msra.mxu0 0.0
    %155 = vmatprep.subr.mxu0 0.0
    %156 = vmatpush1.msra.mxu0 0.0
    %157 = vmatprep.subr.mxu0 0.0
    %158 = vmatpush1.msra.mxu0 0.0
    %159 = vmatprep.subr.mxu0 0.0
    %160 = vmatpush1.msra.mxu0 0.0
    %161 = vmatprep.subr.mxu0 0.0
    %162 = vmatpush1.msra.mxu0 0.0
    %163 = vmatprep.subr.mxu0 0.0
    %164 = vmatpush1.msra.mxu0 0.0
    %165 = vmatprep.subr.mxu0 0.0
    %166 = vmatpush1.msra.mxu0 0.0
    %167 = vmatprep.mubr.f32.mxu0 0.0
    %168 = vmatmul.mubr.f32.gmra.mrb[0].mxu0 %v98
    %v169 = vpop.f32.mrb[0].mxu0
    %v170 = vadd.f32 %v95, %v169
    %v171 = vpop.f32.mrb[0].mxu0
    %172 = vmatprep.mubr.f32.mxu0 0.0
    %173 = vmatmul.mubr.f32.gmra.mrb[0].mxu0 %v101
    %v174 = vpop.f32.mrb[0].mxu0
    %v175 = vadd.f32 %v95, %v174
    %v176 = vpop.f32.mrb[0].mxu0
    %177 = vdwg.mxu0
    %v178 = vld [vmem:[%s1] sm:$0xff]
    %v179 = vld [vmem:[%s1 + $0x8] sm:$0xff]
    %v180 = vadd.f32 %v170, %v178
    %v181 = vadd.f32 %v175, %v179
    %vm182 = vcmask 261120
    %v183 = vsel %vm182, %v180, 0.0
    %184 = vadd.xlane.f32.xlu0 %v183
    %v185 = vpop.xlane.xlu0 %184
    %v186 = vsel %vm182, %v181, 0.0
    %187 = vadd.xlane.f32.xlu0 %v186
    %v188 = vpop.xlane.xlu0 %187
    %v189 = vrcp.pop 32.0
    %v190 = vmul.f32 %v185, %v189
    %v191 = vmul.f32 %v188, %v189
    %v192 = vsub.f32 %v180, %v190
    %v193 = vsub.f32 %v181, %v191
    %v194 = vmul.f32 %v192, %v192
    %v195 = vmul.f32 %v193, %v193
    %v196 = vsel %vm182, %v194, 0.0
    %197 = vadd.xlane.f32.xlu0 %v196
    %v198 = vpop.xlane.xlu0 %197
    %v199 = vsel %vm182, %v195, 0.0
    %200 = vadd.xlane.f32.xlu0 %v199
    %v201 = vpop.xlane.xlu0 %200
    %v202 = vmul.f32 %v198, %v189
    %v203 = vmul.f32 %v201, %v189
    %v204 = vadd.f32 %v202, 1e-05
    %v205 = vadd.f32 %v203, 1e-05
    %v206 = vrsqrt.pop %v204
    %v207 = vrsqrt.pop %v205
    %v208 = vmul.f32 %v192, %v206
    %v209 = vmul.f32 %v193, %v207
    %v210 = vlaneseq
    %v211 = vshrl.u32 %v210, 7
    %v212 = vsub.s32 1, %v211
    %v213 = vrot.slane %v84, %v212
    %v214 = vmul.f32 %v208, %v213
    %v215 = vmul.f32 %v209, %v213
    %v216 = vlaneseq
    %v217 = vshrl.u32 %v216, 7
    %v218 = vsub.s32 2, %v217
    %v219 = vrot.slane %v84, %v218
    %v220 = vadd.f32 %v214, %v219
    %v221 = vadd.f32 %v215, %v219
    %v222 = vld [vmem:[%s4] sm:$0xff]
    %v223 = vld [vmem:[%s4 + $0x8] sm:$0xff]
    %v224 = vld [vmem:[%s4 + $0x10] sm:$0xff]
    %v225 = vld [vmem:[%s4 + $0x18] sm:$0xff]
    %v226 = vld [vmem:[#allocation5] sm:$0x1]
    %v228 = vlaneseq
    %v229 = vshrl.u32 %v228, 7
    %v230 = vsub.s32 0, %v229
    %v231 = vrot.slane %v226, %v230
    %v234 = vsel %vm182, %v220, 0
    %v237 = vsel %vm182, %v221, 0
    %239 = vmatprep.subr.mxu0 0.0
    %240 = vmatpush1.msra.mxu0 %v222
    %241 = vmatprep.subr.mxu0 0.0
    %242 = vmatpush1.msra.mxu0 %v223
    %243 = vmatprep.subr.mxu0 0.0
    %244 = vmatpush1.msra.mxu0 %v224
    %245 = vmatprep.subr.mxu0 0.0
    %246 = vmatpush1.msra.mxu0 %v225
    %247 = vmatprep.subr.mxu0 0.0
    %248 = vmatpush1.msra.mxu0 0.0
    %249 = vmatprep.subr.mxu0 0.0
    %250 = vmatpush1.msra.mxu0 0.0
    %251 = vmatprep.subr.mxu0 0.0
    %252 = vmatpush1.msra.mxu0 0.0
    %253 = vmatprep.subr.mxu0 0.0
    %254 = vmatpush1.msra.mxu0 0.0
    %255 = vmatprep.subr.mxu0 0.0
    %256 = vmatpush1.msra.mxu0 0.0
    %257 = vmatprep.subr.mxu0 0.0
    %258 = vmatpush1.msra.mxu0 0.0
    %259 = vmatprep.subr.mxu0 0.0
    %260 = vmatpush1.msra.mxu0 0.0
    %261 = vmatprep.subr.mxu0 0.0
    %262 = vmatpush1.msra.mxu0 0.0
    %263 = vmatprep.subr.mxu0 0.0
    %264 = vmatpush1.msra.mxu0 0.0
    %265 = vmatprep.subr.mxu0 0.0
    %266 = vmatpush1.msra.mxu0 0.0
    %267 = vmatprep.subr.mxu0 0.0
    %268 = vmatpush1.msra.mxu0 0.0
    %269 = vmatprep.subr.mxu0 0.0
    %270 = vmatpush1.msra.mxu0 0.0
    %271 = vmatprep.subr.mxu0 0.0
    %272 = vmatpush1.msra.mxu0 0.0
    %273 = vmatprep.subr.mxu0 0.0
    %274 = vmatpush1.msra.mxu0 0.0
    %275 = vmatprep.subr.mxu0 0.0
    %276 = vmatpush1.msra.mxu0 0.0
    %277 = vmatprep.subr.mxu0 0.0
    %278 = vmatpush1.msra.mxu0 0.0
    %279 = vmatprep.subr.mxu0 0.0
    %280 = vmatpush1.msra.mxu0 0.0
    %281 = vmatprep.subr.mxu0 0.0
    %282 = vmatpush1.msra.mxu0 0.0
    %283 = vmatprep.subr.mxu0 0.0
    %284 = vmatpush1.msra.mxu0 0.0
    %285 = vmatprep.subr.mxu0 0.0
    %286 = vmatpush1.msra.mxu0 0.0
    %287 = vmatprep.subr.mxu0 0.0
    %288 = vmatpush1.msra.mxu0 0.0
    %289 = vmatprep.subr.mxu0 0.0
    %290 = vmatpush1.msra.mxu0 0.0
    %291 = vmatprep.subr.mxu0 0.0
    %292 = vmatpush1.msra.mxu0 0.0
    %293 = vmatprep.subr.mxu0 0.0
    %294 = vmatpush1.msra.mxu0 0.0
    %295 = vmatprep.subr.mxu0 0.0
    %296 = vmatpush1.msra.mxu0 0.0
    %297 = vmatprep.subr.mxu0 0.0
    %298 = vmatpush1.msra.mxu0 0.0
    %299 = vmatprep.subr.mxu0 0.0
    %300 = vmatpush1.msra.mxu0 0.0
    %301 = vmatprep.subr.mxu0 0.0
    %302 = vmatpush1.msra.mxu0 0.0
    %303 = vmatprep.mubr.f32.mxu0 0.0
    %304 = vmatmul.mubr.f32.gmra.mrb[0].mxu0 %v234
    %v305 = vpop.f32.mrb[0].mxu0
    %v306 = vadd.f32 %v231, %v305
    %v307 = vpop.f32.mrb[0].mxu0
    %308 = vmatprep.mubr.f32.mxu0 0.0
    %309 = vmatmul.mubr.f32.gmra.mrb[0].mxu0 %v237
    %v310 = vpop.f32.mrb[0].mxu0
    %v311 = vadd.f32 %v231, %v310
    %v312 = vpop.f32.mrb[0].mxu0
    %313 = vdwg.mxu0
    %315 = vrot.lane.b32.xlu0 %v306, 96
    %v316 = vpop.permute.xlu0 %315
    %vm317 = vcmask 64512
    %v318 = vsel %vm317, %v306, 0
    %v320 = vsel %vm317, %v316, 0
    %322 = vmatprep.subr.mxu0 0.0
    %323 = vmatpush1.xpose.msra.mxu0 %v320
    %324 = vmatprep.subr.mxu0 0.0
    %325 = vmatpush1.xpose.msra.mxu0 0.0
    %326 = vmatprep.subr.mxu0 0.0
    %327 = vmatpush1.xpose.msra.mxu0 0.0
    %328 = vmatprep.subr.mxu0 0.0
    %329 = vmatpush1.xpose.msra.mxu0 0.0
    %330 = vmatprep.subr.mxu0 0.0
    %331 = vmatpush1.xpose.msra.mxu0 0.0
    %332 = vmatprep.subr.mxu0 0.0
    %333 = vmatpush1.xpose.msra.mxu0 0.0
    %334 = vmatprep.subr.mxu0 0.0
    %335 = vmatpush1.xpose.msra.mxu0 0.0
    %336 = vmatprep.subr.mxu0 0.0
    %337 = vmatpush1.xpose.msra.mxu0 0.0
    %338 = vmatprep.subr.mxu0 0.0
    %339 = vmatpush1.xpose.msra.mxu0 0.0
    %340 = vmatprep.subr.mxu0 0.0
    %341 = vmatpush1.xpose.msra.mxu0 0.0
    %342 = vmatprep.subr.mxu0 0.0
    %343 = vmatpush1.xpose.msra.mxu0 0.0
    %344 = vmatprep.subr.mxu0 0.0
    %345 = vmatpush1.xpose.msra.mxu0 0.0
    %346 = vmatprep.subr.mxu0 0.0
    %347 = vmatpush1.xpose.msra.mxu0 0.0
    %348 = vmatprep.subr.mxu0 0.0
    %349 = vmatpush1.xpose.msra.mxu0 0.0
    %350 = vmatprep.subr.mxu0 0.0
    %351 = vmatpush1.xpose.msra.mxu0 0.0
    %352 = vmatprep.subr.mxu0 0.0
    %353 = vmatpush1.xpose.msra.mxu0 0.0
    %354 = vmatprep.subr.mxu0 0.0
    %355 = vmatpush1.xpose.msra.mxu0 0.0
    %356 = vmatprep.subr.mxu0 0.0
    %357 = vmatpush1.xpose.msra.mxu0 0.0
    %358 = vmatprep.subr.mxu0 0.0
    %359 = vmatpush1.xpose.msra.mxu0 0.0
    %360 = vmatprep.subr.mxu0 0.0
    %361 = vmatpush1.xpose.msra.mxu0 0.0
    %362 = vmatprep.subr.mxu0 0.0
    %363 = vmatpush1.xpose.msra.mxu0 0.0
    %364 = vmatprep.subr.mxu0 0.0
    %365 = vmatpush1.xpose.msra.mxu0 0.0
    %366 = vmatprep.subr.mxu0 0.0
    %367 = vmatpush1.xpose.msra.mxu0 0.0
    %368 = vmatprep.subr.mxu0 0.0
    %369 = vmatpush1.xpose.msra.mxu0 0.0
    %370 = vmatprep.subr.mxu0 0.0
    %371 = vmatpush1.xpose.msra.mxu0 0.0
    %372 = vmatprep.subr.mxu0 0.0
    %373 = vmatpush1.xpose.msra.mxu0 0.0
    %374 = vmatprep.subr.mxu0 0.0
    %375 = vmatpush1.xpose.msra.mxu0 0.0
    %376 = vmatprep.subr.mxu0 0.0
    %377 = vmatpush1.xpose.msra.mxu0 0.0
    %378 = vmatprep.subr.mxu0 0.0
    %379 = vmatpush1.xpose.msra.mxu0 0.0
    %380 = vmatprep.subr.mxu0 0.0
    %381 = vmatpush1.xpose.msra.mxu0 0.0
    %382 = vmatprep.subr.mxu0 0.0
    %383 = vmatpush1.xpose.msra.mxu0 0.0
    %384 = vmatprep.subr.mxu0 0.0
    %385 = vmatpush1.xpose.msra.mxu0 0.0
    %386 = vmatprep.mubr.f32.mxu0 0.0
    %387 = vmatmul.mubr.f32.gmra.mrb[0].mxu0 %v318
    %v388 = vpop.f32.mrb[0].mxu0
    %v389 = vadd.f32 0.0, %v388
    %v390 = vpop.f32.mrb[0].mxu0
    %391 = vdwg.mxu0
    %393 = vrot.lane.b32.xlu0 %v311, 96
    %v394 = vpop.permute.xlu0 %393
    %v395 = vsel %vm317, %v311, 0
    %v397 = vsel %vm317, %v394, 0
    %399 = vmatprep.subr.mxu0 0.0
    %400 = vmatpush1.xpose.msra.mxu0 %v397
    %401 = vmatprep.subr.mxu0 0.0
    %402 = vmatpush1.xpose.msra.mxu0 0.0
    %403 = vmatprep.subr.mxu0 0.0
    %404 = vmatpush1.xpose.msra.mxu0 0.0
    %405 = vmatprep.subr.mxu0 0.0
    %406 = vmatpush1.xpose.msra.mxu0 0.0
    %407 = vmatprep.subr.mxu0 0.0
    %408 = vmatpush1.xpose.msra.mxu0 0.0
    %409 = vmatprep.subr.mxu0 0.0
    %410 = vmatpush1.xpose.msra.mxu0 0.0
    %411 = vmatprep.subr.mxu0 0.0
    %412 = vmatpush1.xpose.msra.mxu0 0.0
    %413 = vmatprep.subr.mxu0 0.0
    %414 = vmatpush1.xpose.msra.mxu0 0.0
    %415 = vmatprep.subr.mxu0 0.0
    %416 = vmatpush1.xpose.msra.mxu0 0.0
    %417 = vmatprep.subr.mxu0 0.0
    %418 = vmatpush1.xpose.msra.mxu0 0.0
    %419 = vmatprep.subr.mxu0 0.0
    %420 = vmatpush1.xpose.msra.mxu0 0.0
    %421 = vmatprep.subr.mxu0 0.0
    %422 = vmatpush1.xpose.msra.mxu0 0.0
    %423 = vmatprep.subr.mxu0 0.0
    %424 = vmatpush1.xpose.msra.mxu0 0.0
    %425 = vmatprep.subr.mxu0 0.0
    %426 = vmatpush1.xpose.msra.mxu0 0.0
    %427 = vmatprep.subr.mxu0 0.0
    %428 = vmatpush1.xpose.msra.mxu0 0.0
    %429 = vmatprep.subr.mxu0 0.0
    %430 = vmatpush1.xpose.msra.mxu0 0.0
    %431 = vmatprep.subr.mxu0 0.0
    %432 = vmatpush1.xpose.msra.mxu0 0.0
    %433 = vmatprep.subr.mxu0 0.0
    %434 = vmatpush1.xpose.msra.mxu0 0.0
    %435 = vmatprep.subr.mxu0 0.0
    %436 = vmatpush1.xpose.msra.mxu0 0.0
    %437 = vmatprep.subr.mxu0 0.0
    %438 = vmatpush1.xpose.msra.mxu0 0.0
    %439 = vmatprep.subr.mxu0 0.0
    %440 = vmatpush1.xpose.msra.mxu0 0.0
    %441 = vmatprep.subr.mxu0 0.0
    %442 = vmatpush1.xpose.msra.mxu0 0.0
    %443 = vmatprep.subr.mxu0 0.0
    %444 = vmatpush1.xpose.msra.mxu0 0.0
    %445 = vmatprep.subr.mxu0 0.0
    %446 = vmatpush1.xpose.msra.mxu0 0.0
    %447 = vmatprep.subr.mxu0 0.0
    %448 = vmatpush1.xpose.msra.mxu0 0.0
    %449 = vmatprep.subr.mxu0 0.0
    %450 = vmatpush1.xpose.msra.mxu0 0.0
    %451 = vmatprep.subr.mxu0 0.0
    %452 = vmatpush1.xpose.msra.mxu0 0.0
    %453 = vmatprep.subr.mxu0 0.0
    %454 = vmatpush1.xpose.msra.mxu0 0.0
    %455 = vmatprep.subr.mxu0 0.0
    %456 = vmatpush1.xpose.msra.mxu0 0.0
    %457 = vmatprep.subr.mxu0 0.0
    %458 = vmatpush1.xpose.msra.mxu0 0.0
    %459 = vmatprep.subr.mxu0 0.0
    %460 = vmatpush1.xpose.msra.mxu0 0.0
    %461 = vmatprep.subr.mxu0 0.0
    %462 = vmatpush1.xpose.msra.mxu0 0.0
    %463 = vmatprep.mubr.f32.mxu0 0.0
    %464 = vmatmul.mubr.f32.gmra.mrb[0].mxu0 %v395
    %v465 = vpop.f32.mrb[0].mxu0
    %v466 = vadd.f32 0.0, %v465
    %v467 = vpop.f32.mrb[0].mxu0
    %468 = vdwg.mxu0
    %v469 = vsel %vm317, %v389, -inf
    %470 = vmax.xlane.f32.xlu0 %v469
    %v471 = vpop.xlane.xlu0 %470
    %v472 = vsel %vm317, %v466, -inf
    %473 = vmax.xlane.f32.xlu0 %v472
    %v474 = vpop.xlane.xlu0 %473
    %v475 = vsub.f32 %v389, %v471
    %v476 = vsub.f32 %v466, %v474
    %v477 = vmul.f32 %v475, 1.442695
    %v478 = vpow.pop %v477
    %v479 = vmul.f32 %v476, 1.442695
    %v480 = vpow.pop %v479
    %v481 = vsel %vm317, %v478, 0.0
    %482 = vadd.xlane.f32.xlu0 %v481
    %v483 = vpop.xlane.xlu0 %482
    %v484 = vsel %vm317, %v480, 0.0
    %485 = vadd.xlane.f32.xlu0 %v484
    %v486 = vpop.xlane.xlu0 %485
    %v487 = vrcp.pop %v483
    %v488 = vrcp.pop %v486
    %v489 = vmul.f32 %v478, %v487
    %v490 = vmul.f32 %v480, %v488
    %491 = vrot.lane.b32.xlu0 %v306, 64
    %v492 = vpop.permute.xlu0 %491
    %v495 = vsel %vm317, %v489, 0
    %497 = vmatprep.subr.mxu0 0.0
    %498 = vmatpush1.msra.mxu0 %v492
    %499 = vmatprep.subr.mxu0 0.0
    %500 = vmatpush1.msra.mxu0 0.0
    %501 = vmatprep.subr.mxu0 0.0
    %502 = vmatpush1.msra.mxu0 0.0
    %503 = vmatprep.subr.mxu0 0.0
    %504 = vmatpush1.msra.mxu0 0.0
    %505 = vmatprep.subr.mxu0 0.0
    %506 = vmatpush1.msra.mxu0 0.0
    %507 = vmatprep.subr.mxu0 0.0
    %508 = vmatpush1.msra.mxu0 0.0
    %509 = vmatprep.subr.mxu0 0.0
    %510 = vmatpush1.msra.mxu0 0.0
    %511 = vmatprep.subr.mxu0 0.0
    %512 = vmatpush1.msra.mxu0 0.0
    %513 = vmatprep.subr.mxu0 0.0
    %514 = vmatpush1.msra.mxu0 0.0
    %515 = vmatprep.subr.mxu0 0.0
    %516 = vmatpush1.msra.mxu0 0.0
    %517 = vmatprep.subr.mxu0 0.0
    %518 = vmatpush1.msra.mxu0 0.0
    %519 = vmatprep.subr.mxu0 0.0
    %520 = vmatpush1.msra.mxu0 0.0
    %521 = vmatprep.subr.mxu0 0.0
    %522 = vmatpush1.msra.mxu0 0.0
    %523 = vmatprep.subr.mxu0 0.0
    %524 = vmatpush1.msra.mxu0 0.0
    %525 = vmatprep.subr.mxu0 0.0
    %526 = vmatpush1.msra.mxu0 0.0
    %527 = vmatprep.subr.mxu0 0.0
    %528 = vmatpush1.msra.mxu0 0.0
    %529 = vmatprep.subr.mxu0 0.0
    %530 = vmatpush1.msra.mxu0 0.0
    %531 = vmatprep.subr.mxu0 0.0
    %532 = vmatpush1.msra.mxu0 0.0
    %533 = vmatprep.subr.mxu0 0.0
    %534 = vmatpush1.msra.mxu0 0.0
    %535 = vmatprep.subr.mxu0 0.0
    %536 = vmatpush1.msra.mxu0 0.0
    %537 = vmatprep.subr.mxu0 0.0
    %538 = vmatpush1.msra.mxu0 0.0
    %539 = vmatprep.subr.mxu0 0.0
    %540 = vmatpush1.msra.mxu0 0.0
    %541 = vmatprep.subr.mxu0 0.0
    %542 = vmatpush1.msra.mxu0 0.0
    %543 = vmatprep.subr.mxu0 0.0
    %544 = vmatpush1.msra.mxu0 0.0
    %545 = vmatprep.subr.mxu0 0.0
    %546 = vmatpush1.msra.mxu0 0.0
    %547 = vmatprep.subr.mxu0 0.0
    %548 = vmatpush1.msra.mxu0 0.0
    %549 = vmatprep.subr.mxu0 0.0
    %550 = vmatpush1.msra.mxu0 0.0
    %551 = vmatprep.subr.mxu0 0.0
    %552 = vmatpush1.msra.mxu0 0.0
    %553 = vmatprep.subr.mxu0 0.0
    %554 = vmatpush1.msra.mxu0 0.0
    %555 = vmatprep.subr.mxu0 0.0
    %556 = vmatpush1.msra.mxu0 0.0
    %557 = vmatprep.subr.mxu0 0.0
    %558 = vmatpush1.msra.mxu0 0.0
    %559 = vmatprep.subr.mxu0 0.0
    %560 = vmatpush1.msra.mxu0 0.0
    %561 = vmatprep.mubr.f32.mxu0 0.0
    %562 = vmatmul.mubr.f32.gmra.mrb[0].mxu0 %v495
    %v563 = vpop.f32.mrb[0].mxu0
    %v564 = vadd.f32 0.0, %v563
    %v565 = vpop.f32.mrb[0].mxu0
    %566 = vdwg.mxu0
    %567 = vrot.lane.b32.xlu0 %v311, 64
    %v568 = vpop.permute.xlu0 %567
    %v571 = vsel %vm317, %v490, 0
    %573 = vmatprep.subr.mxu0 0.0
    %574 = vmatpush1.msra.mxu0 %v568
    %575 = vmatprep.subr.mxu0 0.0
    %576 = vmatpush1.msra.mxu0 0.0
    %577 = vmatprep.subr.mxu0 0.0
    %578 = vmatpush1.msra.mxu0 0.0
    %579 = vmatprep.subr.mxu0 0.0
    %580 = vmatpush1.msra.mxu0 0.0
    %581 = vmatprep.subr.mxu0 0.0
    %582 = vmatpush1.msra.mxu0 0.0
    %583 = vmatprep.subr.mxu0 0.0
    %584 = vmatpush1.msra.mxu0 0.0
    %585 = vmatprep.subr.mxu0 0.0
    %586 = vmatpush1.msra.mxu0 0.0
    %587 = vmatprep.subr.mxu0 0.0
    %588 = vmatpush1.msra.mxu0 0.0
    %589 = vmatprep.subr.mxu0 0.0
    %590 = vmatpush1.msra.mxu0 0.0
    %591 = vmatprep.subr.mxu0 0.0
    %592 = vmatpush1.msra.mxu0 0.0
    %593 = vmatprep.subr.mxu0 0.0
    %594 = vmatpush1.msra.mxu0 0.0
    %595 = vmatprep.subr.mxu0 0.0
    %596 = vmatpush1.msra.mxu0 0.0
    %597 = vmatprep.subr.mxu0 0.0
    %598 = vmatpush1.msra.mxu0 0.0
    %599 = vmatprep.subr.mxu0 0.0
    %600 = vmatpush1.msra.mxu0 0.0
    %601 = vmatprep.subr.mxu0 0.0
    %602 = vmatpush1.msra.mxu0 0.0
    %603 = vmatprep.subr.mxu0 0.0
    %604 = vmatpush1.msra.mxu0 0.0
    %605 = vmatprep.subr.mxu0 0.0
    %606 = vmatpush1.msra.mxu0 0.0
    %607 = vmatprep.subr.mxu0 0.0
    %608 = vmatpush1.msra.mxu0 0.0
    %609 = vmatprep.subr.mxu0 0.0
    %610 = vmatpush1.msra.mxu0 0.0
    %611 = vmatprep.subr.mxu0 0.0
    %612 = vmatpush1.msra.mxu0 0.0
    %613 = vmatprep.subr.mxu0 0.0
    %614 = vmatpush1.msra.mxu0 0.0
    %615 = vmatprep.subr.mxu0 0.0
    %616 = vmatpush1.msra.mxu0 0.0
    %617 = vmatprep.subr.mxu0 0.0
    %618 = vmatpush1.msra.mxu0 0.0
    %619 = vmatprep.subr.mxu0 0.0
    %620 = vmatpush1.msra.mxu0 0.0
    %621 = vmatprep.subr.mxu0 0.0
    %622 = vmatpush1.msra.mxu0 0.0
    %623 = vmatprep.subr.mxu0 0.0
    %624 = vmatpush1.msra.mxu0 0.0
    %625 = vmatprep.subr.mxu0 0.0
    %626 = vmatpush1.msra.mxu0 0.0
    %627 = vmatprep.subr.mxu0 0.0
    %628 = vmatpush1.msra.mxu0 0.0
    %629 = vmatprep.subr.mxu0 0.0
    %630 = vmatpush1.msra.mxu0 0.0
    %631 = vmatprep.subr.mxu0 0.0
    %632 = vmatpush1.msra.mxu0 0.0
    %633 = vmatprep.subr.mxu0 0.0
    %634 = vmatpush1.msra.mxu0 0.0
    %635 = vmatprep.subr.mxu0 0.0
    %636 = vmatpush1.msra.mxu0 0.0
    %637 = vmatprep.mubr.f32.mxu0 0.0
    %638 = vmatmul.mubr.f32.gmra.mrb[0].mxu0 %v571
    %v639 = vpop.f32.mrb[0].mxu0
    %v640 = vadd.f32 0.0, %v639
    %v641 = vpop.f32.mrb[0].mxu0
    %642 = vdwg.mxu0
    %643 = vrot.lane.b32.xlu0 %v306, 120
    %v644 = vpop.permute.xlu0 %643
    %645 = vrot.lane.b32.xlu0 %v306, 88
    %v646 = vpop.permute.xlu0 %645
    %v647 = vsel %vm317, %v644, 0
    %v649 = vsel %vm317, %v646, 0
    %651 = vmatprep.subr.mxu0 0.0
    %652 = vmatpush1.xpose.msra.mxu0 %v649
    %653 = vmatprep.subr.mxu0 0.0
    %654 = vmatpush1.xpose.msra.mxu0 0.0
    %655 = vmatprep.subr.mxu0 0.0
    %656 = vmatpush1.xpose.msra.mxu0 0.0
    %657 = vmatprep.subr.mxu0 0.0
    %658 = vmatpush1.xpose.msra.mxu0 0.0
    %659 = vmatprep.subr.mxu0 0.0
    %660 = vmatpush1.xpose.msra.mxu0 0.0
    %661 = vmatprep.subr.mxu0 0.0
    %662 = vmatpush1.xpose.msra.mxu0 0.0
    %663 = vmatprep.subr.mxu0 0.0
    %664 = vmatpush1.xpose.msra.mxu0 0.0
    %665 = vmatprep.subr.mxu0 0.0
    %666 = vmatpush1.xpose.msra.mxu0 0.0
    %667 = vmatprep.subr.mxu0 0.0
    %668 = vmatpush1.xpose.msra.mxu0 0.0
    %669 = vmatprep.subr.mxu0 0.0
    %670 = vmatpush1.xpose.msra.mxu0 0.0
    %671 = vmatprep.subr.mxu0 0.0
    %672 = vmatpush1.xpose.msra.mxu0 0.0
    %673 = vmatprep.subr.mxu0 0.0
    %674 = vmatpush1.xpose.msra.mxu0 0.0
    %675 = vmatprep.subr.mxu0 0.0
    %676 = vmatpush1.xpose.msra.mxu0 0.0
    %677 = vmatprep.subr.mxu0 0.0
    %678 = vmatpush1.xpose.msra.mxu0 0.0
    %679 = vmatprep.subr.mxu0 0.0
    %680 = vmatpush1.xpose.msra.mxu0 0.0
    %681 = vmatprep.subr.mxu0 0.0
    %682 = vmatpush1.xpose.msra.mxu0 0.0
    %683 = vmatprep.subr.mxu0 0.0
    %684 = vmatpush1.xpose.msra.mxu0 0.0
    %685 = vmatprep.subr.mxu0 0.0
    %686 = vmatpush1.xpose.msra.mxu0 0.0
    %687 = vmatprep.subr.mxu0 0.0
    %688 = vmatpush1.xpose.msra.mxu0 0.0
    %689 = vmatprep.subr.mxu0 0.0
    %690 = vmatpush1.xpose.msra.mxu0 0.0
    %691 = vmatprep.subr.mxu0 0.0
    %692 = vmatpush1.xpose.msra.mxu0 0.0
    %693 = vmatprep.subr.mxu0 0.0
    %694 = vmatpush1.xpose.msra.mxu0 0.0
    %695 = vmatprep.subr.mxu0 0.0
    %696 = vmatpush1.xpose.msra.mxu0 0.0
    %697 = vmatprep.subr.mxu0 0.0
    %698 = vmatpush1.xpose.msra.mxu0 0.0
    %699 = vmatprep.subr.mxu0 0.0
    %700 = vmatpush1.xpose.msra.mxu0 0.0
    %701 = vmatprep.subr.mxu0 0.0
    %702 = vmatpush1.xpose.msra.mxu0 0.0
    %703 = vmatprep.subr.mxu0 0.0
    %704 = vmatpush1.xpose.msra.mxu0 0.0
    %705 = vmatprep.subr.mxu0 0.0
    %706 = vmatpush1.xpose.msra.mxu0 0.0
    %707 = vmatprep.subr.mxu0 0.0
    %708 = vmatpush1.xpose.msra.mxu0 0.0
    %709 = vmatprep.subr.mxu0 0.0
    %710 = vmatpush1.xpose.msra.mxu0 0.0
    %711 = vmatprep.subr.mxu0 0.0
    %712 = vmatpush1.xpose.msra.mxu0 0.0
    %713 = vmatprep.subr.mxu0 0.0
    %714 = vmatpush1.xpose.msra.mxu0 0.0
    %715 = vmatprep.mubr.f32.mxu0 0.0
    %716 = vmatmul.mubr.f32.gmra.mrb[0].mxu0 %v647
    %v717 = vpop.f32.mrb[0].mxu0
    %v718 = vadd.f32 0.0, %v717
    %v719 = vpop.f32.mrb[0].mxu0
    %720 = vdwg.mxu0
    %721 = vrot.lane.b32.xlu0 %v311, 120
    %v722 = vpop.permute.xlu0 %721
    %723 = vrot.lane.b32.xlu0 %v311, 88
    %v724 = vpop.permute.xlu0 %723
    %v725 = vsel %vm317, %v722, 0
    %v727 = vsel %vm317, %v724, 0
    %729 = vmatprep.subr.mxu0 0.0
    %730 = vmatpush1.xpose.msra.mxu0 %v727
    %731 = vmatprep.subr.mxu0 0.0
    %732 = vmatpush1.xpose.msra.mxu0 0.0
    %733 = vmatprep.subr.mxu0 0.0
    %734 = vmatpush1.xpose.msra.mxu0 0.0
    %735 = vmatprep.subr.mxu0 0.0
    %736 = vmatpush1.xpose.msra.mxu0 0.0
    %737 = vmatprep.subr.mxu0 0.0
    %738 = vmatpush1.xpose.msra.mxu0 0.0
    %739 = vmatprep.subr.mxu0 0.0
    %740 = vmatpush1.xpose.msra.mxu0 0.0
    %741 = vmatprep.subr.mxu0 0.0
    %742 = vmatpush1.xpose.msra.mxu0 0.0
    %743 = vmatprep.subr.mxu0 0.0
    %744 = vmatpush1.xpose.msra.mxu0 0.0
    %745 = vmatprep.subr.mxu0 0.0
    %746 = vmatpush1.xpose.msra.mxu0 0.0
    %747 = vmatprep.subr.mxu0 0.0
    %748 = vmatpush1.xpose.msra.mxu0 0.0
    %749 = vmatprep.subr.mxu0 0.0
    %750 = vmatpush1.xpose.msra.mxu0 0.0
    %751 = vmatprep.subr.mxu0 0.0
    %752 = vmatpush1.xpose.msra.mxu0 0.0
    %753 = vmatprep.subr.mxu0 0.0
    %754 = vmatpush1.xpose.msra.mxu0 0.0
    %755 = vmatprep.subr.mxu0 0.0
    %756 = vmatpush1.xpose.msra.mxu0 0.0
    %757 = vmatprep.subr.mxu0 0.0
    %758 = vmatpush1.xpose.msra.mxu0 0.0
    %759 = vmatprep.subr.mxu0 0.0
    %760 = vmatpush1.xpose.msra.mxu0 0.0
    %761 = vmatprep.subr.mxu0 0.0
    %762 = vmatpush1.xpose.msra.mxu0 0.0
    %763 = vmatprep.subr.mxu0 0.0
    %764 = vmatpush1.xpose.msra.mxu0 0.0
    %765 = vmatprep.subr.mxu0 0.0
    %766 = vmatpush1.xpose.msra.mxu0 0.0
    %767 = vmatprep.subr.mxu0 0.0
    %768 = vmatpush1.xpose.msra.mxu0 0.0
    %769 = vmatprep.subr.mxu0 0.0
    %770 = vmatpush1.xpose.msra.mxu0 0.0
    %771 = vmatprep.subr.mxu0 0.0
    %772 = vmatpush1.xpose.msra.mxu0 0.0
    %773 = vmatprep.subr.mxu0 0.0
    %774 = vmatpush1.xpose.msra.mxu0 0.0
    %775 = vmatprep.subr.mxu0 0.0
    %776 = vmatpush1.xpose.msra.mxu0 0.0
    %777 = vmatprep.subr.mxu0 0.0
    %778 = vmatpush1.xpose.msra.mxu0 0.0
    %779 = vmatprep.subr.mxu0 0.0
    %780 = vmatpush1.xpose.msra.mxu0 0.0
    %781 = vmatprep.subr.mxu0 0.0
    %782 = vmatpush1.xpose.msra.mxu0 0.0
    %783 = vmatprep.subr.mxu0 0.0
    %784 = vmatpush1.xpose.msra.mxu0 0.0
    %785 = vmatprep.subr.mxu0 0.0
    %786 = vmatpush1.xpose.msra.mxu0 0.0
    %787 = vmatprep.subr.mxu0 0.0
    %788 = vmatpush1.xpose.msra.mxu0 0.0
    %789 = vmatprep.subr.mxu0 0.0
    %790 = vmatpush1.xpose.msra.mxu0 0.0
    %791 = vmatprep.subr.mxu0 0.0
    %792 = vmatpush1.xpose.msra.mxu0 0.0
    %793 = vmatprep.mubr.f32.mxu0 0.0
    %794 = vmatmul.mubr.f32.gmra.mrb[0].mxu0 %v725
    %v795 = vpop.f32.mrb[0].mxu0
    %v796 = vadd.f32 0.0, %v795
    %v797 = vpop.f32.mrb[0].mxu0
    %798 = vdwg.mxu0
    %v799 = vsel %vm317, %v718, -inf
    %800 = vmax.xlane.f32.xlu0 %v799
    %v801 = vpop.xlane.xlu0 %800
    %v802 = vsel %vm317, %v796, -inf
    %803 = vmax.xlane.f32.xlu0 %v802
    %v804 = vpop.xlane.xlu0 %803
    %v805 = vsub.f32 %v718, %v801
    %v806 = vsub.f32 %v796, %v804
    %v807 = vmul.f32 %v805, 1.442695
    %v808 = vpow.pop %v807
    %v809 = vmul.f32 %v806, 1.442695
    %v810 = vpow.pop %v809
    %v811 = vsel %vm317, %v808, 0.0
    %812 = vadd.xlane.f32.xlu0 %v811
    %v813 = vpop.xlane.xlu0 %812
    %v814 = vsel %vm317, %v810, 0.0
    %815 = vadd.xlane.f32.xlu0 %v814
    %v816 = vpop.xlane.xlu0 %815
    %v817 = vrcp.pop %v813
    %v818 = vrcp.pop %v816
    %v819 = vmul.f32 %v808, %v817
    %v820 = vmul.f32 %v810, %v818
    %821 = vrot.lane.b32.xlu0 %v306, 56
    %v822 = vpop.permute.xlu0 %821
    %v825 = vsel %vm317, %v819, 0
    %827 = vmatprep.subr.mxu0 0.0
    %828 = vmatpush1.msra.mxu0 %v822
    %829 = vmatprep.subr.mxu0 0.0
    %830 = vmatpush1.msra.mxu0 0.0
    %831 = vmatprep.subr.mxu0 0.0
    %832 = vmatpush1.msra.mxu0 0.0
    %833 = vmatprep.subr.mxu0 0.0
    %834 = vmatpush1.msra.mxu0 0.0
    %835 = vmatprep.subr.mxu0 0.0
    %836 = vmatpush1.msra.mxu0 0.0
    %837 = vmatprep.subr.mxu0 0.0
    %838 = vmatpush1.msra.mxu0 0.0
    %839 = vmatprep.subr.mxu0 0.0
    %840 = vmatpush1.msra.mxu0 0.0
    %841 = vmatprep.subr.mxu0 0.0
    %842 = vmatpush1.msra.mxu0 0.0
    %843 = vmatprep.subr.mxu0 0.0
    %844 = vmatpush1.msra.mxu0 0.0
    %845 = vmatprep.subr.mxu0 0.0
    %846 = vmatpush1.msra.mxu0 0.0
    %847 = vmatprep.subr.mxu0 0.0
    %848 = vmatpush1.msra.mxu0 0.0
    %849 = vmatprep.subr.mxu0 0.0
    %850 = vmatpush1.msra.mxu0 0.0
    %851 = vmatprep.subr.mxu0 0.0
    %852 = vmatpush1.msra.mxu0 0.0
    %853 = vmatprep.subr.mxu0 0.0
    %854 = vmatpush1.msra.mxu0 0.0
    %855 = vmatprep.subr.mxu0 0.0
    %856 = vmatpush1.msra.mxu0 0.0
    %857 = vmatprep.subr.mxu0 0.0
    %858 = vmatpush1.msra.mxu0 0.0
    %859 = vmatprep.subr.mxu0 0.0
    %860 = vmatpush1.msra.mxu0 0.0
    %861 = vmatprep.subr.mxu0 0.0
    %862 = vmatpush1.msra.mxu0 0.0
    %863 = vmatprep.subr.mxu0 0.0
    %864 = vmatpush1.msra.mxu0 0.0
    %865 = vmatprep.subr.mxu0 0.0
    %866 = vmatpush1.msra.mxu0 0.0
    %867 = vmatprep.subr.mxu0 0.0
    %868 = vmatpush1.msra.mxu0 0.0
    %869 = vmatprep.subr.mxu0 0.0
    %870 = vmatpush1.msra.mxu0 0.0
    %871 = vmatprep.subr.mxu0 0.0
    %872 = vmatpush1.msra.mxu0 0.0
    %873 = vmatprep.subr.mxu0 0.0
    %874 = vmatpush1.msra.mxu0 0.0
    %875 = vmatprep.subr.mxu0 0.0
    %876 = vmatpush1.msra.mxu0 0.0
    %877 = vmatprep.subr.mxu0 0.0
    %878 = vmatpush1.msra.mxu0 0.0
    %879 = vmatprep.subr.mxu0 0.0
    %880 = vmatpush1.msra.mxu0 0.0
    %881 = vmatprep.subr.mxu0 0.0
    %882 = vmatpush1.msra.mxu0 0.0
    %883 = vmatprep.subr.mxu0 0.0
    %884 = vmatpush1.msra.mxu0 0.0
    %885 = vmatprep.subr.mxu0 0.0
    %886 = vmatpush1.msra.mxu0 0.0
    %887 = vmatprep.subr.mxu0 0.0
    %888 = vmatpush1.msra.mxu0 0.0
    %889 = vmatprep.subr.mxu0 0.0
    %890 = vmatpush1.msra.mxu0 0.0
    %891 = vmatprep.mubr.f32.mxu0 0.0
    %892 = vmatmul.mubr.f32.gmra.mrb[0].mxu0 %v825
    %v893 = vpop.f32.mrb[0].mxu0
    %v894 = vadd.f32 0.0, %v893
    %v895 = vpop.f32.mrb[0].mxu0
    %896 = vdwg.mxu0
    %897 = vrot.lane.b32.xlu0 %v311, 56
    %v898 = vpop.permute.xlu0 %897
    %v901 = vsel %vm317, %v820, 0
    %903 = vmatprep.subr.mxu0 0.0
    %904 = vmatpush1.msra.mxu0 %v898
    %905 = vmatprep.subr.mxu0 0.0
    %906 = vmatpush1.msra.mxu0 0.0
    %907 = vmatprep.subr.mxu0 0.0
    %908 = vmatpush1.msra.mxu0 0.0
    %909 = vmatprep.subr.mxu0 0.0
    %910 = vmatpush1.msra.mxu0 0.0
    %911 = vmatprep.subr.mxu0 0.0
    %912 = vmatpush1.msra.mxu0 0.0
    %913 = vmatprep.subr.mxu0 0.0
    %914 = vmatpush1.msra.mxu0 0.0
    %915 = vmatprep.subr.mxu0 0.0
    %916 = vmatpush1.msra.mxu0 0.0
    %917 = vmatprep.subr.mxu0 0.0
    %918 = vmatpush1.msra.mxu0 0.0
    %919 = vmatprep.subr.mxu0 0.0
    %920 = vmatpush1.msra.mxu0 0.0
    %921 = vmatprep.subr.mxu0 0.0
    %922 = vmatpush1.msra.mxu0 0.0
    %923 = vmatprep.subr.mxu0 0.0
    %924 = vmatpush1.msra.mxu0 0.0
    %925 = vmatprep.subr.mxu0 0.0
    %926 = vmatpush1.msra.mxu0 0.0
    %927 = vmatprep.subr.mxu0 0.0
    %928 = vmatpush1.msra.mxu0 0.0
    %929 = vmatprep.subr.mxu0 0.0
    %930 = vmatpush1.msra.mxu0 0.0
    %931 = vmatprep.subr.mxu0 0.0
    %932 = vmatpush1.msra.mxu0 0.0
    %933 = vmatprep.subr.mxu0 0.0
    %934 = vmatpush1.msra.mxu0 0.0
    %935 = vmatprep.subr.mxu0 0.0
    %936 = vmatpush1.msra.mxu0 0.0
    %937 = vmatprep.subr.mxu0 0.0
    %938 = vmatpush1.msra.mxu0 0.0
    %939 = vmatprep.subr.mxu0 0.0
    %940 = vmatpush1.msra.mxu0 0.0
    %941 = vmatprep.subr.mxu0 0.0
    %942 = vmatpush1.msra.mxu0 0.0
    %943 = vmatprep.subr.mxu0 0.0
    %944 = vmatpush1.msra.mxu0 0.0
    %945 = vmatprep.subr.mxu0 0.0
    %946 = vmatpush1.msra.mxu0 0.0
    %947 = vmatprep.subr.mxu0 0.0
    %948 = vmatpush1.msra.mxu0 0.0
    %949 = vmatprep.subr.mxu0 0.0
    %950 = vmatpush1.msra.mxu0 0.0
    %951 = vmatprep.subr.mxu0 0.0
    %952 = vmatpush1.msra.mxu0 0.0
    %953 = vmatprep.subr.mxu0 0.0
    %954 = vmatpush1.msra.mxu0 0.0
    %955 = vmatprep.subr.mxu0 0.0
    %956 = vmatpush1.msra.mxu0 0.0
    %957 = vmatprep.subr.mxu0 0.0
    %958 = vmatpush1.msra.mxu0 0.0
    %959 = vmatprep.subr.mxu0 0.0
    %960 = vmatpush1.msra.mxu0 0.0
    %961 = vmatprep.subr.mxu0 0.0
    %962 = vmatpush1.msra.mxu0 0.0
    %963 = vmatprep.subr.mxu0 0.0
    %964 = vmatpush1.msra.mxu0 0.0
    %965 = vmatprep.subr.mxu0 0.0
    %966 = vmatpush1.msra.mxu0 0.0
    %967 = vmatprep.mubr.f32.mxu0 0.0
    %968 = vmatmul.mubr.f32.gmra.mrb[0].mxu0 %v901
    %v969 = vpop.f32.mrb[0].mxu0
    %v970 = vadd.f32 0.0, %v969
    %v971 = vpop.f32.mrb[0].mxu0
    %972 = vdwg.mxu0
    %973 = vrot.lane.b32.xlu0 %v306, 112
    %v974 = vpop.permute.xlu0 %973
    %975 = vrot.lane.b32.xlu0 %v306, 80
    %v976 = vpop.permute.xlu0 %975
    %v977 = vsel %vm317, %v974, 0
    %v979 = vsel %vm317, %v976, 0
    %981 = vmatprep.subr.mxu0 0.0
    %982 = vmatpush1.xpose.msra.mxu0 %v979
    %983 = vmatprep.subr.mxu0 0.0
    %984 = vmatpush1.xpose.msra.mxu0 0.0
    %985 = vmatprep.subr.mxu0 0.0
    %986 = vmatpush1.xpose.msra.mxu0 0.0
    %987 = vmatprep.subr.mxu0 0.0
    %988 = vmatpush1.xpose.msra.mxu0 0.0
    %989 = vmatprep.subr.mxu0 0.0
    %990 = vmatpush1.xpose.msra.mxu0 0.0
    %991 = vmatprep.subr.mxu0 0.0
    %992 = vmatpush1.xpose.msra.mxu0 0.0
    %993 = vmatprep.subr.mxu0 0.0
    %994 = vmatpush1.xpose.msra.mxu0 0.0
    %995 = vmatprep.subr.mxu0 0.0
    %996 = vmatpush1.xpose.msra.mxu0 0.0
    %997 = vmatprep.subr.mxu0 0.0
    %998 = vmatpush1.xpose.msra.mxu0 0.0
    %999 = vmatprep.subr.mxu0 0.0
    %1000 = vmatpush1.xpose.msra.mxu0 0.0
    %1001 = vmatprep.subr.mxu0 0.0
    %1002 = vmatpush1.xpose.msra.mxu0 0.0
    %1003 = vmatprep.subr.mxu0 0.0
    %1004 = vmatpush1.xpose.msra.mxu0 0.0
    %1005 = vmatprep.subr.mxu0 0.0
    %1006 = vmatpush1.xpose.msra.mxu0 0.0
    %1007 = vmatprep.subr.mxu0 0.0
    %1008 = vmatpush1.xpose.msra.mxu0 0.0
    %1009 = vmatprep.subr.mxu0 0.0
    %1010 = vmatpush1.xpose.msra.mxu0 0.0
    %1011 = vmatprep.subr.mxu0 0.0
    %1012 = vmatpush1.xpose.msra.mxu0 0.0
    %1013 = vmatprep.subr.mxu0 0.0
    %1014 = vmatpush1.xpose.msra.mxu0 0.0
    %1015 = vmatprep.subr.mxu0 0.0
    %1016 = vmatpush1.xpose.msra.mxu0 0.0
    %1017 = vmatprep.subr.mxu0 0.0
    %1018 = vmatpush1.xpose.msra.mxu0 0.0
    %1019 = vmatprep.subr.mxu0 0.0
    %1020 = vmatpush1.xpose.msra.mxu0 0.0
    %1021 = vmatprep.subr.mxu0 0.0
    %1022 = vmatpush1.xpose.msra.mxu0 0.0
    %1023 = vmatprep.subr.mxu0 0.0
    %1024 = vmatpush1.xpose.msra.mxu0 0.0
    %1025 = vmatprep.subr.mxu0 0.0
    %1026 = vmatpush1.xpose.msra.mxu0 0.0
    %1027 = vmatprep.subr.mxu0 0.0
    %1028 = vmatpush1.xpose.msra.mxu0 0.0
    %1029 = vmatprep.subr.mxu0 0.0
    %1030 = vmatpush1.xpose.msra.mxu0 0.0
    %1031 = vmatprep.subr.mxu0 0.0
    %1032 = vmatpush1.xpose.msra.mxu0 0.0
    %1033 = vmatprep.subr.mxu0 0.0
    %1034 = vmatpush1.xpose.msra.mxu0 0.0
    %1035 = vmatprep.subr.mxu0 0.0
    %1036 = vmatpush1.xpose.msra.mxu0 0.0
    %1037 = vmatprep.subr.mxu0 0.0
    %1038 = vmatpush1.xpose.msra.mxu0 0.0
    %1039 = vmatprep.subr.mxu0 0.0
    %1040 = vmatpush1.xpose.msra.mxu0 0.0
    %1041 = vmatprep.subr.mxu0 0.0
    %1042 = vmatpush1.xpose.msra.mxu0 0.0
    %1043 = vmatprep.subr.mxu0 0.0
    %1044 = vmatpush1.xpose.msra.mxu0 0.0
    %1045 = vmatprep.mubr.f32.mxu0 0.0
    %1046 = vmatmul.mubr.f32.gmra.mrb[0].mxu0 %v977
    %v1047 = vpop.f32.mrb[0].mxu0
    %v1048 = vadd.f32 0.0, %v1047
    %v1049 = vpop.f32.mrb[0].mxu0
    %1050 = vdwg.mxu0
    %1051 = vrot.lane.b32.xlu0 %v311, 112
    %v1052 = vpop.permute.xlu0 %1051
    %1053 = vrot.lane.b32.xlu0 %v311, 80
    %v1054 = vpop.permute.xlu0 %1053
    %v1055 = vsel %vm317, %v1052, 0
    %v1057 = vsel %vm317, %v1054, 0
    %1059 = vmatprep.subr.mxu0 0.0
    %1060 = vmatpush1.xpose.msra.mxu0 %v1057
    %1061 = vmatprep.subr.mxu0 0.0
    %1062 = vmatpush1.xpose.msra.mxu0 0.0
    %1063 = vmatprep.subr.mxu0 0.0
    %1064 = vmatpush1.xpose.msra.mxu0 0.0
    %1065 = vmatprep.subr.mxu0 0.0
    %1066 = vmatpush1.xpose.msra.mxu0 0.0
    %1067 = vmatprep.subr.mxu0 0.0
    %1068 = vmatpush1.xpose.msra.mxu0 0.0
    %1069 = vmatprep.subr.mxu0 0.0
    %1070 = vmatpush1.xpose.msra.mxu0 0.0
    %1071 = vmatprep.subr.mxu0 0.0
    %1072 = vmatpush1.xpose.msra.mxu0 0.0
    %1073 = vmatprep.subr.mxu0 0.0
    %1074 = vmatpush1.xpose.msra.mxu0 0.0
    %1075 = vmatprep.subr.mxu0 0.0
    %1076 = vmatpush1.xpose.msra.mxu0 0.0
    %1077 = vmatprep.subr.mxu0 0.0
    %1078 = vmatpush1.xpose.msra.mxu0 0.0
    %1079 = vmatprep.subr.mxu0 0.0
    %1080 = vmatpush1.xpose.msra.mxu0 0.0
    %1081 = vmatprep.subr.mxu0 0.0
    %1082 = vmatpush1.xpose.msra.mxu0 0.0
    %1083 = vmatprep.subr.mxu0 0.0
    %1084 = vmatpush1.xpose.msra.mxu0 0.0
    %1085 = vmatprep.subr.mxu0 0.0
    %1086 = vmatpush1.xpose.msra.mxu0 0.0
    %1087 = vmatprep.subr.mxu0 0.0
    %1088 = vmatpush1.xpose.msra.mxu0 0.0
    %1089 = vmatprep.subr.mxu0 0.0
    %1090 = vmatpush1.xpose.msra.mxu0 0.0
    %1091 = vmatprep.subr.mxu0 0.0
    %1092 = vmatpush1.xpose.msra.mxu0 0.0
    %1093 = vmatprep.subr.mxu0 0.0
    %1094 = vmatpush1.xpose.msra.mxu0 0.0
    %1095 = vmatprep.subr.mxu0 0.0
    %1096 = vmatpush1.xpose.msra.mxu0 0.0
    %1097 = vmatprep.subr.mxu0 0.0
    %1098 = vmatpush1.xpose.msra.mxu0 0.0
    %1099 = vmatprep.subr.mxu0 0.0
    %1100 = vmatpush1.xpose.msra.mxu0 0.0
    %1101 = vmatprep.subr.mxu0 0.0
    %1102 = vmatpush1.xpose.msra.mxu0 0.0
    %1103 = vmatprep.subr.mxu0 0.0
    %1104 = vmatpush1.xpose.msra.mxu0 0.0
    %1105 = vmatprep.subr.mxu0 0.0
    %1106 = vmatpush1.xpose.msra.mxu0 0.0
    %1107 = vmatprep.subr.mxu0 0.0
    %1108 = vmatpush1.xpose.msra.mxu0 0.0
    %1109 = vmatprep.subr.mxu0 0.0
    %1110 = vmatpush1.xpose.msra.mxu0 0.0
    %1111 = vmatprep.subr.mxu0 0.0
    %1112 = vmatpush1.xpose.msra.mxu0 0.0
    %1113 = vmatprep.subr.mxu0 0.0
    %1114 = vmatpush1.xpose.msra.mxu0 0.0
    %1115 = vmatprep.subr.mxu0 0.0
    %1116 = vmatpush1.xpose.msra.mxu0 0.0
    %1117 = vmatprep.subr.mxu0 0.0
    %1118 = vmatpush1.xpose.msra.mxu0 0.0
    %1119 = vmatprep.subr.mxu0 0.0
    %1120 = vmatpush1.xpose.msra.mxu0 0.0
    %1121 = vmatprep.subr.mxu0 0.0
    %1122 = vmatpush1.xpose.msra.mxu0 0.0
    %1123 = vmatprep.mubr.f32.mxu0 0.0
    %1124 = vmatmul.mubr.f32.gmra.mrb[0].mxu0 %v1055
    %v1125 = vpop.f32.mrb[0].mxu0
    %v1126 = vadd.f32 0.0, %v1125
    %v1127 = vpop.f32.mrb[0].mxu0
    %1128 = vdwg.mxu0
    %v1129 = vsel %vm317, %v1048, -inf
    %1130 = vmax.xlane.f32.xlu0 %v1129
    %v1131 = vpop.xlane.xlu0 %1130
    %v1132 = vsel %vm317, %v1126, -inf
    %1133 = vmax.xlane.f32.xlu0 %v1132
    %v1134 = vpop.xlane.xlu0 %1133
    %v1135 = vsub.f32 %v1048, %v1131
    %v1136 = vsub.f32 %v1126, %v1134
    %v1137 = vmul.f32 %v1135, 1.442695
    %v1138 = vpow.pop %v1137
    %v1139 = vmul.f32 %v1136, 1.442695
    %v1140 = vpow.pop %v1139
    %v1141 = vsel %vm317, %v1138, 0.0
    %1142 = vadd.xlane.f32.xlu0 %v1141
    %v1143 = vpop.xlane.xlu0 %1142
    %v1144 = vsel %vm317, %v1140, 0.0
    %1145 = vadd.xlane.f32.xlu0 %v1144
    %v1146 = vpop.xlane.xlu0 %1145
    %v1147 = vrcp.pop %v1143
    %v1148 = vrcp.pop %v1146
    %v1149 = vmul.f32 %v1138, %v1147
    %v1150 = vmul.f32 %v1140, %v1148
    %1151 = vrot.lane.b32.xlu0 %v306, 48
    %v1152 = vpop.permute.xlu0 %1151
    %v1155 = vsel %vm317, %v1149, 0
    %1157 = vmatprep.subr.mxu0 0.0
    %1158 = vmatpush1.msra.mxu0 %v1152
    %1159 = vmatprep.subr.mxu0 0.0
    %1160 = vmatpush1.msra.mxu0 0.0
    %1161 = vmatprep.subr.mxu0 0.0
    %1162 = vmatpush1.msra.mxu0 0.0
    %1163 = vmatprep.subr.mxu0 0.0
    %1164 = vmatpush1.msra.mxu0 0.0
    %1165 = vmatprep.subr.mxu0 0.0
    %1166 = vmatpush1.msra.mxu0 0.0
    %1167 = vmatprep.subr.mxu0 0.0
    %1168 = vmatpush1.msra.mxu0 0.0
    %1169 = vmatprep.subr.mxu0 0.0
    %1170 = vmatpush1.msra.mxu0 0.0
    %1171 = vmatprep.subr.mxu0 0.0
    %1172 = vmatpush1.msra.mxu0 0.0
    %1173 = vmatprep.subr.mxu0 0.0
    %1174 = vmatpush1.msra.mxu0 0.0
    %1175 = vmatprep.subr.mxu0 0.0
    %1176 = vmatpush1.msra.mxu0 0.0
    %1177 = vmatprep.subr.mxu0 0.0
    %1178 = vmatpush1.msra.mxu0 0.0
    %1179 = vmatprep.subr.mxu0 0.0
    %1180 = vmatpush1.msra.mxu0 0.0
    %1181 = vmatprep.subr.mxu0 0.0
    %1182 = vmatpush1.msra.mxu0 0.0
    %1183 = vmatprep.subr.mxu0 0.0
    %1184 = vmatpush1.msra.mxu0 0.0
    %1185 = vmatprep.subr.mxu0 0.0
    %1186 = vmatpush1.msra.mxu0 0.0
    %1187 = vmatprep.subr.mxu0 0.0
    %1188 = vmatpush1.msra.mxu0 0.0
    %1189 = vmatprep.subr.mxu0 0.0
    %1190 = vmatpush1.msra.mxu0 0.0
    %1191 = vmatprep.subr.mxu0 0.0
    %1192 = vmatpush1.msra.mxu0 0.0
    %1193 = vmatprep.subr.mxu0 0.0
    %1194 = vmatpush1.msra.mxu0 0.0
    %1195 = vmatprep.subr.mxu0 0.0
    %1196 = vmatpush1.msra.mxu0 0.0
    %1197 = vmatprep.subr.mxu0 0.0
    %1198 = vmatpush1.msra.mxu0 0.0
    %1199 = vmatprep.subr.mxu0 0.0
    %1200 = vmatpush1.msra.mxu0 0.0
    %1201 = vmatprep.subr.mxu0 0.0
    %1202 = vmatpush1.msra.mxu0 0.0
    %1203 = vmatprep.subr.mxu0 0.0
    %1204 = vmatpush1.msra.mxu0 0.0
    %1205 = vmatprep.subr.mxu0 0.0
    %1206 = vmatpush1.msra.mxu0 0.0
    %1207 = vmatprep.subr.mxu0 0.0
    %1208 = vmatpush1.msra.mxu0 0.0
    %1209 = vmatprep.subr.mxu0 0.0
    %1210 = vmatpush1.msra.mxu0 0.0
    %1211 = vmatprep.subr.mxu0 0.0
    %1212 = vmatpush1.msra.mxu0 0.0
    %1213 = vmatprep.subr.mxu0 0.0
    %1214 = vmatpush1.msra.mxu0 0.0
    %1215 = vmatprep.subr.mxu0 0.0
    %1216 = vmatpush1.msra.mxu0 0.0
    %1217 = vmatprep.subr.mxu0 0.0
    %1218 = vmatpush1.msra.mxu0 0.0
    %1219 = vmatprep.subr.mxu0 0.0
    %1220 = vmatpush1.msra.mxu0 0.0
    %1221 = vmatprep.mubr.f32.mxu0 0.0
    %1222 = vmatmul.mubr.f32.gmra.mrb[0].mxu0 %v1155
    %v1223 = vpop.f32.mrb[0].mxu0
    %v1224 = vadd.f32 0.0, %v1223
    %v1225 = vpop.f32.mrb[0].mxu0
    %1226 = vdwg.mxu0
    %1227 = vrot.lane.b32.xlu0 %v311, 48
    %v1228 = vpop.permute.xlu0 %1227
    %v1231 = vsel %vm317, %v1150, 0
    %1233 = vmatprep.subr.mxu0 0.0
    %1234 = vmatpush1.msra.mxu0 %v1228
    %1235 = vmatprep.subr.mxu0 0.0
    %1236 = vmatpush1.msra.mxu0 0.0
    %1237 = vmatprep.subr.mxu0 0.0
    %1238 = vmatpush1.msra.mxu0 0.0
    %1239 = vmatprep.subr.mxu0 0.0
    %1240 = vmatpush1.msra.mxu0 0.0
    %1241 = vmatprep.subr.mxu0 0.0
    %1242 = vmatpush1.msra.mxu0 0.0
    %1243 = vmatprep.subr.mxu0 0.0
    %1244 = vmatpush1.msra.mxu0 0.0
    %1245 = vmatprep.subr.mxu0 0.0
    %1246 = vmatpush1.msra.mxu0 0.0
    %1247 = vmatprep.subr.mxu0 0.0
    %1248 = vmatpush1.msra.mxu0 0.0
    %1249 = vmatprep.subr.mxu0 0.0
    %1250 = vmatpush1.msra.mxu0 0.0
    %1251 = vmatprep.subr.mxu0 0.0
    %1252 = vmatpush1.msra.mxu0 0.0
    %1253 = vmatprep.subr.mxu0 0.0
    %1254 = vmatpush1.msra.mxu0 0.0
    %1255 = vmatprep.subr.mxu0 0.0
    %1256 = vmatpush1.msra.mxu0 0.0
    %1257 = vmatprep.subr.mxu0 0.0
    %1258 = vmatpush1.msra.mxu0 0.0
    %1259 = vmatprep.subr.mxu0 0.0
    %1260 = vmatpush1.msra.mxu0 0.0
    %1261 = vmatprep.subr.mxu0 0.0
    %1262 = vmatpush1.msra.mxu0 0.0
    %1263 = vmatprep.subr.mxu0 0.0
    %1264 = vmatpush1.msra.mxu0 0.0
    %1265 = vmatprep.subr.mxu0 0.0
    %1266 = vmatpush1.msra.mxu0 0.0
    %1267 = vmatprep.subr.mxu0 0.0
    %1268 = vmatpush1.msra.mxu0 0.0
    %1269 = vmatprep.subr.mxu0 0.0
    %1270 = vmatpush1.msra.mxu0 0.0
    %1271 = vmatprep.subr.mxu0 0.0
    %1272 = vmatpush1.msra.mxu0 0.0
    %1273 = vmatprep.subr.mxu0 0.0
    %1274 = vmatpush1.msra.mxu0 0.0
    %1275 = vmatprep.subr.mxu0 0.0
    %1276 = vmatpush1.msra.mxu0 0.0
    %1277 = vmatprep.subr.mxu0 0.0
    %1278 = vmatpush1.msra.mxu0 0.0
    %1279 = vmatprep.subr.mxu0 0.0
    %1280 = vmatpush1.msra.mxu0 0.0
    %1281 = vmatprep.subr.mxu0 0.0
    %1282 = vmatpush1.msra.mxu0 0.0
    %1283 = vmatprep.subr.mxu0 0.0
    %1284 = vmatpush1.msra.mxu0 0.0
    %1285 = vmatprep.subr.mxu0 0.0
    %1286 = vmatpush1.msra.mxu0 0.0
    %1287 = vmatprep.subr.mxu0 0.0
    %1288 = vmatpush1.msra.mxu0 0.0
    %1289 = vmatprep.subr.mxu0 0.0
    %1290 = vmatpush1.msra.mxu0 0.0
    %1291 = vmatprep.subr.mxu0 0.0
    %1292 = vmatpush1.msra.mxu0 0.0
    %1293 = vmatprep.subr.mxu0 0.0
    %1294 = vmatpush1.msra.mxu0 0.0
    %1295 = vmatprep.subr.mxu0 0.0
    %1296 = vmatpush1.msra.mxu0 0.0
    %1297 = vmatprep.mubr.f32.mxu0 0.0
    %1298 = vmatmul.mubr.f32.gmra.mrb[0].mxu0 %v1231
    %v1299 = vpop.f32.mrb[0].mxu0
    %v1300 = vadd.f32 0.0, %v1299
    %v1301 = vpop.f32.mrb[0].mxu0
    %1302 = vdwg.mxu0
    %1303 = vrot.lane.b32.xlu0 %v306, 104
    %v1304 = vpop.permute.xlu0 %1303
    %1305 = vrot.lane.b32.xlu0 %v306, 72
    %v1306 = vpop.permute.xlu0 %1305
    %v1307 = vsel %vm317, %v1304, 0
    %v1309 = vsel %vm317, %v1306, 0
    %1311 = vmatprep.subr.mxu0 0.0
    %1312 = vmatpush1.xpose.msra.mxu0 %v1309
    %1313 = vmatprep.subr.mxu0 0.0
    %1314 = vmatpush1.xpose.msra.mxu0 0.0
    %1315 = vmatprep.subr.mxu0 0.0
    %1316 = vmatpush1.xpose.msra.mxu0 0.0
    %1317 = vmatprep.subr.mxu0 0.0
    %1318 = vmatpush1.xpose.msra.mxu0 0.0
    %1319 = vmatprep.subr.mxu0 0.0
    %1320 = vmatpush1.xpose.msra.mxu0 0.0
    %1321 = vmatprep.subr.mxu0 0.0
    %1322 = vmatpush1.xpose.msra.mxu0 0.0
    %1323 = vmatprep.subr.mxu0 0.0
    %1324 = vmatpush1.xpose.msra.mxu0 0.0
    %1325 = vmatprep.subr.mxu0 0.0
    %1326 = vmatpush1.xpose.msra.mxu0 0.0
    %1327 = vmatprep.subr.mxu0 0.0
    %1328 = vmatpush1.xpose.msra.mxu0 0.0
    %1329 = vmatprep.subr.mxu0 0.0
    %1330 = vmatpush1.xpose.msra.mxu0 0.0
    %1331 = vmatprep.subr.mxu0 0.0
    %1332 = vmatpush1.xpose.msra.mxu0 0.0
    %1333 = vmatprep.subr.mxu0 0.0
    %1334 = vmatpush1.xpose.msra.mxu0 0.0
    %1335 = vmatprep.subr.mxu0 0.0
    %1336 = vmatpush1.xpose.msra.mxu0 0.0
    %1337 = vmatprep.subr.mxu0 0.0
    %1338 = vmatpush1.xpose.msra.mxu0 0.0
    %1339 = vmatprep.subr.mxu0 0.0
    %1340 = vmatpush1.xpose.msra.mxu0 0.0
    %1341 = vmatprep.subr.mxu0 0.0
    %1342 = vmatpush1.xpose.msra.mxu0 0.0
    %1343 = vmatprep.subr.mxu0 0.0
    %1344 = vmatpush1.xpose.msra.mxu0 0.0
    %1345 = vmatprep.subr.mxu0 0.0
    %1346 = vmatpush1.xpose.msra.mxu0 0.0
    %1347 = vmatprep.subr.mxu0 0.0
    %1348 = vmatpush1.xpose.msra.mxu0 0.0
    %1349 = vmatprep.subr.mxu0 0.0
    %1350 = vmatpush1.xpose.msra.mxu0 0.0
    %1351 = vmatprep.subr.mxu0 0.0
    %1352 = vmatpush1.xpose.msra.mxu0 0.0
    %1353 = vmatprep.subr.mxu0 0.0
    %1354 = vmatpush1.xpose.msra.mxu0 0.0
    %1355 = vmatprep.subr.mxu0 0.0
    %1356 = vmatpush1.xpose.msra.mxu0 0.0
    %1357 = vmatprep.subr.mxu0 0.0
    %1358 = vmatpush1.xpose.msra.mxu0 0.0
    %1359 = vmatprep.subr.mxu0 0.0
    %1360 = vmatpush1.xpose.msra.mxu0 0.0
    %1361 = vmatprep.subr.mxu0 0.0
    %1362 = vmatpush1.xpose.msra.mxu0 0.0
    %1363 = vmatprep.subr.mxu0 0.0
    %1364 = vmatpush1.xpose.msra.mxu0 0.0
    %1365 = vmatprep.subr.mxu0 0.0
    %1366 = vmatpush1.xpose.msra.mxu0 0.0
    %1367 = vmatprep.subr.mxu0 0.0
    %1368 = vmatpush1.xpose.msra.mxu0 0.0
    %1369 = vmatprep.subr.mxu0 0.0
    %1370 = vmatpush1.xpose.msra.mxu0 0.0
    %1371 = vmatprep.subr.mxu0 0.0
    %1372 = vmatpush1.xpose.msra.mxu0 0.0
    %1373 = vmatprep.subr.mxu0 0.0
    %1374 = vmatpush1.xpose.msra.mxu0 0.0
    %1375 = vmatprep.mubr.f32.mxu0 0.0
    %1376 = vmatmul.mubr.f32.gmra.mrb[0].mxu0 %v1307
    %v1377 = vpop.f32.mrb[0].mxu0
    %v1378 = vadd.f32 0.0, %v1377
    %v1379 = vpop.f32.mrb[0].mxu0
    %1380 = vdwg.mxu0
    %1381 = vrot.lane.b32.xlu0 %v311, 104
    %v1382 = vpop.permute.xlu0 %1381
    %1383 = vrot.lane.b32.xlu0 %v311, 72
    %v1384 = vpop.permute.xlu0 %1383
    %v1385 = vsel %vm317, %v1382, 0
    %v1387 = vsel %vm317, %v1384, 0
    %1389 = vmatprep.subr.mxu0 0.0
    %1390 = vmatpush1.xpose.msra.mxu0 %v1387
    %1391 = vmatprep.subr.mxu0 0.0
    %1392 = vmatpush1.xpose.msra.mxu0 0.0
    %1393 = vmatprep.subr.mxu0 0.0
    %1394 = vmatpush1.xpose.msra.mxu0 0.0
    %1395 = vmatprep.subr.mxu0 0.0
    %1396 = vmatpush1.xpose.msra.mxu0 0.0
    %1397 = vmatprep.subr.mxu0 0.0
    %1398 = vmatpush1.xpose.msra.mxu0 0.0
    %1399 = vmatprep.subr.mxu0 0.0
    %1400 = vmatpush1.xpose.msra.mxu0 0.0
    %1401 = vmatprep.subr.mxu0 0.0
    %1402 = vmatpush1.xpose.msra.mxu0 0.0
    %1403 = vmatprep.subr.mxu0 0.0
    %1404 = vmatpush1.xpose.msra.mxu0 0.0
    %1405 = vmatprep.subr.mxu0 0.0
    %1406 = vmatpush1.xpose.msra.mxu0 0.0
    %1407 = vmatprep.subr.mxu0 0.0
    %1408 = vmatpush1.xpose.msra.mxu0 0.0
    %1409 = vmatprep.subr.mxu0 0.0
    %1410 = vmatpush1.xpose.msra.mxu0 0.0
    %1411 = vmatprep.subr.mxu0 0.0
    %1412 = vmatpush1.xpose.msra.mxu0 0.0
    %1413 = vmatprep.subr.mxu0 0.0
    %1414 = vmatpush1.xpose.msra.mxu0 0.0
    %1415 = vmatprep.subr.mxu0 0.0
    %1416 = vmatpush1.xpose.msra.mxu0 0.0
    %1417 = vmatprep.subr.mxu0 0.0
    %1418 = vmatpush1.xpose.msra.mxu0 0.0
    %1419 = vmatprep.subr.mxu0 0.0
    %1420 = vmatpush1.xpose.msra.mxu0 0.0
    %1421 = vmatprep.subr.mxu0 0.0
    %1422 = vmatpush1.xpose.msra.mxu0 0.0
    %1423 = vmatprep.subr.mxu0 0.0
    %1424 = vmatpush1.xpose.msra.mxu0 0.0
    %1425 = vmatprep.subr.mxu0 0.0
    %1426 = vmatpush1.xpose.msra.mxu0 0.0
    %1427 = vmatprep.subr.mxu0 0.0
    %1428 = vmatpush1.xpose.msra.mxu0 0.0
    %1429 = vmatprep.subr.mxu0 0.0
    %1430 = vmatpush1.xpose.msra.mxu0 0.0
    %1431 = vmatprep.subr.mxu0 0.0
    %1432 = vmatpush1.xpose.msra.mxu0 0.0
    %1433 = vmatprep.subr.mxu0 0.0
    %1434 = vmatpush1.xpose.msra.mxu0 0.0
    %1435 = vmatprep.subr.mxu0 0.0
    %1436 = vmatpush1.xpose.msra.mxu0 0.0
    %1437 = vmatprep.subr.mxu0 0.0
    %1438 = vmatpush1.xpose.msra.mxu0 0.0
    %1439 = vmatprep.subr.mxu0 0.0
    %1440 = vmatpush1.xpose.msra.mxu0 0.0
    %1441 = vmatprep.subr.mxu0 0.0
    %1442 = vmatpush1.xpose.msra.mxu0 0.0
    %1443 = vmatprep.subr.mxu0 0.0
    %1444 = vmatpush1.xpose.msra.mxu0 0.0
    %1445 = vmatprep.subr.mxu0 0.0
    %1446 = vmatpush1.xpose.msra.mxu0 0.0
    %1447 = vmatprep.subr.mxu0 0.0
    %1448 = vmatpush1.xpose.msra.mxu0 0.0
    %1449 = vmatprep.subr.mxu0 0.0
    %1450 = vmatpush1.xpose.msra.mxu0 0.0
    %1451 = vmatprep.subr.mxu0 0.0
    %1452 = vmatpush1.xpose.msra.mxu0 0.0
    %1453 = vmatprep.mubr.f32.mxu0 0.0
    %1454 = vmatmul.mubr.f32.gmra.mrb[0].mxu0 %v1385
    %v1455 = vpop.f32.mrb[0].mxu0
    %v1456 = vadd.f32 0.0, %v1455
    %v1457 = vpop.f32.mrb[0].mxu0
    %1458 = vdwg.mxu0
    %v1459 = vsel %vm317, %v1378, -inf
    %1460 = vmax.xlane.f32.xlu0 %v1459
    %v1461 = vpop.xlane.xlu0 %1460
    %v1462 = vsel %vm317, %v1456, -inf
    %1463 = vmax.xlane.f32.xlu0 %v1462
    %v1464 = vpop.xlane.xlu0 %1463
    %v1465 = vsub.f32 %v1378, %v1461
    %v1466 = vsub.f32 %v1456, %v1464
    %v1467 = vmul.f32 %v1465, 1.442695
    %v1468 = vpow.pop %v1467
    %v1469 = vmul.f32 %v1466, 1.442695
    %v1470 = vpow.pop %v1469
    %v1471 = vsel %vm317, %v1468, 0.0
    %1472 = vadd.xlane.f32.xlu0 %v1471
    %v1473 = vpop.xlane.xlu0 %1472
    %v1474 = vsel %vm317, %v1470, 0.0
    %1475 = vadd.xlane.f32.xlu0 %v1474
    %v1476 = vpop.xlane.xlu0 %1475
    %v1477 = vrcp.pop %v1473
    %v1478 = vrcp.pop %v1476
    %v1479 = vmul.f32 %v1468, %v1477
    %v1480 = vmul.f32 %v1470, %v1478
    %1481 = vrot.lane.b32.xlu0 %v306, 40
    %v1482 = vpop.permute.xlu0 %1481
    %v1485 = vsel %vm317, %v1479, 0
    %1487 = vmatprep.subr.mxu0 0.0
    %1488 = vmatpush1.msra.mxu0 %v1482
    %1489 = vmatprep.subr.mxu0 0.0
    %1490 = vmatpush1.msra.mxu0 0.0
    %1491 = vmatprep.subr.mxu0 0.0
    %1492 = vmatpush1.msra.mxu0 0.0
    %1493 = vmatprep.subr.mxu0 0.0
    %1494 = vmatpush1.msra.mxu0 0.0
    %1495 = vmatprep.subr.mxu0 0.0
    %1496 = vmatpush1.msra.mxu0 0.0
    %1497 = vmatprep.subr.mxu0 0.0
    %1498 = vmatpush1.msra.mxu0 0.0
    %1499 = vmatprep.subr.mxu0 0.0
    %1500 = vmatpush1.msra.mxu0 0.0
    %1501 = vmatprep.subr.mxu0 0.0
    %1502 = vmatpush1.msra.mxu0 0.0
    %1503 = vmatprep.subr.mxu0 0.0
    %1504 = vmatpush1.msra.mxu0 0.0
    %1505 = vmatprep.subr.mxu0 0.0
    %1506 = vmatpush1.msra.mxu0 0.0
    %1507 = vmatprep.subr.mxu0 0.0
    %1508 = vmatpush1.msra.mxu0 0.0
    %1509 = vmatprep.subr.mxu0 0.0
    %1510 = vmatpush1.msra.mxu0 0.0
    %1511 = vmatprep.subr.mxu0 0.0
    %1512 = vmatpush1.msra.mxu0 0.0
    %1513 = vmatprep.subr.mxu0 0.0
    %1514 = vmatpush1.msra.mxu0 0.0
    %1515 = vmatprep.subr.mxu0 0.0
    %1516 = vmatpush1.msra.mxu0 0.0
    %1517 = vmatprep.subr.mxu0 0.0
    %1518 = vmatpush1.msra.mxu0 0.0
    %1519 = vmatprep.subr.mxu0 0.0
    %1520 = vmatpush1.msra.mxu0 0.0
    %1521 = vmatprep.subr.mxu0 0.0
    %1522 = vmatpush1.msra.mxu0 0.0
    %1523 = vmatprep.subr.mxu0 0.0
    %1524 = vmatpush1.msra.mxu0 0.0
    %1525 = vmatprep.subr.mxu0 0.0
    %1526 = vmatpush1.msra.mxu0 0.0
    %1527 = vmatprep.subr.mxu0 0.0
    %1528 = vmatpush1.msra.mxu0 0.0
    %1529 = vmatprep.subr.mxu0 0.0
    %1530 = vmatpush1.msra.mxu0 0.0
    %1531 = vmatprep.subr.mxu0 0.0
    %1532 = vmatpush1.msra.mxu0 0.0
    %1533 = vmatprep.subr.mxu0 0.0
    %1534 = vmatpush1.msra.mxu0 0.0
    %1535 = vmatprep.subr.mxu0 0.0
    %1536 = vmatpush1.msra.mxu0 0.0
    %1537 = vmatprep.subr.mxu0 0.0
    %1538 = vmatpush1.msra.mxu0 0.0
    %1539 = vmatprep.subr.mxu0 0.0
    %1540 = vmatpush1.msra.mxu0 0.0
    %1541 = vmatprep.subr.mxu0 0.0
    %1542 = vmatpush1.msra.mxu0 0.0
    %1543 = vmatprep.subr.mxu0 0.0
    %1544 = vmatpush1.msra.mxu0 0.0
    %1545 = vmatprep.subr.mxu0 0.0
    %1546 = vmatpush1.msra.mxu0 0.0
    %1547 = vmatprep.subr.mxu0 0.0
    %1548 = vmatpush1.msra.mxu0 0.0
    %1549 = vmatprep.subr.mxu0 0.0
    %1550 = vmatpush1.msra.mxu0 0.0
    %1551 = vmatprep.mubr.f32.mxu0 0.0
    %1552 = vmatmul.mubr.f32.gmra.mrb[0].mxu0 %v1485
    %v1553 = vpop.f32.mrb[0].mxu0
    %v1554 = vadd.f32 0.0, %v1553
    %v1555 = vpop.f32.mrb[0].mxu0
    %1556 = vdwg.mxu0
    %1557 = vrot.lane.b32.xlu0 %v311, 40
    %v1558 = vpop.permute.xlu0 %1557
    %v1561 = vsel %vm317, %v1480, 0
    %1563 = vmatprep.subr.mxu0 0.0
    %1564 = vmatpush1.msra.mxu0 %v1558
    %1565 = vmatprep.subr.mxu0 0.0
    %1566 = vmatpush1.msra.mxu0 0.0
    %1567 = vmatprep.subr.mxu0 0.0
    %1568 = vmatpush1.msra.mxu0 0.0
    %1569 = vmatprep.subr.mxu0 0.0
    %1570 = vmatpush1.msra.mxu0 0.0
    %1571 = vmatprep.subr.mxu0 0.0
    %1572 = vmatpush1.msra.mxu0 0.0
    %1573 = vmatprep.subr.mxu0 0.0
    %1574 = vmatpush1.msra.mxu0 0.0
    %1575 = vmatprep.subr.mxu0 0.0
    %1576 = vmatpush1.msra.mxu0 0.0
    %1577 = vmatprep.subr.mxu0 0.0
    %1578 = vmatpush1.msra.mxu0 0.0
    %1579 = vmatprep.subr.mxu0 0.0
    %1580 = vmatpush1.msra.mxu0 0.0
    %1581 = vmatprep.subr.mxu0 0.0
    %1582 = vmatpush1.msra.mxu0 0.0
    %1583 = vmatprep.subr.mxu0 0.0
    %1584 = vmatpush1.msra.mxu0 0.0
    %1585 = vmatprep.subr.mxu0 0.0
    %1586 = vmatpush1.msra.mxu0 0.0
    %1587 = vmatprep.subr.mxu0 0.0
    %1588 = vmatpush1.msra.mxu0 0.0
    %1589 = vmatprep.subr.mxu0 0.0
    %1590 = vmatpush1.msra.mxu0 0.0
    %1591 = vmatprep.subr.mxu0 0.0
    %1592 = vmatpush1.msra.mxu0 0.0
    %1593 = vmatprep.subr.mxu0 0.0
    %1594 = vmatpush1.msra.mxu0 0.0
    %1595 = vmatprep.subr.mxu0 0.0
    %1596 = vmatpush1.msra.mxu0 0.0
    %1597 = vmatprep.subr.mxu0 0.0
    %1598 = vmatpush1.msra.mxu0 0.0
    %1599 = vmatprep.subr.mxu0 0.0
    %1600 = vmatpush1.msra.mxu0 0.0
    %1601 = vmatprep.subr.mxu0 0.0
    %1602 = vmatpush1.msra.mxu0 0.0
    %1603 = vmatprep.subr.mxu0 0.0
    %1604 = vmatpush1.msra.mxu0 0.0
    %1605 = vmatprep.subr.mxu0 0.0
    %1606 = vmatpush1.msra.mxu0 0.0
    %1607 = vmatprep.subr.mxu0 0.0
    %1608 = vmatpush1.msra.mxu0 0.0
    %1609 = vmatprep.subr.mxu0 0.0
    %1610 = vmatpush1.msra.mxu0 0.0
    %1611 = vmatprep.subr.mxu0 0.0
    %1612 = vmatpush1.msra.mxu0 0.0
    %1613 = vmatprep.subr.mxu0 0.0
    %1614 = vmatpush1.msra.mxu0 0.0
    %1615 = vmatprep.subr.mxu0 0.0
    %1616 = vmatpush1.msra.mxu0 0.0
    %1617 = vmatprep.subr.mxu0 0.0
    %1618 = vmatpush1.msra.mxu0 0.0
    %1619 = vmatprep.subr.mxu0 0.0
    %1620 = vmatpush1.msra.mxu0 0.0
    %1621 = vmatprep.subr.mxu0 0.0
    %1622 = vmatpush1.msra.mxu0 0.0
    %1623 = vmatprep.subr.mxu0 0.0
    %1624 = vmatpush1.msra.mxu0 0.0
    %1625 = vmatprep.subr.mxu0 0.0
    %1626 = vmatpush1.msra.mxu0 0.0
    %1627 = vmatprep.mubr.f32.mxu0 0.0
    %1628 = vmatmul.mubr.f32.gmra.mrb[0].mxu0 %v1561
    %v1629 = vpop.f32.mrb[0].mxu0
    %v1630 = vadd.f32 0.0, %v1629
    %v1631 = vpop.f32.mrb[0].mxu0
    %1632 = vdwg.mxu0
    %1635 = vrot.lane.b32.xlu0 %v894, 8
    %v1636 = vpop.permute.xlu0 %1635
    %1637 = vrot.lane.b32.xlu0 %v970, 8
    %v1638 = vpop.permute.xlu0 %1637
    %1643 = vrot.lane.b32.xlu0 %v1224, 16
    %v1644 = vpop.permute.xlu0 %1643
    %1645 = vrot.lane.b32.xlu0 %v1300, 16
    %v1646 = vpop.permute.xlu0 %1645
    %1651 = vrot.lane.b32.xlu0 %v1554, 24
    %v1652 = vpop.permute.xlu0 %1651
    %1653 = vrot.lane.b32.xlu0 %v1630, 24
    %v1654 = vpop.permute.xlu0 %1653
    %v1657 = vsel %vm317, %v564, %v1636
    %v1658 = vsel %vm317, %v640, %v1638
    %v1659 = vsel %vm96, %v1657, %v1644
    %v1660 = vsel %vm96, %v1658, %v1646
    %vm1661 = vcmask 195584
    %v1662 = vsel %vm1661, %v1659, %v1652
    %v1663 = vsel %vm1661, %v1660, %v1654
    %v1664 = vld [vmem:[%s6] sm:$0xff]
    %v1665 = vld [vmem:[%s6 + $0x8] sm:$0xff]
    %v1666 = vld [vmem:[%s6 + $0x10] sm:$0xff]
    %v1667 = vld [vmem:[%s6 + $0x18] sm:$0xff]
    %v1668 = vlaneseq
    %v1669 = vshrl.u32 %v1668, 7
    %v1670 = vsub.s32 0, %v1669
    %v1671 = vrot.slane %v85, %v1670
    %v1673 = vsel %vm182, %v1662, 0
    %v1676 = vsel %vm182, %v1663, 0
    %1678 = vmatprep.subr.mxu0 0.0
    %1679 = vmatpush1.msra.mxu0 %v1664
    %1680 = vmatprep.subr.mxu0 0.0
    %1681 = vmatpush1.msra.mxu0 %v1665
    %1682 = vmatprep.subr.mxu0 0.0
    %1683 = vmatpush1.msra.mxu0 %v1666
    %1684 = vmatprep.subr.mxu0 0.0
    %1685 = vmatpush1.msra.mxu0 %v1667
    %1686 = vmatprep.subr.mxu0 0.0
    %1687 = vmatpush1.msra.mxu0 0.0
    %1688 = vmatprep.subr.mxu0 0.0
    %1689 = vmatpush1.msra.mxu0 0.0
    %1690 = vmatprep.subr.mxu0 0.0
    %1691 = vmatpush1.msra.mxu0 0.0
    %1692 = vmatprep.subr.mxu0 0.0
    %1693 = vmatpush1.msra.mxu0 0.0
    %1694 = vmatprep.subr.mxu0 0.0
    %1695 = vmatpush1.msra.mxu0 0.0
    %1696 = vmatprep.subr.mxu0 0.0
    %1697 = vmatpush1.msra.mxu0 0.0
    %1698 = vmatprep.subr.mxu0 0.0
    %1699 = vmatpush1.msra.mxu0 0.0
    %1700 = vmatprep.subr.mxu0 0.0
    %1701 = vmatpush1.msra.mxu0 0.0
    %1702 = vmatprep.subr.mxu0 0.0
    %1703 = vmatpush1.msra.mxu0 0.0
    %1704 = vmatprep.subr.mxu0 0.0
    %1705 = vmatpush1.msra.mxu0 0.0
    %1706 = vmatprep.subr.mxu0 0.0
    %1707 = vmatpush1.msra.mxu0 0.0
    %1708 = vmatprep.subr.mxu0 0.0
    %1709 = vmatpush1.msra.mxu0 0.0
    %1710 = vmatprep.subr.mxu0 0.0
    %1711 = vmatpush1.msra.mxu0 0.0
    %1712 = vmatprep.subr.mxu0 0.0
    %1713 = vmatpush1.msra.mxu0 0.0
    %1714 = vmatprep.subr.mxu0 0.0
    %1715 = vmatpush1.msra.mxu0 0.0
    %1716 = vmatprep.subr.mxu0 0.0
    %1717 = vmatpush1.msra.mxu0 0.0
    %1718 = vmatprep.subr.mxu0 0.0
    %1719 = vmatpush1.msra.mxu0 0.0
    %1720 = vmatprep.subr.mxu0 0.0
    %1721 = vmatpush1.msra.mxu0 0.0
    %1722 = vmatprep.subr.mxu0 0.0
    %1723 = vmatpush1.msra.mxu0 0.0
    %1724 = vmatprep.subr.mxu0 0.0
    %1725 = vmatpush1.msra.mxu0 0.0
    %1726 = vmatprep.subr.mxu0 0.0
    %1727 = vmatpush1.msra.mxu0 0.0
    %1728 = vmatprep.subr.mxu0 0.0
    %1729 = vmatpush1.msra.mxu0 0.0
    %1730 = vmatprep.subr.mxu0 0.0
    %1731 = vmatpush1.msra.mxu0 0.0
    %1732 = vmatprep.subr.mxu0 0.0
    %1733 = vmatpush1.msra.mxu0 0.0
    %1734 = vmatprep.subr.mxu0 0.0
    %1735 = vmatpush1.msra.mxu0 0.0
    %1736 = vmatprep.subr.mxu0 0.0
    %1737 = vmatpush1.msra.mxu0 0.0
    %1738 = vmatprep.subr.mxu0 0.0
    %1739 = vmatpush1.msra.mxu0 0.0
    %1740 = vmatprep.subr.mxu0 0.0
    %1741 = vmatpush1.msra.mxu0 0.0
    %1742 = vmatprep.mubr.f32.mxu0 0.0
    %1743 = vmatmul.mubr.f32.gmra.mrb[0].mxu0 %v1673
    %v1744 = vpop.f32.mrb[0].mxu0
    %v1745 = vadd.f32 %v1671, %v1744
    %v1746 = vpop.f32.mrb[0].mxu0
    %1747 = vmatprep.mubr.f32.mxu0 0.0
    %1748 = vmatmul.mubr.f32.gmra.mrb[0].mxu0 %v1676
    %v1749 = vpop.f32.mrb[0].mxu0
    %v1750 = vadd.f32 %v1671, %v1749
    %v1751 = vpop.f32.mrb[0].mxu0
    %1752 = vdwg.mxu0
    %v1753 = vadd.f32 %v220, %v1745
    %v1754 = vadd.f32 %v221, %v1750
    %v1755 = vsel %vm182, %v1753, 0.0
    %1756 = vadd.xlane.f32.xlu0 %v1755
    %v1757 = vpop.xlane.xlu0 %1756
    %v1758 = vsel %vm182, %v1754, 0.0
    %1759 = vadd.xlane.f32.xlu0 %v1758
    %v1760 = vpop.xlane.xlu0 %1759
    %v1761 = vmul.f32 %v1757, %v189
    %v1762 = vmul.f32 %v1760, %v189
    %v1763 = vsub.f32 %v1753, %v1761
    %v1764 = vsub.f32 %v1754, %v1762
    %v1765 = vmul.f32 %v1763, %v1763
    %v1766 = vmul.f32 %v1764, %v1764
    %v1767 = vsel %vm182, %v1765, 0.0
    %1768 = vadd.xlane.f32.xlu0 %v1767
    %v1769 = vpop.xlane.xlu0 %1768
    %v1770 = vsel %vm182, %v1766, 0.0
    %1771 = vadd.xlane.f32.xlu0 %v1770
    %v1772 = vpop.xlane.xlu0 %1771
    %v1773 = vmul.f32 %v1769, %v189
    %v1774 = vmul.f32 %v1772, %v189
    %v1775 = vadd.f32 %v1773, 1e-05
    %v1776 = vadd.f32 %v1774, 1e-05
    %v1777 = vrsqrt.pop %v1775
    %v1778 = vrsqrt.pop %v1776
    %v1779 = vmul.f32 %v1763, %v1777
    %v1780 = vmul.f32 %v1764, %v1778
    %v1781 = vlaneseq
    %v1782 = vshrl.u32 %v1781, 7
    %v1783 = vsub.s32 1, %v1782
    %v1784 = vrot.slane %v85, %v1783
    %v1785 = vmul.f32 %v1779, %v1784
    %v1786 = vmul.f32 %v1780, %v1784
    %v1787 = vlaneseq
    %v1788 = vshrl.u32 %v1787, 7
    %v1789 = vsub.s32 2, %v1788
    %v1790 = vrot.slane %v85, %v1789
    %v1791 = vadd.f32 %v1785, %v1790
    %v1792 = vadd.f32 %v1786, %v1790
    %v1793 = vld [vmem:[%s8] sm:$0xff]
    %v1794 = vld [vmem:[%s8 + $0x8] sm:$0xff]
    %v1795 = vld [vmem:[%s8 + $0x10] sm:$0xff]
    %v1796 = vld [vmem:[%s8 + $0x18] sm:$0xff]
    %v1797 = vld [vmem:[#allocation7] sm:$0x1]
    %v1799 = vlaneseq
    %v1800 = vshrl.u32 %v1799, 7
    %v1801 = vsub.s32 0, %v1800
    %v1802 = vrot.slane %v1797, %v1801
    %v1805 = vsel %vm182, %v1791, 0
    %v1808 = vsel %vm182, %v1792, 0
    %1810 = vmatprep.subr.mxu0 0.0
    %1811 = vmatpush1.msra.mxu0 %v1793
    %1812 = vmatprep.subr.mxu0 0.0
    %1813 = vmatpush1.msra.mxu0 %v1794
    %1814 = vmatprep.subr.mxu0 0.0
    %1815 = vmatpush1.msra.mxu0 %v1795
    %1816 = vmatprep.subr.mxu0 0.0
    %1817 = vmatpush1.msra.mxu0 %v1796
    %1818 = vmatprep.subr.mxu0 0.0
    %1819 = vmatpush1.msra.mxu0 0.0
    %1820 = vmatprep.subr.mxu0 0.0
    %1821 = vmatpush1.msra.mxu0 0.0
    %1822 = vmatprep.subr.mxu0 0.0
    %1823 = vmatpush1.msra.mxu0 0.0
    %1824 = vmatprep.subr.mxu0 0.0
    %1825 = vmatpush1.msra.mxu0 0.0
    %1826 = vmatprep.subr.mxu0 0.0
    %1827 = vmatpush1.msra.mxu0 0.0
    %1828 = vmatprep.subr.mxu0 0.0
    %1829 = vmatpush1.msra.mxu0 0.0
    %1830 = vmatprep.subr.mxu0 0.0
    %1831 = vmatpush1.msra.mxu0 0.0
    %1832 = vmatprep.subr.mxu0 0.0
    %1833 = vmatpush1.msra.mxu0 0.0
    %1834 = vmatprep.subr.mxu0 0.0
    %1835 = vmatpush1.msra.mxu0 0.0
    %1836 = vmatprep.subr.mxu0 0.0
    %1837 = vmatpush1.msra.mxu0 0.0
    %1838 = vmatprep.subr.mxu0 0.0
    %1839 = vmatpush1.msra.mxu0 0.0
    %1840 = vmatprep.subr.mxu0 0.0
    %1841 = vmatpush1.msra.mxu0 0.0
    %1842 = vmatprep.subr.mxu0 0.0
    %1843 = vmatpush1.msra.mxu0 0.0
    %1844 = vmatprep.subr.mxu0 0.0
    %1845 = vmatpush1.msra.mxu0 0.0
    %1846 = vmatprep.subr.mxu0 0.0
    %1847 = vmatpush1.msra.mxu0 0.0
    %1848 = vmatprep.subr.mxu0 0.0
    %1849 = vmatpush1.msra.mxu0 0.0
    %1850 = vmatprep.subr.mxu0 0.0
    %1851 = vmatpush1.msra.mxu0 0.0
    %1852 = vmatprep.subr.mxu0 0.0
    %1853 = vmatpush1.msra.mxu0 0.0
    %1854 = vmatprep.subr.mxu0 0.0
    %1855 = vmatpush1.msra.mxu0 0.0
    %1856 = vmatprep.subr.mxu0 0.0
    %1857 = vmatpush1.msra.mxu0 0.0
    %1858 = vmatprep.subr.mxu0 0.0
    %1859 = vmatpush1.msra.mxu0 0.0
    %1860 = vmatprep.subr.mxu0 0.0
    %1861 = vmatpush1.msra.mxu0 0.0
    %1862 = vmatprep.subr.mxu0 0.0
    %1863 = vmatpush1.msra.mxu0 0.0
    %1864 = vmatprep.subr.mxu0 0.0
    %1865 = vmatpush1.msra.mxu0 0.0
    %1866 = vmatprep.subr.mxu0 0.0
    %1867 = vmatpush1.msra.mxu0 0.0
    %1868 = vmatprep.subr.mxu0 0.0
    %1869 = vmatpush1.msra.mxu0 0.0
    %1870 = vmatprep.subr.mxu0 0.0
    %1871 = vmatpush1.msra.mxu0 0.0
    %1872 = vmatprep.subr.mxu0 0.0
    %1873 = vmatpush1.msra.mxu0 0.0
    %1874 = vmatprep.mubr.f32.mxu0 0.0
    %1875 = vmatmul.mubr.f32.gmra.mrb[0].mxu0 %v1805
    %v1876 = vpop.f32.mrb[0].mxu0
    %v1877 = vadd.f32 %v1802, %v1876
    %v1878 = vpop.f32.mrb[0].mxu0
    %1879 = vmatprep.mubr.f32.mxu0 0.0
    %1880 = vmatmul.mubr.f32.gmra.mrb[0].mxu0 %v1808
    %v1881 = vpop.f32.mrb[0].mxu0
    %v1882 = vadd.f32 %v1802, %v1881
    %v1883 = vpop.f32.mrb[0].mxu0
    %1884 = vdwg.mxu0
    %v1885 = vmax.f32 %v1877, 0.0
    %v1886 = vmax.f32 %v1882, 0.0
    %v1887 = vld [vmem:[%s10] sm:$0xff]
    %v1888 = vld [vmem:[%s10 + $0x8] sm:$0xff]
    %v1889 = vld [vmem:[%s10 + $0x10] sm:$0xff]
    %v1890 = vld [vmem:[%s10 + $0x18] sm:$0xff]
    %v1891 = vld [vmem:[%s10 + $0x20] sm:$0xff]
    %v1892 = vld [vmem:[%s10 + $0x28] sm:$0xff]
    %v1893 = vld [vmem:[%s10 + $0x30] sm:$0xff]
    %v1894 = vld [vmem:[%s10 + $0x38] sm:$0xff]
    %v1895 = vlaneseq
    %v1896 = vshrl.u32 %v1895, 7
    %v1897 = vsub.s32 3, %v1896
    %v1898 = vrot.slane %v85, %v1897
    %vm1899 = vcmask 523264
    %v1901 = vsel %vm1899, %v1885, 0
    %v1904 = vsel %vm1899, %v1886, 0
    %1906 = vmatprep.subr.mxu0 0.0
    %1907 = vmatpush1.msra.mxu0 %v1887
    %1908 = vmatprep.subr.mxu0 0.0
    %1909 = vmatpush1.msra.mxu0 %v1888
    %1910 = vmatprep.subr.mxu0 0.0
    %1911 = vmatpush1.msra.mxu0 %v1889
    %1912 = vmatprep.subr.mxu0 0.0
    %1913 = vmatpush1.msra.mxu0 %v1890
    %1914 = vmatprep.subr.mxu0 0.0
    %1915 = vmatpush1.msra.mxu0 %v1891
    %1916 = vmatprep.subr.mxu0 0.0
    %1917 = vmatpush1.msra.mxu0 %v1892
    %1918 = vmatprep.subr.mxu0 0.0
    %1919 = vmatpush1.msra.mxu0 %v1893
    %1920 = vmatprep.subr.mxu0 0.0
    %1921 = vmatpush1.msra.mxu0 %v1894
    %1922 = vmatprep.subr.mxu0 0.0
    %1923 = vmatpush1.msra.mxu0 0.0
    %1924 = vmatprep.subr.mxu0 0.0
    %1925 = vmatpush1.msra.mxu0 0.0
    %1926 = vmatprep.subr.mxu0 0.0
    %1927 = vmatpush1.msra.mxu0 0.0
    %1928 = vmatprep.subr.mxu0 0.0
    %1929 = vmatpush1.msra.mxu0 0.0
    %1930 = vmatprep.subr.mxu0 0.0
    %1931 = vmatpush1.msra.mxu0 0.0
    %1932 = vmatprep.subr.mxu0 0.0
    %1933 = vmatpush1.msra.mxu0 0.0
    %1934 = vmatprep.subr.mxu0 0.0
    %1935 = vmatpush1.msra.mxu0 0.0
    %1936 = vmatprep.subr.mxu0 0.0
    %1937 = vmatpush1.msra.mxu0 0.0
    %1938 = vmatprep.subr.mxu0 0.0
    %1939 = vmatpush1.msra.mxu0 0.0
    %1940 = vmatprep.subr.mxu0 0.0
    %1941 = vmatpush1.msra.mxu0 0.0
    %1942 = vmatprep.subr.mxu0 0.0
    %1943 = vmatpush1.msra.mxu0 0.0
    %1944 = vmatprep.subr.mxu0 0.0
    %1945 = vmatpush1.msra.mxu0 0.0
    %1946 = vmatprep.subr.mxu0 0.0
    %1947 = vmatpush1.msra.mxu0 0.0
    %1948 = vmatprep.subr.mxu0 0.0
    %1949 = vmatpush1.msra.mxu0 0.0
    %1950 = vmatprep.subr.mxu0 0.0
    %1951 = vmatpush1.msra.mxu0 0.0
    %1952 = vmatprep.subr.mxu0 0.0
    %1953 = vmatpush1.msra.mxu0 0.0
    %1954 = vmatprep.subr.mxu0 0.0
    %1955 = vmatpush1.msra.mxu0 0.0
    %1956 = vmatprep.subr.mxu0 0.0
    %1957 = vmatpush1.msra.mxu0 0.0
    %1958 = vmatprep.subr.mxu0 0.0
    %1959 = vmatpush1.msra.mxu0 0.0
    %1960 = vmatprep.subr.mxu0 0.0
    %1961 = vmatpush1.msra.mxu0 0.0
    %1962 = vmatprep.subr.mxu0 0.0
    %1963 = vmatpush1.msra.mxu0 0.0
    %1964 = vmatprep.subr.mxu0 0.0
    %1965 = vmatpush1.msra.mxu0 0.0
    %1966 = vmatprep.subr.mxu0 0.0
    %1967 = vmatpush1.msra.mxu0 0.0
    %1968 = vmatprep.subr.mxu0 0.0
    %1969 = vmatpush1.msra.mxu0 0.0
    %1970 = vmatprep.mubr.f32.mxu0 0.0
    %1971 = vmatmul.mubr.f32.gmra.mrb[0].mxu0 %v1901
    %v1972 = vpop.f32.mrb[0].mxu0
    %v1973 = vadd.f32 %v1898, %v1972
    %v1974 = vpop.f32.mrb[0].mxu0
    %1975 = vmatprep.mubr.f32.mxu0 0.0
    %1976 = vmatmul.mubr.f32.gmra.mrb[0].mxu0 %v1904
    %v1977 = vpop.f32.mrb[0].mxu0
    %v1978 = vadd.f32 %v1898, %v1977
    %v1979 = vpop.f32.mrb[0].mxu0
    %1980 = vdwg.mxu0
    %v1981 = vadd.f32 %v1791, %v1973
    %v1982 = vadd.f32 %v1792, %v1978
    %v1983 = vsel %vm182, %v1981, 0.0
    %1984 = vadd.xlane.f32.xlu0 %v1983
    %v1985 = vpop.xlane.xlu0 %1984
    %v1986 = vsel %vm182, %v1982, 0.0
    %1987 = vadd.xlane.f32.xlu0 %v1986
    %v1988 = vpop.xlane.xlu0 %1987
    %v1989 = vmul.f32 %v1985, %v189
    %v1990 = vmul.f32 %v1988, %v189
    %v1991 = vsub.f32 %v1981, %v1989
    %v1992 = vsub.f32 %v1982, %v1990
    %v1993 = vmul.f32 %v1991, %v1991
    %v1994 = vmul.f32 %v1992, %v1992
    %v1995 = vsel %vm182, %v1993, 0.0
    %1996 = vadd.xlane.f32.xlu0 %v1995
    %v1997 = vpop.xlane.xlu0 %1996
    %v1998 = vsel %vm182, %v1994, 0.0
    %1999 = vadd.xlane.f32.xlu0 %v1998
    %v2000 = vpop.xlane.xlu0 %1999
    %v2001 = vmul.f32 %v1997, %v189
    %v2002 = vmul.f32 %v2000, %v189
    %v2003 = vadd.f32 %v2001, 1e-05
    %v2004 = vadd.f32 %v2002, 1e-05
    %v2005 = vrsqrt.pop %v2003
    %v2006 = vrsqrt.pop %v2004
    %v2007 = vmul.f32 %v1991, %v2005
    %v2008 = vmul.f32 %v1992, %v2006
    %v2009 = vlaneseq
    %v2010 = vshrl.u32 %v2009, 7
    %v2011 = vsub.s32 4, %v2010
    %v2012 = vrot.slane %v85, %v2011
    %v2013 = vmul.f32 %v2007, %v2012
    %v2014 = vmul.f32 %v2008, %v2012
    %v2015 = vlaneseq
    %v2016 = vshrl.u32 %v2015, 7
    %v2017 = vsub.s32 5, %v2016
    %v2018 = vrot.slane %v85, %v2017
    %v2019 = vadd.f32 %v2013, %v2018
    %v2020 = vadd.f32 %v2014, %v2018
    %s2021 = scalar_lea.vmem %s4, 32
    %v2022 = vld [vmem:[%s2021] sm:$0xff]
    %v2023 = vld [vmem:[%s2021 + $0x8] sm:$0xff]
    %v2024 = vld [vmem:[%s2021 + $0x10] sm:$0xff]
    %v2025 = vld [vmem:[%s2021 + $0x18] sm:$0xff]
    %s2026 = scalar_lea.vmem [#allocation5], 1
    %v2027 = vld [vmem:[%s2026] sm:$0x1]
    %v2029 = vlaneseq
    %v2030 = vshrl.u32 %v2029, 7
    %v2031 = vsub.s32 0, %v2030
    %v2032 = vrot.slane %v2027, %v2031
    %v2035 = vsel %vm182, %v2019, 0
    %v2038 = vsel %vm182, %v2020, 0
    %2040 = vmatprep.subr.mxu0 0.0
    %2041 = vmatpush1.msra.mxu0 %v2022
    %2042 = vmatprep.subr.mxu0 0.0
    %2043 = vmatpush1.msra.mxu0 %v2023
    %2044 = vmatprep.subr.mxu0 0.0
    %2045 = vmatpush1.msra.mxu0 %v2024
    %2046 = vmatprep.subr.mxu0 0.0
    %2047 = vmatpush1.msra.mxu0 %v2025
    %2048 = vmatprep.subr.mxu0 0.0
    %2049 = vmatpush1.msra.mxu0 0.0
    %2050 = vmatprep.subr.mxu0 0.0
    %2051 = vmatpush1.msra.mxu0 0.0
    %2052 = vmatprep.subr.mxu0 0.0
    %2053 = vmatpush1.msra.mxu0 0.0
    %2054 = vmatprep.subr.mxu0 0.0
    %2055 = vmatpush1.msra.mxu0 0.0
    %2056 = vmatprep.subr.mxu0 0.0
    %2057 = vmatpush1.msra.mxu0 0.0
    %2058 = vmatprep.subr.mxu0 0.0
    %2059 = vmatpush1.msra.mxu0 0.0
    %2060 = vmatprep.subr.mxu0 0.0
    %2061 = vmatpush1.msra.mxu0 0.0
    %2062 = vmatprep.subr.mxu0 0.0
    %2063 = vmatpush1.msra.mxu0 0.0
    %2064 = vmatprep.subr.mxu0 0.0
    %2065 = vmatpush1.msra.mxu0 0.0
    %2066 = vmatprep.subr.mxu0 0.0
    %2067 = vmatpush1.msra.mxu0 0.0
    %2068 = vmatprep.subr.mxu0 0.0
    %2069 = vmatpush1.msra.mxu0 0.0
    %2070 = vmatprep.subr.mxu0 0.0
    %2071 = vmatpush1.msra.mxu0 0.0
    %2072 = vmatprep.subr.mxu0 0.0
    %2073 = vmatpush1.msra.mxu0 0.0
    %2074 = vmatprep.subr.mxu0 0.0
    %2075 = vmatpush1.msra.mxu0 0.0
    %2076 = vmatprep.subr.mxu0 0.0
    %2077 = vmatpush1.msra.mxu0 0.0
    %2078 = vmatprep.subr.mxu0 0.0
    %2079 = vmatpush1.msra.mxu0 0.0
    %2080 = vmatprep.subr.mxu0 0.0
    %2081 = vmatpush1.msra.mxu0 0.0
    %2082 = vmatprep.subr.mxu0 0.0
    %2083 = vmatpush1.msra.mxu0 0.0
    %2084 = vmatprep.subr.mxu0 0.0
    %2085 = vmatpush1.msra.mxu0 0.0
    %2086 = vmatprep.subr.mxu0 0.0
    %2087 = vmatpush1.msra.mxu0 0.0
    %2088 = vmatprep.subr.mxu0 0.0
    %2089 = vmatpush1.msra.mxu0 0.0
    %2090 = vmatprep.subr.mxu0 0.0
    %2091 = vmatpush1.msra.mxu0 0.0
    %2092 = vmatprep.subr.mxu0 0.0
    %2093 = vmatpush1.msra.mxu0 0.0
    %2094 = vmatprep.subr.mxu0 0.0
    %2095 = vmatpush1.msra.mxu0 0.0
    %2096 = vmatprep.subr.mxu0 0.0
    %2097 = vmatpush1.msra.mxu0 0.0
    %2098 = vmatprep.subr.mxu0 0.0
    %2099 = vmatpush1.msra.mxu0 0.0
    %2100 = vmatprep.subr.mxu0 0.0
    %2101 = vmatpush1.msra.mxu0 0.0
    %2102 = vmatprep.subr.mxu0 0.0
    %2103 = vmatpush1.msra.mxu0 0.0
    %2104 = vmatprep.mubr.f32.mxu0 0.0
    %2105 = vmatmul.mubr.f32.gmra.mrb[0].mxu0 %v2035
    %v2106 = vpop.f32.mrb[0].mxu0
    %v2107 = vadd.f32 %v2032, %v2106
    %v2108 = vpop.f32.mrb[0].mxu0
    %2109 = vmatprep.mubr.f32.mxu0 0.0
    %2110 = vmatmul.mubr.f32.gmra.mrb[0].mxu0 %v2038
    %v2111 = vpop.f32.mrb[0].mxu0
    %v2112 = vadd.f32 %v2032, %v2111
    %v2113 = vpop.f32.mrb[0].mxu0
    %2114 = vdwg.mxu0
    %2116 = vrot.lane.b32.xlu0 %v2107, 96
    %v2117 = vpop.permute.xlu0 %2116
    %v2118 = vsel %vm317, %v2107, 0
    %v2120 = vsel %vm317, %v2117, 0
    %2122 = vmatprep.subr.mxu0 0.0
    %2123 = vmatpush1.xpose.msra.mxu0 %v2120
    %2124 = vmatprep.subr.mxu0 0.0
    %2125 = vmatpush1.xpose.msra.mxu0 0.0
    %2126 = vmatprep.subr.mxu0 0.0
    %2127 = vmatpush1.xpose.msra.mxu0 0.0
    %2128 = vmatprep.subr.mxu0 0.0
    %2129 = vmatpush1.xpose.msra.mxu0 0.0
    %2130 = vmatprep.subr.mxu0 0.0
    %2131 = vmatpush1.xpose.msra.mxu0 0.0
    %2132 = vmatprep.subr.mxu0 0.0
    %2133 = vmatpush1.xpose.msra.mxu0 0.0
    %2134 = vmatprep.subr.mxu0 0.0
    %2135 = vmatpush1.xpose.msra.mxu0 0.0
    %2136 = vmatprep.subr.mxu0 0.0
    %2137 = vmatpush1.xpose.msra.mxu0 0.0
    %2138 = vmatprep.subr.mxu0 0.0
    %2139 = vmatpush1.xpose.msra.mxu0 0.0
    %2140 = vmatprep.subr.mxu0 0.0
    %2141 = vmatpush1.xpose.msra.mxu0 0.0
    %2142 = vmatprep.subr.mxu0 0.0
    %2143 = vmatpush1.xpose.msra.mxu0 0.0
    %2144 = vmatprep.subr.mxu0 0.0
    %2145 = vmatpush1.xpose.msra.mxu0 0.0
    %2146 = vmatprep.subr.mxu0 0.0
    %2147 = vmatpush1.xpose.msra.mxu0 0.0
    %2148 = vmatprep.subr.mxu0 0.0
    %2149 = vmatpush1.xpose.msra.mxu0 0.0
    %2150 = vmatprep.subr.mxu0 0.0
    %2151 = vmatpush1.xpose.msra.mxu0 0.0
    %2152 = vmatprep.subr.mxu0 0.0
    %2153 = vmatpush1.xpose.msra.mxu0 0.0
    %2154 = vmatprep.subr.mxu0 0.0
    %2155 = vmatpush1.xpose.msra.mxu0 0.0
    %2156 = vmatprep.subr.mxu0 0.0
    %2157 = vmatpush1.xpose.msra.mxu0 0.0
    %2158 = vmatprep.subr.mxu0 0.0
    %2159 = vmatpush1.xpose.msra.mxu0 0.0
    %2160 = vmatprep.subr.mxu0 0.0
    %2161 = vmatpush1.xpose.msra.mxu0 0.0
    %2162 = vmatprep.subr.mxu0 0.0
    %2163 = vmatpush1.xpose.msra.mxu0 0.0
    %2164 = vmatprep.subr.mxu0 0.0
    %2165 = vmatpush1.xpose.msra.mxu0 0.0
    %2166 = vmatprep.subr.mxu0 0.0
    %2167 = vmatpush1.xpose.msra.mxu0 0.0
    %2168 = vmatprep.subr.mxu0 0.0
    %2169 = vmatpush1.xpose.msra.mxu0 0.0
    %2170 = vmatprep.subr.mxu0 0.0
    %2171 = vmatpush1.xpose.msra.mxu0 0.0
    %2172 = vmatprep.subr.mxu0 0.0
    %2173 = vmatpush1.xpose.msra.mxu0 0.0
    %2174 = vmatprep.subr.mxu0 0.0
    %2175 = vmatpush1.xpose.msra.mxu0 0.0
    %2176 = vmatprep.subr.mxu0 0.0
    %2177 = vmatpush1.xpose.msra.mxu0 0.0
    %2178 = vmatprep.subr.mxu0 0.0
    %2179 = vmatpush1.xpose.msra.mxu0 0.0
    %2180 = vmatprep.subr.mxu0 0.0
    %2181 = vmatpush1.xpose.msra.mxu0 0.0
    %2182 = vmatprep.subr.mxu0 0.0
    %2183 = vmatpush1.xpose.msra.mxu0 0.0
    %2184 = vmatprep.subr.mxu0 0.0
    %2185 = vmatpush1.xpose.msra.mxu0 0.0
    %2186 = vmatprep.mubr.f32.mxu0 0.0
    %2187 = vmatmul.mubr.f32.gmra.mrb[0].mxu0 %v2118
    %v2188 = vpop.f32.mrb[0].mxu0
    %v2189 = vadd.f32 0.0, %v2188
    %v2190 = vpop.f32.mrb[0].mxu0
    %2191 = vdwg.mxu0
    %2193 = vrot.lane.b32.xlu0 %v2112, 96
    %v2194 = vpop.permute.xlu0 %2193
    %v2195 = vsel %vm317, %v2112, 0
    %v2197 = vsel %vm317, %v2194, 0
    %2199 = vmatprep.subr.mxu0 0.0
    %2200 = vmatpush1.xpose.msra.mxu0 %v2197
    %2201 = vmatprep.subr.mxu0 0.0
    %2202 = vmatpush1.xpose.msra.mxu0 0.0
    %2203 = vmatprep.subr.mxu0 0.0
    %2204 = vmatpush1.xpose.msra.mxu0 0.0
    %2205 = vmatprep.subr.mxu0 0.0
    %2206 = vmatpush1.xpose.msra.mxu0 0.0
    %2207 = vmatprep.subr.mxu0 0.0
    %2208 = vmatpush1.xpose.msra.mxu0 0.0
    %2209 = vmatprep.subr.mxu0 0.0
    %2210 = vmatpush1.xpose.msra.mxu0 0.0
    %2211 = vmatprep.subr.mxu0 0.0
    %2212 = vmatpush1.xpose.msra.mxu0 0.0
    %2213 = vmatprep.subr.mxu0 0.0
    %2214 = vmatpush1.xpose.msra.mxu0 0.0
    %2215 = vmatprep.subr.mxu0 0.0
    %2216 = vmatpush1.xpose.msra.mxu0 0.0
    %2217 = vmatprep.subr.mxu0 0.0
    %2218 = vmatpush1.xpose.msra.mxu0 0.0
    %2219 = vmatprep.subr.mxu0 0.0
    %2220 = vmatpush1.xpose.msra.mxu0 0.0
    %2221 = vmatprep.subr.mxu0 0.0
    %2222 = vmatpush1.xpose.msra.mxu0 0.0
    %2223 = vmatprep.subr.mxu0 0.0
    %2224 = vmatpush1.xpose.msra.mxu0 0.0
    %2225 = vmatprep.subr.mxu0 0.0
    %2226 = vmatpush1.xpose.msra.mxu0 0.0
    %2227 = vmatprep.subr.mxu0 0.0
    %2228 = vmatpush1.xpose.msra.mxu0 0.0
    %2229 = vmatprep.subr.mxu0 0.0
    %2230 = vmatpush1.xpose.msra.mxu0 0.0
    %2231 = vmatprep.subr.mxu0 0.0
    %2232 = vmatpush1.xpose.msra.mxu0 0.0
    %2233 = vmatprep.subr.mxu0 0.0
    %2234 = vmatpush1.xpose.msra.mxu0 0.0
    %2235 = vmatprep.subr.mxu0 0.0
    %2236 = vmatpush1.xpose.msra.mxu0 0.0
    %2237 = vmatprep.subr.mxu0 0.0
    %2238 = vmatpush1.xpose.msra.mxu0 0.0
    %2239 = vmatprep.subr.mxu0 0.0
    %2240 = vmatpush1.xpose.msra.mxu0 0.0
    %2241 = vmatprep.subr.mxu0 0.0
    %2242 = vmatpush1.xpose.msra.mxu0 0.0
    %2243 = vmatprep.subr.mxu0 0.0
    %2244 = vmatpush1.xpose.msra.mxu0 0.0
    %2245 = vmatprep.subr.mxu0 0.0
    %2246 = vmatpush1.xpose.msra.mxu0 0.0
    %2247 = vmatprep.subr.mxu0 0.0
    %2248 = vmatpush1.xpose.msra.mxu0 0.0
    %2249 = vmatprep.subr.mxu0 0.0
    %2250 = vmatpush1.xpose.msra.mxu0 0.0
    %2251 = vmatprep.subr.mxu0 0.0
    %2252 = vmatpush1.xpose.msra.mxu0 0.0
    %2253 = vmatprep.subr.mxu0 0.0
    %2254 = vmatpush1.xpose.msra.mxu0 0.0
    %2255 = vmatprep.subr.mxu0 0.0
    %2256 = vmatpush1.xpose.msra.mxu0 0.0
    %2257 = vmatprep.subr.mxu0 0.0
    %2258 = vmatpush1.xpose.msra.mxu0 0.0
    %2259 = vmatprep.subr.mxu0 0.0
    %2260 = vmatpush1.xpose.msra.mxu0 0.0
    %2261 = vmatprep.subr.mxu0 0.0
    %2262 = vmatpush1.xpose.msra.mxu0 0.0
    %2263 = vmatprep.mubr.f32.mxu0 0.0
    %2264 = vmatmul.mubr.f32.gmra.mrb[0].mxu0 %v2195
    %v2265 = vpop.f32.mrb[0].mxu0
    %v2266 = vadd.f32 0.0, %v2265
    %v2267 = vpop.f32.mrb[0].mxu0
    %2268 = vdwg.mxu0
    %v2269 = vsel %vm317, %v2189, -inf
    %2270 = vmax.xlane.f32.xlu0 %v2269
    %v2271 = vpop.xlane.xlu0 %2270
    %v2272 = vsel %vm317, %v2266, -inf
    %2273 = vmax.xlane.f32.xlu0 %v2272
    %v2274 = vpop.xlane.xlu0 %2273
    %v2275 = vsub.f32 %v2189, %v2271
    %v2276 = vsub.f32 %v2266, %v2274
    %v2277 = vmul.f32 %v2275, 1.442695
    %v2278 = vpow.pop %v2277
    %v2279 = vmul.f32 %v2276, 1.442695
    %v2280 = vpow.pop %v2279
    %v2281 = vsel %vm317, %v2278, 0.0
    %2282 = vadd.xlane.f32.xlu0 %v2281
    %v2283 = vpop.xlane.xlu0 %2282
    %v2284 = vsel %vm317, %v2280, 0.0
    %2285 = vadd.xlane.f32.xlu0 %v2284
    %v2286 = vpop.xlane.xlu0 %2285
    %v2287 = vrcp.pop %v2283
    %v2288 = vrcp.pop %v2286
    %v2289 = vmul.f32 %v2278, %v2287
    %v2290 = vmul.f32 %v2280, %v2288
    %2291 = vrot.lane.b32.xlu0 %v2107, 64
    %v2292 = vpop.permute.xlu0 %2291
    %v2295 = vsel %vm317, %v2289, 0
    %2297 = vmatprep.subr.mxu0 0.0
    %2298 = vmatpush1.msra.mxu0 %v2292
    %2299 = vmatprep.subr.mxu0 0.0
    %2300 = vmatpush1.msra.mxu0 0.0
    %2301 = vmatprep.subr.mxu0 0.0
    %2302 = vmatpush1.msra.mxu0 0.0
    %2303 = vmatprep.subr.mxu0 0.0
    %2304 = vmatpush1.msra.mxu0 0.0
    %2305 = vmatprep.subr.mxu0 0.0
    %2306 = vmatpush1.msra.mxu0 0.0
    %2307 = vmatprep.subr.mxu0 0.0
    %2308 = vmatpush1.msra.mxu0 0.0
    %2309 = vmatprep.subr.mxu0 0.0
    %2310 = vmatpush1.msra.mxu0 0.0
    %2311 = vmatprep.subr.mxu0 0.0
    %2312 = vmatpush1.msra.mxu0 0.0
    %2313 = vmatprep.subr.mxu0 0.0
    %2314 = vmatpush1.msra.mxu0 0.0
    %2315 = vmatprep.subr.mxu0 0.0
    %2316 = vmatpush1.msra.mxu0 0.0
    %2317 = vmatprep.subr.mxu0 0.0
    %2318 = vmatpush1.msra.mxu0 0.0
    %2319 = vmatprep.subr.mxu0 0.0
    %2320 = vmatpush1.msra.mxu0 0.0
    %2321 = vmatprep.subr.mxu0 0.0
    %2322 = vmatpush1.msra.mxu0 0.0
    %2323 = vmatprep.subr.mxu0 0.0
    %2324 = vmatpush1.msra.mxu0 0.0
    %2325 = vmatprep.subr.mxu0 0.0
    %2326 = vmatpush1.msra.mxu0 0.0
    %2327 = vmatprep.subr.mxu0 0.0
    %2328 = vmatpush1.msra.mxu0 0.0
    %2329 = vmatprep.subr.mxu0 0.0
    %2330 = vmatpush1.msra.mxu0 0.0
    %2331 = vmatprep.subr.mxu0 0.0
    %2332 = vmatpush1.msra.mxu0 0.0
    %2333 = vmatprep.subr.mxu0 0.0
    %2334 = vmatpush1.msra.mxu0 0.0
    %2335 = vmatprep.subr.mxu0 0.0
    %2336 = vmatpush1.msra.mxu0 0.0
    %2337 = vmatprep.subr.mxu0 0.0
    %2338 = vmatpush1.msra.mxu0 0.0
    %2339 = vmatprep.subr.mxu0 0.0
    %2340 = vmatpush1.msra.mxu0 0.0
    %2341 = vmatprep.subr.mxu0 0.0
    %2342 = vmatpush1.msra.mxu0 0.0
    %2343 = vmatprep.subr.mxu0 0.0
    %2344 = vmatpush1.msra.mxu0 0.0
    %2345 = vmatprep.subr.mxu0 0.0
    %2346 = vmatpush1.msra.mxu0 0.0
    %2347 = vmatprep.subr.mxu0 0.0
    %2348 = vmatpush1.msra.mxu0 0.0
    %2349 = vmatprep.subr.mxu0 0.0
    %2350 = vmatpush1.msra.mxu0 0.0
    %2351 = vmatprep.subr.mxu0 0.0
    %2352 = vmatpush1.msra.mxu0 0.0
    %2353 = vmatprep.subr.mxu0 0.0
    %2354 = vmatpush1.msra.mxu0 0.0
    %2355 = vmatprep.subr.mxu0 0.0
    %2356 = vmatpush1.msra.mxu0 0.0
    %2357 = vmatprep.subr.mxu0 0.0
    %2358 = vmatpush1.msra.mxu0 0.0
    %2359 = vmatprep.subr.mxu0 0.0
    %2360 = vmatpush1.msra.mxu0 0.0
    %2361 = vmatprep.mubr.f32.mxu0 0.0
    %2362 = vmatmul.mubr.f32.gmra.mrb[0].mxu0 %v2295
    %v2363 = vpop.f32.mrb[0].mxu0
    %v2364 = vadd.f32 0.0, %v2363
    %v2365 = vpop.f32.mrb[0].mxu0
    %2366 = vdwg.mxu0
    %2367 = vrot.lane.b32.xlu0 %v2112, 64
    %v2368 = vpop.permute.xlu0 %2367
    %v2371 = vsel %vm317, %v2290, 0
    %2373 = vmatprep.subr.mxu0 0.0
    %2374 = vmatpush1.msra.mxu0 %v2368
    %2375 = vmatprep.subr.mxu0 0.0
    %2376 = vmatpush1.msra.mxu0 0.0
    %2377 = vmatprep.subr.mxu0 0.0
    %2378 = vmatpush1.msra.mxu0 0.0
    %2379 = vmatprep.subr.mxu0 0.0
    %2380 = vmatpush1.msra.mxu0 0.0
    %2381 = vmatprep.subr.mxu0 0.0
    %2382 = vmatpush1.msra.mxu0 0.0
    %2383 = vmatprep.subr.mxu0 0.0
    %2384 = vmatpush1.msra.mxu0 0.0
    %2385 = vmatprep.subr.mxu0 0.0
    %2386 = vmatpush1.msra.mxu0 0.0
    %2387 = vmatprep.subr.mxu0 0.0
    %2388 = vmatpush1.msra.mxu0 0.0
    %2389 = vmatprep.subr.mxu0 0.0
    %2390 = vmatpush1.msra.mxu0 0.0
    %2391 = vmatprep.subr.mxu0 0.0
    %2392 = vmatpush1.msra.mxu0 0.0
    %2393 = vmatprep.subr.mxu0 0.0
    %2394 = vmatpush1.msra.mxu0 0.0
    %2395 = vmatprep.subr.mxu0 0.0
    %2396 = vmatpush1.msra.mxu0 0.0
    %2397 = vmatprep.subr.mxu0 0.0
    %2398 = vmatpush1.msra.mxu0 0.0
    %2399 = vmatprep.subr.mxu0 0.0
    %2400 = vmatpush1.msra.mxu0 0.0
    %2401 = vmatprep.subr.mxu0 0.0
    %2402 = vmatpush1.msra.mxu0 0.0
    %2403 = vmatprep.subr.mxu0 0.0
    %2404 = vmatpush1.msra.mxu0 0.0
    %2405 = vmatprep.subr.mxu0 0.0
    %2406 = vmatpush1.msra.mxu0 0.0
    %2407 = vmatprep.subr.mxu0 0.0
    %2408 = vmatpush1.msra.mxu0 0.0
    %2409 = vmatprep.subr.mxu0 0.0
    %2410 = vmatpush1.msra.mxu0 0.0
    %2411 = vmatprep.subr.mxu0 0.0
    %2412 = vmatpush1.msra.mxu0 0.0
    %2413 = vmatprep.subr.mxu0 0.0
    %2414 = vmatpush1.msra.mxu0 0.0
    %2415 = vmatprep.subr.mxu0 0.0
    %2416 = vmatpush1.msra.mxu0 0.0
    %2417 = vmatprep.subr.mxu0 0.0
    %2418 = vmatpush1.msra.mxu0 0.0
    %2419 = vmatprep.subr.mxu0 0.0
    %2420 = vmatpush1.msra.mxu0 0.0
    %2421 = vmatprep.subr.mxu0 0.0
    %2422 = vmatpush1.msra.mxu0 0.0
    %2423 = vmatprep.subr.mxu0 0.0
    %2424 = vmatpush1.msra.mxu0 0.0
    %2425 = vmatprep.subr.mxu0 0.0
    %2426 = vmatpush1.msra.mxu0 0.0
    %2427 = vmatprep.subr.mxu0 0.0
    %2428 = vmatpush1.msra.mxu0 0.0
    %2429 = vmatprep.subr.mxu0 0.0
    %2430 = vmatpush1.msra.mxu0 0.0
    %2431 = vmatprep.subr.mxu0 0.0
    %2432 = vmatpush1.msra.mxu0 0.0
    %2433 = vmatprep.subr.mxu0 0.0
    %2434 = vmatpush1.msra.mxu0 0.0
    %2435 = vmatprep.subr.mxu0 0.0
    %2436 = vmatpush1.msra.mxu0 0.0
    %2437 = vmatprep.mubr.f32.mxu0 0.0
    %2438 = vmatmul.mubr.f32.gmra.mrb[0].mxu0 %v2371
    %v2439 = vpop.f32.mrb[0].mxu0
    %v2440 = vadd.f32 0.0, %v2439
    %v2441 = vpop.f32.mrb[0].mxu0
    %2442 = vdwg.mxu0
    %2443 = vrot.lane.b32.xlu0 %v2107, 120
    %v2444 = vpop.permute.xlu0 %2443
    %2445 = vrot.lane.b32.xlu0 %v2107, 88
    %v2446 = vpop.permute.xlu0 %2445
    %v2447 = vsel %vm317, %v2444, 0
    %v2449 = vsel %vm317, %v2446, 0
    %2451 = vmatprep.subr.mxu0 0.0
    %2452 = vmatpush1.xpose.msra.mxu0 %v2449
    %2453 = vmatprep.subr.mxu0 0.0
    %2454 = vmatpush1.xpose.msra.mxu0 0.0
    %2455 = vmatprep.subr.mxu0 0.0
    %2456 = vmatpush1.xpose.msra.mxu0 0.0
    %2457 = vmatprep.subr.mxu0 0.0
    %2458 = vmatpush1.xpose.msra.mxu0 0.0
    %2459 = vmatprep.subr.mxu0 0.0
    %2460 = vmatpush1.xpose.msra.mxu0 0.0
    %2461 = vmatprep.subr.mxu0 0.0
    %2462 = vmatpush1.xpose.msra.mxu0 0.0
    %2463 = vmatprep.subr.mxu0 0.0
    %2464 = vmatpush1.xpose.msra.mxu0 0.0
    %2465 = vmatprep.subr.mxu0 0.0
    %2466 = vmatpush1.xpose.msra.mxu0 0.0
    %2467 = vmatprep.subr.mxu0 0.0
    %2468 = vmatpush1.xpose.msra.mxu0 0.0
    %2469 = vmatprep.subr.mxu0 0.0
    %2470 = vmatpush1.xpose.msra.mxu0 0.0
    %2471 = vmatprep.subr.mxu0 0.0
    %2472 = vmatpush1.xpose.msra.mxu0 0.0
    %2473 = vmatprep.subr.mxu0 0.0
    %2474 = vmatpush1.xpose.msra.mxu0 0.0
    %2475 = vmatprep.subr.mxu0 0.0
    %2476 = vmatpush1.xpose.msra.mxu0 0.0
    %2477 = vmatprep.subr.mxu0 0.0
    %2478 = vmatpush1.xpose.msra.mxu0 0.0
    %2479 = vmatprep.subr.mxu0 0.0
    %2480 = vmatpush1.xpose.msra.mxu0 0.0
    %2481 = vmatprep.subr.mxu0 0.0
    %2482 = vmatpush1.xpose.msra.mxu0 0.0
    %2483 = vmatprep.subr.mxu0 0.0
    %2484 = vmatpush1.xpose.msra.mxu0 0.0
    %2485 = vmatprep.subr.mxu0 0.0
    %2486 = vmatpush1.xpose.msra.mxu0 0.0
    %2487 = vmatprep.subr.mxu0 0.0
    %2488 = vmatpush1.xpose.msra.mxu0 0.0
    %2489 = vmatprep.subr.mxu0 0.0
    %2490 = vmatpush1.xpose.msra.mxu0 0.0
    %2491 = vmatprep.subr.mxu0 0.0
    %2492 = vmatpush1.xpose.msra.mxu0 0.0
    %2493 = vmatprep.subr.mxu0 0.0
    %2494 = vmatpush1.xpose.msra.mxu0 0.0
    %2495 = vmatprep.subr.mxu0 0.0
    %2496 = vmatpush1.xpose.msra.mxu0 0.0
    %2497 = vmatprep.subr.mxu0 0.0
    %2498 = vmatpush1.xpose.msra.mxu0 0.0
    %2499 = vmatprep.subr.mxu0 0.0
    %2500 = vmatpush1.xpose.msra.mxu0 0.0
    %2501 = vmatprep.subr.mxu0 0.0
    %2502 = vmatpush1.xpose.msra.mxu0 0.0
    %2503 = vmatprep.subr.mxu0 0.0
    %2504 = vmatpush1.xpose.msra.mxu0 0.0
    %2505 = vmatprep.subr.mxu0 0.0
    %2506 = vmatpush1.xpose.msra.mxu0 0.0
    %2507 = vmatprep.subr.mxu0 0.0
    %2508 = vmatpush1.xpose.msra.mxu0 0.0
    %2509 = vmatprep.subr.mxu0 0.0
    %2510 = vmatpush1.xpose.msra.mxu0 0.0
    %2511 = vmatprep.subr.mxu0 0.0
    %2512 = vmatpush1.xpose.msra.mxu0 0.0
    %2513 = vmatprep.subr.mxu0 0.0
    %2514 = vmatpush1.xpose.msra.mxu0 0.0
    %2515 = vmatprep.mubr.f32.mxu0 0.0
    %2516 = vmatmul.mubr.f32.gmra.mrb[0].mxu0 %v2447
    %v2517 = vpop.f32.mrb[0].mxu0
    %v2518 = vadd.f32 0.0, %v2517
    %v2519 = vpop.f32.mrb[0].mxu0
    %2520 = vdwg.mxu0
    %2521 = vrot.lane.b32.xlu0 %v2112, 120
    %v2522 = vpop.permute.xlu0 %2521
    %2523 = vrot.lane.b32.xlu0 %v2112, 88
    %v2524 = vpop.permute.xlu0 %2523
    %v2525 = vsel %vm317, %v2522, 0
    %v2527 = vsel %vm317, %v2524, 0
    %2529 = vmatprep.subr.mxu0 0.0
    %2530 = vmatpush1.xpose.msra.mxu0 %v2527
    %2531 = vmatprep.subr.mxu0 0.0
    %2532 = vmatpush1.xpose.msra.mxu0 0.0
    %2533 = vmatprep.subr.mxu0 0.0
    %2534 = vmatpush1.xpose.msra.mxu0 0.0
    %2535 = vmatprep.subr.mxu0 0.0
    %2536 = vmatpush1.xpose.msra.mxu0 0.0
    %2537 = vmatprep.subr.mxu0 0.0
    %2538 = vmatpush1.xpose.msra.mxu0 0.0
    %2539 = vmatprep.subr.mxu0 0.0
    %2540 = vmatpush1.xpose.msra.mxu0 0.0
    %2541 = vmatprep.subr.mxu0 0.0
    %2542 = vmatpush1.xpose.msra.mxu0 0.0
    %2543 = vmatprep.subr.mxu0 0.0
    %2544 = vmatpush1.xpose.msra.mxu0 0.0
    %2545 = vmatprep.subr.mxu0 0.0
    %2546 = vmatpush1.xpose.msra.mxu0 0.0
    %2547 = vmatprep.subr.mxu0 0.0
    %2548 = vmatpush1.xpose.msra.mxu0 0.0
    %2549 = vmatprep.subr.mxu0 0.0
    %2550 = vmatpush1.xpose.msra.mxu0 0.0
    %2551 = vmatprep.subr.mxu0 0.0
    %2552 = vmatpush1.xpose.msra.mxu0 0.0
    %2553 = vmatprep.subr.mxu0 0.0
    %2554 = vmatpush1.xpose.msra.mxu0 0.0
    %2555 = vmatprep.subr.mxu0 0.0
    %2556 = vmatpush1.xpose.msra.mxu0 0.0
    %2557 = vmatprep.subr.mxu0 0.0
    %2558 = vmatpush1.xpose.msra.mxu0 0.0
    %2559 = vmatprep.subr.mxu0 0.0
    %2560 = vmatpush1.xpose.msra.mxu0 0.0
    %2561 = vmatprep.subr.mxu0 0.0
    %2562 = vmatpush1.xpose.msra.mxu0 0.0
    %2563 = vmatprep.subr.mxu0 0.0
    %2564 = vmatpush1.xpose.msra.mxu0 0.0
    %2565 = vmatprep.subr.mxu0 0.0
    %2566 = vmatpush1.xpose.msra.mxu0 0.0
    %2567 = vmatprep.subr.mxu0 0.0
    %2568 = vmatpush1.xpose.msra.mxu0 0.0
    %2569 = vmatprep.subr.mxu0 0.0
    %2570 = vmatpush1.xpose.msra.mxu0 0.0
    %2571 = vmatprep.subr.mxu0 0.0
    %2572 = vmatpush1.xpose.msra.mxu0 0.0
    %2573 = vmatprep.subr.mxu0 0.0
    %2574 = vmatpush1.xpose.msra.mxu0 0.0
    %2575 = vmatprep.subr.mxu0 0.0
    %2576 = vmatpush1.xpose.msra.mxu0 0.0
    %2577 = vmatprep.subr.mxu0 0.0
    %2578 = vmatpush1.xpose.msra.mxu0 0.0
    %2579 = vmatprep.subr.mxu0 0.0
    %2580 = vmatpush1.xpose.msra.mxu0 0.0
    %2581 = vmatprep.subr.mxu0 0.0
    %2582 = vmatpush1.xpose.msra.mxu0 0.0
    %2583 = vmatprep.subr.mxu0 0.0
    %2584 = vmatpush1.xpose.msra.mxu0 0.0
    %2585 = vmatprep.subr.mxu0 0.0
    %2586 = vmatpush1.xpose.msra.mxu0 0.0
    %2587 = vmatprep.subr.mxu0 0.0
    %2588 = vmatpush1.xpose.msra.mxu0 0.0
    %2589 = vmatprep.subr.mxu0 0.0
    %2590 = vmatpush1.xpose.msra.mxu0 0.0
    %2591 = vmatprep.subr.mxu0 0.0
    %2592 = vmatpush1.xpose.msra.mxu0 0.0
    %2593 = vmatprep.mubr.f32.mxu0 0.0
    %2594 = vmatmul.mubr.f32.gmra.mrb[0].mxu0 %v2525
    %v2595 = vpop.f32.mrb[0].mxu0
    %v2596 = vadd.f32 0.0, %v2595
    %v2597 = vpop.f32.mrb[0].mxu0
    %2598 = vdwg.mxu0
    %v2599 = vsel %vm317, %v2518, -inf
    %2600 = vmax.xlane.f32.xlu0 %v2599
    %v2601 = vpop.xlane.xlu0 %2600
    %v2602 = vsel %vm317, %v2596, -inf
    %2603 = vmax.xlane.f32.xlu0 %v2602
    %v2604 = vpop.xlane.xlu0 %2603
    %v2605 = vsub.f32 %v2518, %v2601
    %v2606 = vsub.f32 %v2596, %v2604
    %v2607 = vmul.f32 %v2605, 1.442695
    %v2608 = vpow.pop %v2607
    %v2609 = vmul.f32 %v2606, 1.442695
    %v2610 = vpow.pop %v2609
    %v2611 = vsel %vm317, %v2608, 0.0
    %2612 = vadd.xlane.f32.xlu0 %v2611
    %v2613 = vpop.xlane.xlu0 %2612
    %v2614 = vsel %vm317, %v2610, 0.0
    %2615 = vadd.xlane.f32.xlu0 %v2614
    %v2616 = vpop.xlane.xlu0 %2615
    %v2617 = vrcp.pop %v2613
    %v2618 = vrcp.pop %v2616
    %v2619 = vmul.f32 %v2608, %v2617
    %v2620 = vmul.f32 %v2610, %v2618
    %2621 = vrot.lane.b32.xlu0 %v2107, 56
    %v2622 = vpop.permute.xlu0 %2621
    %v2625 = vsel %vm317, %v2619, 0
    %2627 = vmatprep.subr.mxu0 0.0
    %2628 = vmatpush1.msra.mxu0 %v2622
    %2629 = vmatprep.subr.mxu0 0.0
    %2630 = vmatpush1.msra.mxu0 0.0
    %2631 = vmatprep.subr.mxu0 0.0
    %2632 = vmatpush1.msra.mxu0 0.0
    %2633 = vmatprep.subr.mxu0 0.0
    %2634 = vmatpush1.msra.mxu0 0.0
    %2635 = vmatprep.subr.mxu0 0.0
    %2636 = vmatpush1.msra.mxu0 0.0
    %2637 = vmatprep.subr.mxu0 0.0
    %2638 = vmatpush1.msra.mxu0 0.0
    %2639 = vmatprep.subr.mxu0 0.0
    %2640 = vmatpush1.msra.mxu0 0.0
    %2641 = vmatprep.subr.mxu0 0.0
    %2642 = vmatpush1.msra.mxu0 0.0
    %2643 = vmatprep.subr.mxu0 0.0
    %2644 = vmatpush1.msra.mxu0 0.0
    %2645 = vmatprep.subr.mxu0 0.0
    %2646 = vmatpush1.msra.mxu0 0.0
    %2647 = vmatprep.subr.mxu0 0.0
    %2648 = vmatpush1.msra.mxu0 0.0
    %2649 = vmatprep.subr.mxu0 0.0
    %2650 = vmatpush1.msra.mxu0 0.0
    %2651 = vmatprep.subr.mxu0 0.0
    %2652 = vmatpush1.msra.mxu0 0.0
    %2653 = vmatprep.subr.mxu0 0.0
    %2654 = vmatpush1.msra.mxu0 0.0
    %2655 = vmatprep.subr.mxu0 0.0
    %2656 = vmatpush1.msra.mxu0 0.0
    %2657 = vmatprep.subr.mxu0 0.0
    %2658 = vmatpush1.msra.mxu0 0.0
    %2659 = vmatprep.subr.mxu0 0.0
    %2660 = vmatpush1.msra.mxu0 0.0
    %2661 = vmatprep.subr.mxu0 0.0
    %2662 = vmatpush1.msra.mxu0 0.0
    %2663 = vmatprep.subr.mxu0 0.0
    %2664 = vmatpush1.msra.mxu0 0.0
    %2665 = vmatprep.subr.mxu0 0.0
    %2666 = vmatpush1.msra.mxu0 0.0
    %2667 = vmatprep.subr.mxu0 0.0
    %2668 = vmatpush1.msra.mxu0 0.0
    %2669 = vmatprep.subr.mxu0 0.0
    %2670 = vmatpush1.msra.mxu0 0.0
    %2671 = vmatprep.subr.mxu0 0.0
    %2672 = vmatpush1.msra.mxu0 0.0
    %2673 = vmatprep.subr.mxu0 0.0
    %2674 = vmatpush1.msra.mxu0 0.0
    %2675 = vmatprep.subr.mxu0 0.0
    %2676 = vmatpush1.msra.mxu0 0.0
    %2677 = vmatprep.subr.mxu0 0.0
    %2678 = vmatpush1.msra.mxu0 0.0
    %2679 = vmatprep.subr.mxu0 0.0
    %2680 = vmatpush1.msra.mxu0 0.0
    %2681 = vmatprep.subr.mxu0 0.0
    %2682 = vmatpush1.msra.mxu0 0.0
    %2683 = vmatprep.subr.mxu0 0.0
    %2684 = vmatpush1.msra.mxu0 0.0
    %2685 = vmatprep.subr.mxu0 0.0
    %2686 = vmatpush1.msra.mxu0 0.0
    %2687 = vmatprep.subr.mxu0 0.0
    %2688 = vmatpush1.msra.mxu0 0.0
    %2689 = vmatprep.subr.mxu0 0.0
    %2690 = vmatpush1.msra.mxu0 0.0
    %2691 = vmatprep.mubr.f32.mxu0 0.0
    %2692 = vmatmul.mubr.f32.gmra.mrb[0].mxu0 %v2625
    %v2693 = vpop.f32.mrb[0].mxu0
    %v2694 = vadd.f32 0.0, %v2693
    %v2695 = vpop.f32.mrb[0].mxu0
    %2696 = vdwg.mxu0
    %2697 = vrot.lane.b32.xlu0 %v2112, 56
    %v2698 = vpop.permute.xlu0 %2697
    %v2701 = vsel %vm317, %v2620, 0
    %2703 = vmatprep.subr.mxu0 0.0
    %2704 = vmatpush1.msra.mxu0 %v2698
    %2705 = vmatprep.subr.mxu0 0.0
    %2706 = vmatpush1.msra.mxu0 0.0
    %2707 = vmatprep.subr.mxu0 0.0
    %2708 = vmatpush1.msra.mxu0 0.0
    %2709 = vmatprep.subr.mxu0 0.0
    %2710 = vmatpush1.msra.mxu0 0.0
    %2711 = vmatprep.subr.mxu0 0.0
    %2712 = vmatpush1.msra.mxu0 0.0
    %2713 = vmatprep.subr.mxu0 0.0
    %2714 = vmatpush1.msra.mxu0 0.0
    %2715 = vmatprep.subr.mxu0 0.0
    %2716 = vmatpush1.msra.mxu0 0.0
    %2717 = vmatprep.subr.mxu0 0.0
    %2718 = vmatpush1.msra.mxu0 0.0
    %2719 = vmatprep.subr.mxu0 0.0
    %2720 = vmatpush1.msra.mxu0 0.0
    %2721 = vmatprep.subr.mxu0 0.0
    %2722 = vmatpush1.msra.mxu0 0.0
    %2723 = vmatprep.subr.mxu0 0.0
    %2724 = vmatpush1.msra.mxu0 0.0
    %2725 = vmatprep.subr.mxu0 0.0
    %2726 = vmatpush1.msra.mxu0 0.0
    %2727 = vmatprep.subr.mxu0 0.0
    %2728 = vmatpush1.msra.mxu0 0.0
    %2729 = vmatprep.subr.mxu0 0.0
    %2730 = vmatpush1.msra.mxu0 0.0
    %2731 = vmatprep.subr.mxu0 0.0
    %2732 = vmatpush1.msra.mxu0 0.0
    %2733 = vmatprep.subr.mxu0 0.0
    %2734 = vmatpush1.msra.mxu0 0.0
    %2735 = vmatprep.subr.mxu0 0.0
    %2736 = vmatpush1.msra.mxu0 0.0
    %2737 = vmatprep.subr.mxu0 0.0
    %2738 = vmatpush1.msra.mxu0 0.0
    %2739 = vmatprep.subr.mxu0 0.0
    %2740 = vmatpush1.msra.mxu0 0.0
    %2741 = vmatprep.subr.mxu0 0.0
    %2742 = vmatpush1.msra.mxu0 0.0
    %2743 = vmatprep.subr.mxu0 0.0
    %2744 = vmatpush1.msra.mxu0 0.0
    %2745 = vmatprep.subr.mxu0 0.0
    %2746 = vmatpush1.msra.mxu0 0.0
    %2747 = vmatprep.subr.mxu0 0.0
    %2748 = vmatpush1.msra.mxu0 0.0
    %2749 = vmatprep.subr.mxu0 0.0
    %2750 = vmatpush1.msra.mxu0 0.0
    %2751 = vmatprep.subr.mxu0 0.0
    %2752 = vmatpush1.msra.mxu0 0.0
    %2753 = vmatprep.subr.mxu0 0.0
    %2754 = vmatpush1.msra.mxu0 0.0
    %2755 = vmatprep.subr.mxu0 0.0
    %2756 = vmatpush1.msra.mxu0 0.0
    %2757 = vmatprep.subr.mxu0 0.0
    %2758 = vmatpush1.msra.mxu0 0.0
    %2759 = vmatprep.subr.mxu0 0.0
    %2760 = vmatpush1.msra.mxu0 0.0
    %2761 = vmatprep.subr.mxu0 0.0
    %2762 = vmatpush1.msra.mxu0 0.0
    %2763 = vmatprep.subr.mxu0 0.0
    %2764 = vmatpush1.msra.mxu0 0.0
    %2765 = vmatprep.subr.mxu0 0.0
    %2766 = vmatpush1.msra.mxu0 0.0
    %2767 = vmatprep.mubr.f32.mxu0 0.0
    %2768 = vmatmul.mubr.f32.gmra.mrb[0].mxu0 %v2701
    %v2769 = vpop.f32.mrb[0].mxu0
    %v2770 = vadd.f32 0.0, %v2769
    %v2771 = vpop.f32.mrb[0].mxu0
    %2772 = vdwg.mxu0
    %2773 = vrot.lane.b32.xlu0 %v2107, 112
    %v2774 = vpop.permute.xlu0 %2773
    %2775 = vrot.lane.b32.xlu0 %v2107, 80
    %v2776 = vpop.permute.xlu0 %2775
    %v2777 = vsel %vm317, %v2774, 0
    %v2779 = vsel %vm317, %v2776, 0
    %2781 = vmatprep.subr.mxu0 0.0
    %2782 = vmatpush1.xpose.msra.mxu0 %v2779
    %2783 = vmatprep.subr.mxu0 0.0
    %2784 = vmatpush1.xpose.msra.mxu0 0.0
    %2785 = vmatprep.subr.mxu0 0.0
    %2786 = vmatpush1.xpose.msra.mxu0 0.0
    %2787 = vmatprep.subr.mxu0 0.0
    %2788 = vmatpush1.xpose.msra.mxu0 0.0
    %2789 = vmatprep.subr.mxu0 0.0
    %2790 = vmatpush1.xpose.msra.mxu0 0.0
    %2791 = vmatprep.subr.mxu0 0.0
    %2792 = vmatpush1.xpose.msra.mxu0 0.0
    %2793 = vmatprep.subr.mxu0 0.0
    %2794 = vmatpush1.xpose.msra.mxu0 0.0
    %2795 = vmatprep.subr.mxu0 0.0
    %2796 = vmatpush1.xpose.msra.mxu0 0.0
    %2797 = vmatprep.subr.mxu0 0.0
    %2798 = vmatpush1.xpose.msra.mxu0 0.0
    %2799 = vmatprep.subr.mxu0 0.0
    %2800 = vmatpush1.xpose.msra.mxu0 0.0
    %2801 = vmatprep.subr.mxu0 0.0
    %2802 = vmatpush1.xpose.msra.mxu0 0.0
    %2803 = vmatprep.subr.mxu0 0.0
    %2804 = vmatpush1.xpose.msra.mxu0 0.0
    %2805 = vmatprep.subr.mxu0 0.0
    %2806 = vmatpush1.xpose.msra.mxu0 0.0
    %2807 = vmatprep.subr.mxu0 0.0
    %2808 = vmatpush1.xpose.msra.mxu0 0.0
    %2809 = vmatprep.subr.mxu0 0.0
    %2810 = vmatpush1.xpose.msra.mxu0 0.0
    %2811 = vmatprep.subr.mxu0 0.0
    %2812 = vmatpush1.xpose.msra.mxu0 0.0
    %2813 = vmatprep.subr.mxu0 0.0
    %2814 = vmatpush1.xpose.msra.mxu0 0.0
    %2815 = vmatprep.subr.mxu0 0.0
    %2816 = vmatpush1.xpose.msra.mxu0 0.0
    %2817 = vmatprep.subr.mxu0 0.0
    %2818 = vmatpush1.xpose.msra.mxu0 0.0
    %2819 = vmatprep.subr.mxu0 0.0
    %2820 = vmatpush1.xpose.msra.mxu0 0.0
    %2821 = vmatprep.subr.mxu0 0.0
    %2822 = vmatpush1.xpose.msra.mxu0 0.0
    %2823 = vmatprep.subr.mxu0 0.0
    %2824 = vmatpush1.xpose.msra.mxu0 0.0
    %2825 = vmatprep.subr.mxu0 0.0
    %2826 = vmatpush1.xpose.msra.mxu0 0.0
    %2827 = vmatprep.subr.mxu0 0.0
    %2828 = vmatpush1.xpose.msra.mxu0 0.0
    %2829 = vmatprep.subr.mxu0 0.0
    %2830 = vmatpush1.xpose.msra.mxu0 0.0
    %2831 = vmatprep.subr.mxu0 0.0
    %2832 = vmatpush1.xpose.msra.mxu0 0.0
    %2833 = vmatprep.subr.mxu0 0.0
    %2834 = vmatpush1.xpose.msra.mxu0 0.0
    %2835 = vmatprep.subr.mxu0 0.0
    %2836 = vmatpush1.xpose.msra.mxu0 0.0
    %2837 = vmatprep.subr.mxu0 0.0
    %2838 = vmatpush1.xpose.msra.mxu0 0.0
    %2839 = vmatprep.subr.mxu0 0.0
    %2840 = vmatpush1.xpose.msra.mxu0 0.0
    %2841 = vmatprep.subr.mxu0 0.0
    %2842 = vmatpush1.xpose.msra.mxu0 0.0
    %2843 = vmatprep.subr.mxu0 0.0
    %2844 = vmatpush1.xpose.msra.mxu0 0.0
    %2845 = vmatprep.mubr.f32.mxu0 0.0
    %2846 = vmatmul.mubr.f32.gmra.mrb[0].mxu0 %v2777
    %v2847 = vpop.f32.mrb[0].mxu0
    %v2848 = vadd.f32 0.0, %v2847
    %v2849 = vpop.f32.mrb[0].mxu0
    %2850 = vdwg.mxu0
    %2851 = vrot.lane.b32.xlu0 %v2112, 112
    %v2852 = vpop.permute.xlu0 %2851
    %2853 = vrot.lane.b32.xlu0 %v2112, 80
    %v2854 = vpop.permute.xlu0 %2853
    %v2855 = vsel %vm317, %v2852, 0
    %v2857 = vsel %vm317, %v2854, 0
    %2859 = vmatprep.subr.mxu0 0.0
    %2860 = vmatpush1.xpose.msra.mxu0 %v2857
    %2861 = vmatprep.subr.mxu0 0.0
    %2862 = vmatpush1.xpose.msra.mxu0 0.0
    %2863 = vmatprep.subr.mxu0 0.0
    %2864 = vmatpush1.xpose.msra.mxu0 0.0
    %2865 = vmatprep.subr.mxu0 0.0
    %2866 = vmatpush1.xpose.msra.mxu0 0.0
    %2867 = vmatprep.subr.mxu0 0.0
    %2868 = vmatpush1.xpose.msra.mxu0 0.0
    %2869 = vmatprep.subr.mxu0 0.0
    %2870 = vmatpush1.xpose.msra.mxu0 0.0
    %2871 = vmatprep.subr.mxu0 0.0
    %2872 = vmatpush1.xpose.msra.mxu0 0.0
    %2873 = vmatprep.subr.mxu0 0.0
    %2874 = vmatpush1.xpose.msra.mxu0 0.0
    %2875 = vmatprep.subr.mxu0 0.0
    %2876 = vmatpush1.xpose.msra.mxu0 0.0
    %2877 = vmatprep.subr.mxu0 0.0
    %2878 = vmatpush1.xpose.msra.mxu0 0.0
    %2879 = vmatprep.subr.mxu0 0.0
    %2880 = vmatpush1.xpose.msra.mxu0 0.0
    %2881 = vmatprep.subr.mxu0 0.0
    %2882 = vmatpush1.xpose.msra.mxu0 0.0
    %2883 = vmatprep.subr.mxu0 0.0
    %2884 = vmatpush1.xpose.msra.mxu0 0.0
    %2885 = vmatprep.subr.mxu0 0.0
    %2886 = vmatpush1.xpose.msra.mxu0 0.0
    %2887 = vmatprep.subr.mxu0 0.0
    %2888 = vmatpush1.xpose.msra.mxu0 0.0
    %2889 = vmatprep.subr.mxu0 0.0
    %2890 = vmatpush1.xpose.msra.mxu0 0.0
    %2891 = vmatprep.subr.mxu0 0.0
    %2892 = vmatpush1.xpose.msra.mxu0 0.0
    %2893 = vmatprep.subr.mxu0 0.0
    %2894 = vmatpush1.xpose.msra.mxu0 0.0
    %2895 = vmatprep.subr.mxu0 0.0
    %2896 = vmatpush1.xpose.msra.mxu0 0.0
    %2897 = vmatprep.subr.mxu0 0.0
    %2898 = vmatpush1.xpose.msra.mxu0 0.0
    %2899 = vmatprep.subr.mxu0 0.0
    %2900 = vmatpush1.xpose.msra.mxu0 0.0
    %2901 = vmatprep.subr.mxu0 0.0
    %2902 = vmatpush1.xpose.msra.mxu0 0.0
    %2903 = vmatprep.subr.mxu0 0.0
    %2904 = vmatpush1.xpose.msra.mxu0 0.0
    %2905 = vmatprep.subr.mxu0 0.0
    %2906 = vmatpush1.xpose.msra.mxu0 0.0
    %2907 = vmatprep.subr.mxu0 0.0
    %2908 = vmatpush1.xpose.msra.mxu0 0.0
    %2909 = vmatprep.subr.mxu0 0.0
    %2910 = vmatpush1.xpose.msra.mxu0 0.0
    %2911 = vmatprep.subr.mxu0 0.0
    %2912 = vmatpush1.xpose.msra.mxu0 0.0
    %2913 = vmatprep.subr.mxu0 0.0
    %2914 = vmatpush1.xpose.msra.mxu0 0.0
    %2915 = vmatprep.subr.mxu0 0.0
    %2916 = vmatpush1.xpose.msra.mxu0 0.0
    %2917 = vmatprep.subr.mxu0 0.0
    %2918 = vmatpush1.xpose.msra.mxu0 0.0
    %2919 = vmatprep.subr.mxu0 0.0
    %2920 = vmatpush1.xpose.msra.mxu0 0.0
    %2921 = vmatprep.subr.mxu0 0.0
    %2922 = vmatpush1.xpose.msra.mxu0 0.0
    %2923 = vmatprep.mubr.f32.mxu0 0.0
    %2924 = vmatmul.mubr.f32.gmra.mrb[0].mxu0 %v2855
    %v2925 = vpop.f32.mrb[0].mxu0
    %v2926 = vadd.f32 0.0, %v2925
    %v2927 = vpop.f32.mrb[0].mxu0
    %2928 = vdwg.mxu0
    %v2929 = vsel %vm317, %v2848, -inf
    %2930 = vmax.xlane.f32.xlu0 %v2929
    %v2931 = vpop.xlane.xlu0 %2930
    %v2932 = vsel %vm317, %v2926, -inf
    %2933 = vmax.xlane.f32.xlu0 %v2932
    %v2934 = vpop.xlane.xlu0 %2933
    %v2935 = vsub.f32 %v2848, %v2931
    %v2936 = vsub.f32 %v2926, %v2934
    %v2937 = vmul.f32 %v2935, 1.442695
    %v2938 = vpow.pop %v2937
    %v2939 = vmul.f32 %v2936, 1.442695
    %v2940 = vpow.pop %v2939
    %v2941 = vsel %vm317, %v2938, 0.0
    %2942 = vadd.xlane.f32.xlu0 %v2941
    %v2943 = vpop.xlane.xlu0 %2942
    %v2944 = vsel %vm317, %v2940, 0.0
    %2945 = vadd.xlane.f32.xlu0 %v2944
    %v2946 = vpop.xlane.xlu0 %2945
    %v2947 = vrcp.pop %v2943
    %v2948 = vrcp.pop %v2946
    %v2949 = vmul.f32 %v2938, %v2947
    %v2950 = vmul.f32 %v2940, %v2948
    %2951 = vrot.lane.b32.xlu0 %v2107, 48
    %v2952 = vpop.permute.xlu0 %2951
    %v2955 = vsel %vm317, %v2949, 0
    %2957 = vmatprep.subr.mxu0 0.0
    %2958 = vmatpush1.msra.mxu0 %v2952
    %2959 = vmatprep.subr.mxu0 0.0
    %2960 = vmatpush1.msra.mxu0 0.0
    %2961 = vmatprep.subr.mxu0 0.0
    %2962 = vmatpush1.msra.mxu0 0.0
    %2963 = vmatprep.subr.mxu0 0.0
    %2964 = vmatpush1.msra.mxu0 0.0
    %2965 = vmatprep.subr.mxu0 0.0
    %2966 = vmatpush1.msra.mxu0 0.0
    %2967 = vmatprep.subr.mxu0 0.0
    %2968 = vmatpush1.msra.mxu0 0.0
    %2969 = vmatprep.subr.mxu0 0.0
    %2970 = vmatpush1.msra.mxu0 0.0
    %2971 = vmatprep.subr.mxu0 0.0
    %2972 = vmatpush1.msra.mxu0 0.0
    %2973 = vmatprep.subr.mxu0 0.0
    %2974 = vmatpush1.msra.mxu0 0.0
    %2975 = vmatprep.subr.mxu0 0.0
    %2976 = vmatpush1.msra.mxu0 0.0
    %2977 = vmatprep.subr.mxu0 0.0
    %2978 = vmatpush1.msra.mxu0 0.0
    %2979 = vmatprep.subr.mxu0 0.0
    %2980 = vmatpush1.msra.mxu0 0.0
    %2981 = vmatprep.subr.mxu0 0.0
    %2982 = vmatpush1.msra.mxu0 0.0
    %2983 = vmatprep.subr.mxu0 0.0
    %2984 = vmatpush1.msra.mxu0 0.0
    %2985 = vmatprep.subr.mxu0 0.0
    %2986 = vmatpush1.msra.mxu0 0.0
    %2987 = vmatprep.subr.mxu0 0.0
    %2988 = vmatpush1.msra.mxu0 0.0
    %2989 = vmatprep.subr.mxu0 0.0
    %2990 = vmatpush1.msra.mxu0 0.0
    %2991 = vmatprep.subr.mxu0 0.0
    %2992 = vmatpush1.msra.mxu0 0.0
    %2993 = vmatprep.subr.mxu0 0.0
    %2994 = vmatpush1.msra.mxu0 0.0
    %2995 = vmatprep.subr.mxu0 0.0
    %2996 = vmatpush1.msra.mxu0 0.0
    %2997 = vmatprep.subr.mxu0 0.0
    %2998 = vmatpush1.msra.mxu0 0.0
    %2999 = vmatprep.subr.mxu0 0.0
    %3000 = vmatpush1.msra.mxu0 0.0
    %3001 = vmatprep.subr.mxu0 0.0
    %3002 = vmatpush1.msra.mxu0 0.0
    %3003 = vmatprep.subr.mxu0 0.0
    %3004 = vmatpush1.msra.mxu0 0.0
    %3005 = vmatprep.subr.mxu0 0.0
    %3006 = vmatpush1.msra.mxu0 0.0
    %3007 = vmatprep.subr.mxu0 0.0
    %3008 = vmatpush1.msra.mxu0 0.0
    %3009 = vmatprep.subr.mxu0 0.0
    %3010 = vmatpush1.msra.mxu0 0.0
    %3011 = vmatprep.subr.mxu0 0.0
    %3012 = vmatpush1.msra.mxu0 0.0
    %3013 = vmatprep.subr.mxu0 0.0
    %3014 = vmatpush1.msra.mxu0 0.0
    %3015 = vmatprep.subr.mxu0 0.0
    %3016 = vmatpush1.msra.mxu0 0.0
    %3017 = vmatprep.subr.mxu0 0.0
    %3018 = vmatpush1.msra.mxu0 0.0
    %3019 = vmatprep.subr.mxu0 0.0
    %3020 = vmatpush1.msra.mxu0 0.0
    %3021 = vmatprep.mubr.f32.mxu0 0.0
    %3022 = vmatmul.mubr.f32.gmra.mrb[0].mxu0 %v2955
    %v3023 = vpop.f32.mrb[0].mxu0
    %v3024 = vadd.f32 0.0, %v3023
    %v3025 = vpop.f32.mrb[0].mxu0
    %3026 = vdwg.mxu0
    %3027 = vrot.lane.b32.xlu0 %v2112, 48
    %v3028 = vpop.permute.xlu0 %3027
    %v3031 = vsel %vm317, %v2950, 0
    %3033 = vmatprep.subr.mxu0 0.0
    %3034 = vmatpush1.msra.mxu0 %v3028
    %3035 = vmatprep.subr.mxu0 0.0
    %3036 = vmatpush1.msra.mxu0 0.0
    %3037 = vmatprep.subr.mxu0 0.0
    %3038 = vmatpush1.msra.mxu0 0.0
    %3039 = vmatprep.subr.mxu0 0.0
    %3040 = vmatpush1.msra.mxu0 0.0
    %3041 = vmatprep.subr.mxu0 0.0
    %3042 = vmatpush1.msra.mxu0 0.0
    %3043 = vmatprep.subr.mxu0 0.0
    %3044 = vmatpush1.msra.mxu0 0.0
    %3045 = vmatprep.subr.mxu0 0.0
    %3046 = vmatpush1.msra.mxu0 0.0
    %3047 = vmatprep.subr.mxu0 0.0
    %3048 = vmatpush1.msra.mxu0 0.0
    %3049 = vmatprep.subr.mxu0 0.0
    %3050 = vmatpush1.msra.mxu0 0.0
    %3051 = vmatprep.subr.mxu0 0.0
    %3052 = vmatpush1.msra.mxu0 0.0
    %3053 = vmatprep.subr.mxu0 0.0
    %3054 = vmatpush1.msra.mxu0 0.0
    %3055 = vmatprep.subr.mxu0 0.0
    %3056 = vmatpush1.msra.mxu0 0.0
    %3057 = vmatprep.subr.mxu0 0.0
    %3058 = vmatpush1.msra.mxu0 0.0
    %3059 = vmatprep.subr.mxu0 0.0
    %3060 = vmatpush1.msra.mxu0 0.0
    %3061 = vmatprep.subr.mxu0 0.0
    %3062 = vmatpush1.msra.mxu0 0.0
    %3063 = vmatprep.subr.mxu0 0.0
    %3064 = vmatpush1.msra.mxu0 0.0
    %3065 = vmatprep.subr.mxu0 0.0
    %3066 = vmatpush1.msra.mxu0 0.0
    %3067 = vmatprep.subr.mxu0 0.0
    %3068 = vmatpush1.msra.mxu0 0.0
    %3069 = vmatprep.subr.mxu0 0.0
    %3070 = vmatpush1.msra.mxu0 0.0
    %3071 = vmatprep.subr.mxu0 0.0
    %3072 = vmatpush1.msra.mxu0 0.0
    %3073 = vmatprep.subr.mxu0 0.0
    %3074 = vmatpush1.msra.mxu0 0.0
    %3075 = vmatprep.subr.mxu0 0.0
    %3076 = vmatpush1.msra.mxu0 0.0
    %3077 = vmatprep.subr.mxu0 0.0
    %3078 = vmatpush1.msra.mxu0 0.0
    %3079 = vmatprep.subr.mxu0 0.0
    %3080 = vmatpush1.msra.mxu0 0.0
    %3081 = vmatprep.subr.mxu0 0.0
    %3082 = vmatpush1.msra.mxu0 0.0
    %3083 = vmatprep.subr.mxu0 0.0
    %3084 = vmatpush1.msra.mxu0 0.0
    %3085 = vmatprep.subr.mxu0 0.0
    %3086 = vmatpush1.msra.mxu0 0.0
    %3087 = vmatprep.subr.mxu0 0.0
    %3088 = vmatpush1.msra.mxu0 0.0
    %3089 = vmatprep.subr.mxu0 0.0
    %3090 = vmatpush1.msra.mxu0 0.0
    %3091 = vmatprep.subr.mxu0 0.0
    %3092 = vmatpush1.msra.mxu0 0.0
    %3093 = vmatprep.subr.mxu0 0.0
    %3094 = vmatpush1.msra.mxu0 0.0
    %3095 = vmatprep.subr.mxu0 0.0
    %3096 = vmatpush1.msra.mxu0 0.0
    %3097 = vmatprep.mubr.f32.mxu0 0.0
    %3098 = vmatmul.mubr.f32.gmra.mrb[0].mxu0 %v3031
    %v3099 = vpop.f32.mrb[0].mxu0
    %v3100 = vadd.f32 0.0, %v3099
    %v3101 = vpop.f32.mrb[0].mxu0
    %3102 = vdwg.mxu0
    %3103 = vrot.lane.b32.xlu0 %v2107, 104
    %v3104 = vpop.permute.xlu0 %3103
    %3105 = vrot.lane.b32.xlu0 %v2107, 72
    %v3106 = vpop.permute.xlu0 %3105
    %v3107 = vsel %vm317, %v3104, 0
    %v3109 = vsel %vm317, %v3106, 0
    %3111 = vmatprep.subr.mxu0 0.0
    %3112 = vmatpush1.xpose.msra.mxu0 %v3109
    %3113 = vmatprep.subr.mxu0 0.0
    %3114 = vmatpush1.xpose.msra.mxu0 0.0
    %3115 = vmatprep.subr.mxu0 0.0
    %3116 = vmatpush1.xpose.msra.mxu0 0.0
    %3117 = vmatprep.subr.mxu0 0.0
    %3118 = vmatpush1.xpose.msra.mxu0 0.0
    %3119 = vmatprep.subr.mxu0 0.0
    %3120 = vmatpush1.xpose.msra.mxu0 0.0
    %3121 = vmatprep.subr.mxu0 0.0
    %3122 = vmatpush1.xpose.msra.mxu0 0.0
    %3123 = vmatprep.subr.mxu0 0.0
    %3124 = vmatpush1.xpose.msra.mxu0 0.0
    %3125 = vmatprep.subr.mxu0 0.0
    %3126 = vmatpush1.xpose.msra.mxu0 0.0
    %3127 = vmatprep.subr.mxu0 0.0
    %3128 = vmatpush1.xpose.msra.mxu0 0.0
    %3129 = vmatprep.subr.mxu0 0.0
    %3130 = vmatpush1.xpose.msra.mxu0 0.0
    %3131 = vmatprep.subr.mxu0 0.0
    %3132 = vmatpush1.xpose.msra.mxu0 0.0
    %3133 = vmatprep.subr.mxu0 0.0
    %3134 = vmatpush1.xpose.msra.mxu0 0.0
    %3135 = vmatprep.subr.mxu0 0.0
    %3136 = vmatpush1.xpose.msra.mxu0 0.0
    %3137 = vmatprep.subr.mxu0 0.0
    %3138 = vmatpush1.xpose.msra.mxu0 0.0
    %3139 = vmatprep.subr.mxu0 0.0
    %3140 = vmatpush1.xpose.msra.mxu0 0.0
    %3141 = vmatprep.subr.mxu0 0.0
    %3142 = vmatpush1.xpose.msra.mxu0 0.0
    %3143 = vmatprep.subr.mxu0 0.0
    %3144 = vmatpush1.xpose.msra.mxu0 0.0
    %3145 = vmatprep.subr.mxu0 0.0
    %3146 = vmatpush1.xpose.msra.mxu0 0.0
    %3147 = vmatprep.subr.mxu0 0.0
    %3148 = vmatpush1.xpose.msra.mxu0 0.0
    %3149 = vmatprep.subr.mxu0 0.0
    %3150 = vmatpush1.xpose.msra.mxu0 0.0
    %3151 = vmatprep.subr.mxu0 0.0
    %3152 = vmatpush1.xpose.msra.mxu0 0.0
    %3153 = vmatprep.subr.mxu0 0.0
    %3154 = vmatpush1.xpose.msra.mxu0 0.0
    %3155 = vmatprep.subr.mxu0 0.0
    %3156 = vmatpush1.xpose.msra.mxu0 0.0
    %3157 = vmatprep.subr.mxu0 0.0
    %3158 = vmatpush1.xpose.msra.mxu0 0.0
    %3159 = vmatprep.subr.mxu0 0.0
    %3160 = vmatpush1.xpose.msra.mxu0 0.0
    %3161 = vmatprep.subr.mxu0 0.0
    %3162 = vmatpush1.xpose.msra.mxu0 0.0
    %3163 = vmatprep.subr.mxu0 0.0
    %3164 = vmatpush1.xpose.msra.mxu0 0.0
    %3165 = vmatprep.subr.mxu0 0.0
    %3166 = vmatpush1.xpose.msra.mxu0 0.0
    %3167 = vmatprep.subr.mxu0 0.0
    %3168 = vmatpush1.xpose.msra.mxu0 0.0
    %3169 = vmatprep.subr.mxu0 0.0
    %3170 = vmatpush1.xpose.msra.mxu0 0.0
    %3171 = vmatprep.subr.mxu0 0.0
    %3172 = vmatpush1.xpose.msra.mxu0 0.0
    %3173 = vmatprep.subr.mxu0 0.0
    %3174 = vmatpush1.xpose.msra.mxu0 0.0
    %3175 = vmatprep.mubr.f32.mxu0 0.0
    %3176 = vmatmul.mubr.f32.gmra.mrb[0].mxu0 %v3107
    %v3177 = vpop.f32.mrb[0].mxu0
    %v3178 = vadd.f32 0.0, %v3177
    %v3179 = vpop.f32.mrb[0].mxu0
    %3180 = vdwg.mxu0
    %3181 = vrot.lane.b32.xlu0 %v2112, 104
    %v3182 = vpop.permute.xlu0 %3181
    %3183 = vrot.lane.b32.xlu0 %v2112, 72
    %v3184 = vpop.permute.xlu0 %3183
    %v3185 = vsel %vm317, %v3182, 0
    %v3187 = vsel %vm317, %v3184, 0
    %3189 = vmatprep.subr.mxu0 0.0
    %3190 = vmatpush1.xpose.msra.mxu0 %v3187
    %3191 = vmatprep.subr.mxu0 0.0
    %3192 = vmatpush1.xpose.msra.mxu0 0.0
    %3193 = vmatprep.subr.mxu0 0.0
    %3194 = vmatpush1.xpose.msra.mxu0 0.0
    %3195 = vmatprep.subr.mxu0 0.0
    %3196 = vmatpush1.xpose.msra.mxu0 0.0
    %3197 = vmatprep.subr.mxu0 0.0
    %3198 = vmatpush1.xpose.msra.mxu0 0.0
    %3199 = vmatprep.subr.mxu0 0.0
    %3200 = vmatpush1.xpose.msra.mxu0 0.0
    %3201 = vmatprep.subr.mxu0 0.0
    %3202 = vmatpush1.xpose.msra.mxu0 0.0
    %3203 = vmatprep.subr.mxu0 0.0
    %3204 = vmatpush1.xpose.msra.mxu0 0.0
    %3205 = vmatprep.subr.mxu0 0.0
    %3206 = vmatpush1.xpose.msra.mxu0 0.0
    %3207 = vmatprep.subr.mxu0 0.0
    %3208 = vmatpush1.xpose.msra.mxu0 0.0
    %3209 = vmatprep.subr.mxu0 0.0
    %3210 = vmatpush1.xpose.msra.mxu0 0.0
    %3211 = vmatprep.subr.mxu0 0.0
    %3212 = vmatpush1.xpose.msra.mxu0 0.0
    %3213 = vmatprep.subr.mxu0 0.0
    %3214 = vmatpush1.xpose.msra.mxu0 0.0
    %3215 = vmatprep.subr.mxu0 0.0
    %3216 = vmatpush1.xpose.msra.mxu0 0.0
    %3217 = vmatprep.subr.mxu0 0.0
    %3218 = vmatpush1.xpose.msra.mxu0 0.0
    %3219 = vmatprep.subr.mxu0 0.0
    %3220 = vmatpush1.xpose.msra.mxu0 0.0
    %3221 = vmatprep.subr.mxu0 0.0
    %3222 = vmatpush1.xpose.msra.mxu0 0.0
    %3223 = vmatprep.subr.mxu0 0.0
    %3224 = vmatpush1.xpose.msra.mxu0 0.0
    %3225 = vmatprep.subr.mxu0 0.0
    %3226 = vmatpush1.xpose.msra.mxu0 0.0
    %3227 = vmatprep.subr.mxu0 0.0
    %3228 = vmatpush1.xpose.msra.mxu0 0.0
    %3229 = vmatprep.subr.mxu0 0.0
    %3230 = vmatpush1.xpose.msra.mxu0 0.0
    %3231 = vmatprep.subr.mxu0 0.0
    %3232 = vmatpush1.xpose.msra.mxu0 0.0
    %3233 = vmatprep.subr.mxu0 0.0
    %3234 = vmatpush1.xpose.msra.mxu0 0.0
    %3235 = vmatprep.subr.mxu0 0.0
    %3236 = vmatpush1.xpose.msra.mxu0 0.0
    %3237 = vmatprep.subr.mxu0 0.0
    %3238 = vmatpush1.xpose.msra.mxu0 0.0
    %3239 = vmatprep.subr.mxu0 0.0
    %3240 = vmatpush1.xpose.msra.mxu0 0.0
    %3241 = vmatprep.subr.mxu0 0.0
    %3242 = vmatpush1.xpose.msra.mxu0 0.0
    %3243 = vmatprep.subr.mxu0 0.0
    %3244 = vmatpush1.xpose.msra.mxu0 0.0
    %3245 = vmatprep.subr.mxu0 0.0
    %3246 = vmatpush1.xpose.msra.mxu0 0.0
    %3247 = vmatprep.subr.mxu0 0.0
    %3248 = vmatpush1.xpose.msra.mxu0 0.0
    %3249 = vmatprep.subr.mxu0 0.0
    %3250 = vmatpush1.xpose.msra.mxu0 0.0
    %3251 = vmatprep.subr.mxu0 0.0
    %3252 = vmatpush1.xpose.msra.mxu0 0.0
    %3253 = vmatprep.mubr.f32.mxu0 0.0
    %3254 = vmatmul.mubr.f32.gmra.mrb[0].mxu0 %v3185
    %v3255 = vpop.f32.mrb[0].mxu0
    %v3256 = vadd.f32 0.0, %v3255
    %v3257 = vpop.f32.mrb[0].mxu0
    %3258 = vdwg.mxu0
    %v3259 = vsel %vm317, %v3178, -inf
    %3260 = vmax.xlane.f32.xlu0 %v3259
    %v3261 = vpop.xlane.xlu0 %3260
    %v3262 = vsel %vm317, %v3256, -inf
    %3263 = vmax.xlane.f32.xlu0 %v3262
    %v3264 = vpop.xlane.xlu0 %3263
    %v3265 = vsub.f32 %v3178, %v3261
    %v3266 = vsub.f32 %v3256, %v3264
    %v3267 = vmul.f32 %v3265, 1.442695
    %v3268 = vpow.pop %v3267
    %v3269 = vmul.f32 %v3266, 1.442695
    %v3270 = vpow.pop %v3269
    %v3271 = vsel %vm317, %v3268, 0.0
    %3272 = vadd.xlane.f32.xlu0 %v3271
    %v3273 = vpop.xlane.xlu0 %3272
    %v3274 = vsel %vm317, %v3270, 0.0
    %3275 = vadd.xlane.f32.xlu0 %v3274
    %v3276 = vpop.xlane.xlu0 %3275
    %v3277 = vrcp.pop %v3273
    %v3278 = vrcp.pop %v3276
    %v3279 = vmul.f32 %v3268, %v3277
    %v3280 = vmul.f32 %v3270, %v3278
    %3281 = vrot.lane.b32.xlu0 %v2107, 40
    %v3282 = vpop.permute.xlu0 %3281
    %v3285 = vsel %vm317, %v3279, 0
    %3287 = vmatprep.subr.mxu0 0.0
    %3288 = vmatpush1.msra.mxu0 %v3282
    %3289 = vmatprep.subr.mxu0 0.0
    %3290 = vmatpush1.msra.mxu0 0.0
    %3291 = vmatprep.subr.mxu0 0.0
    %3292 = vmatpush1.msra.mxu0 0.0
    %3293 = vmatprep.subr.mxu0 0.0
    %3294 = vmatpush1.msra.mxu0 0.0
    %3295 = vmatprep.subr.mxu0 0.0
    %3296 = vmatpush1.msra.mxu0 0.0
    %3297 = vmatprep.subr.mxu0 0.0
    %3298 = vmatpush1.msra.mxu0 0.0
    %3299 = vmatprep.subr.mxu0 0.0
    %3300 = vmatpush1.msra.mxu0 0.0
    %3301 = vmatprep.subr.mxu0 0.0
    %3302 = vmatpush1.msra.mxu0 0.0
    %3303 = vmatprep.subr.mxu0 0.0
    %3304 = vmatpush1.msra.mxu0 0.0
    %3305 = vmatprep.subr.mxu0 0.0
    %3306 = vmatpush1.msra.mxu0 0.0
    %3307 = vmatprep.subr.mxu0 0.0
    %3308 = vmatpush1.msra.mxu0 0.0
    %3309 = vmatprep.subr.mxu0 0.0
    %3310 = vmatpush1.msra.mxu0 0.0
    %3311 = vmatprep.subr.mxu0 0.0
    %3312 = vmatpush1.msra.mxu0 0.0
    %3313 = vmatprep.subr.mxu0 0.0
    %3314 = vmatpush1.msra.mxu0 0.0
    %3315 = vmatprep.subr.mxu0 0.0
    %3316 = vmatpush1.msra.mxu0 0.0
    %3317 = vmatprep.subr.mxu0 0.0
    %3318 = vmatpush1.msra.mxu0 0.0
    %3319 = vmatprep.subr.mxu0 0.0
    %3320 = vmatpush1.msra.mxu0 0.0
    %3321 = vmatprep.subr.mxu0 0.0
    %3322 = vmatpush1.msra.mxu0 0.0
    %3323 = vmatprep.subr.mxu0 0.0
    %3324 = vmatpush1.msra.mxu0 0.0
    %3325 = vmatprep.subr.mxu0 0.0
    %3326 = vmatpush1.msra.mxu0 0.0
    %3327 = vmatprep.subr.mxu0 0.0
    %3328 = vmatpush1.msra.mxu0 0.0
    %3329 = vmatprep.subr.mxu0 0.0
    %3330 = vmatpush1.msra.mxu0 0.0
    %3331 = vmatprep.subr.mxu0 0.0
    %3332 = vmatpush1.msra.mxu0 0.0
    %3333 = vmatprep.subr.mxu0 0.0
    %3334 = vmatpush1.msra.mxu0 0.0
    %3335 = vmatprep.subr.mxu0 0.0
    %3336 = vmatpush1.msra.mxu0 0.0
    %3337 = vmatprep.subr.mxu0 0.0
    %3338 = vmatpush1.msra.mxu0 0.0
    %3339 = vmatprep.subr.mxu0 0.0
    %3340 = vmatpush1.msra.mxu0 0.0
    %3341 = vmatprep.subr.mxu0 0.0
    %3342 = vmatpush1.msra.mxu0 0.0
    %3343 = vmatprep.subr.mxu0 0.0
    %3344 = vmatpush1.msra.mxu0 0.0
    %3345 = vmatprep.subr.mxu0 0.0
    %3346 = vmatpush1.msra.mxu0 0.0
    %3347 = vmatprep.subr.mxu0 0.0
    %3348 = vmatpush1.msra.mxu0 0.0
    %3349 = vmatprep.subr.mxu0 0.0
    %3350 = vmatpush1.msra.mxu0 0.0
    %3351 = vmatprep.mubr.f32.mxu0 0.0
    %3352 = vmatmul.mubr.f32.gmra.mrb[0].mxu0 %v3285
    %v3353 = vpop.f32.mrb[0].mxu0
    %v3354 = vadd.f32 0.0, %v3353
    %v3355 = vpop.f32.mrb[0].mxu0
    %3356 = vdwg.mxu0
    %3357 = vrot.lane.b32.xlu0 %v2112, 40
    %v3358 = vpop.permute.xlu0 %3357
    %v3361 = vsel %vm317, %v3280, 0
    %3363 = vmatprep.subr.mxu0 0.0
    %3364 = vmatpush1.msra.mxu0 %v3358
    %3365 = vmatprep.subr.mxu0 0.0
    %3366 = vmatpush1.msra.mxu0 0.0
    %3367 = vmatprep.subr.mxu0 0.0
    %3368 = vmatpush1.msra.mxu0 0.0
    %3369 = vmatprep.subr.mxu0 0.0
    %3370 = vmatpush1.msra.mxu0 0.0
    %3371 = vmatprep.subr.mxu0 0.0
    %3372 = vmatpush1.msra.mxu0 0.0
    %3373 = vmatprep.subr.mxu0 0.0
    %3374 = vmatpush1.msra.mxu0 0.0
    %3375 = vmatprep.subr.mxu0 0.0
    %3376 = vmatpush1.msra.mxu0 0.0
    %3377 = vmatprep.subr.mxu0 0.0
    %3378 = vmatpush1.msra.mxu0 0.0
    %3379 = vmatprep.subr.mxu0 0.0
    %3380 = vmatpush1.msra.mxu0 0.0
    %3381 = vmatprep.subr.mxu0 0.0
    %3382 = vmatpush1.msra.mxu0 0.0
    %3383 = vmatprep.subr.mxu0 0.0
    %3384 = vmatpush1.msra.mxu0 0.0
    %3385 = vmatprep.subr.mxu0 0.0
    %3386 = vmatpush1.msra.mxu0 0.0
    %3387 = vmatprep.subr.mxu0 0.0
    %3388 = vmatpush1.msra.mxu0 0.0
    %3389 = vmatprep.subr.mxu0 0.0
    %3390 = vmatpush1.msra.mxu0 0.0
    %3391 = vmatprep.subr.mxu0 0.0
    %3392 = vmatpush1.msra.mxu0 0.0
    %3393 = vmatprep.subr.mxu0 0.0
    %3394 = vmatpush1.msra.mxu0 0.0
    %3395 = vmatprep.subr.mxu0 0.0
    %3396 = vmatpush1.msra.mxu0 0.0
    %3397 = vmatprep.subr.mxu0 0.0
    %3398 = vmatpush1.msra.mxu0 0.0
    %3399 = vmatprep.subr.mxu0 0.0
    %3400 = vmatpush1.msra.mxu0 0.0
    %3401 = vmatprep.subr.mxu0 0.0
    %3402 = vmatpush1.msra.mxu0 0.0
    %3403 = vmatprep.subr.mxu0 0.0
    %3404 = vmatpush1.msra.mxu0 0.0
    %3405 = vmatprep.subr.mxu0 0.0
    %3406 = vmatpush1.msra.mxu0 0.0
    %3407 = vmatprep.subr.mxu0 0.0
    %3408 = vmatpush1.msra.mxu0 0.0
    %3409 = vmatprep.subr.mxu0 0.0
    %3410 = vmatpush1.msra.mxu0 0.0
    %3411 = vmatprep.subr.mxu0 0.0
    %3412 = vmatpush1.msra.mxu0 0.0
    %3413 = vmatprep.subr.mxu0 0.0
    %3414 = vmatpush1.msra.mxu0 0.0
    %3415 = vmatprep.subr.mxu0 0.0
    %3416 = vmatpush1.msra.mxu0 0.0
    %3417 = vmatprep.subr.mxu0 0.0
    %3418 = vmatpush1.msra.mxu0 0.0
    %3419 = vmatprep.subr.mxu0 0.0
    %3420 = vmatpush1.msra.mxu0 0.0
    %3421 = vmatprep.subr.mxu0 0.0
    %3422 = vmatpush1.msra.mxu0 0.0
    %3423 = vmatprep.subr.mxu0 0.0
    %3424 = vmatpush1.msra.mxu0 0.0
    %3425 = vmatprep.subr.mxu0 0.0
    %3426 = vmatpush1.msra.mxu0 0.0
    %3427 = vmatprep.mubr.f32.mxu0 0.0
    %3428 = vmatmul.mubr.f32.gmra.mrb[0].mxu0 %v3361
    %v3429 = vpop.f32.mrb[0].mxu0
    %v3430 = vadd.f32 0.0, %v3429
    %v3431 = vpop.f32.mrb[0].mxu0
    %3432 = vdwg.mxu0
    %3435 = vrot.lane.b32.xlu0 %v2694, 8
    %v3436 = vpop.permute.xlu0 %3435
    %3437 = vrot.lane.b32.xlu0 %v2770, 8
    %v3438 = vpop.permute.xlu0 %3437
    %3443 = vrot.lane.b32.xlu0 %v3024, 16
    %v3444 = vpop.permute.xlu0 %3443
    %3445 = vrot.lane.b32.xlu0 %v3100, 16
    %v3446 = vpop.permute.xlu0 %3445
    %3451 = vrot.lane.b32.xlu0 %v3354, 24
    %v3452 = vpop.permute.xlu0 %3451
    %3453 = vrot.lane.b32.xlu0 %v3430, 24
    %v3454 = vpop.permute.xlu0 %3453
    %v3457 = vsel %vm317, %v2364, %v3436
    %v3458 = vsel %vm317, %v2440, %v3438
    %v3459 = vsel %vm96, %v3457, %v3444
    %v3460 = vsel %vm96, %v3458, %v3446
    %v3461 = vsel %vm1661, %v3459, %v3452
    %v3462 = vsel %vm1661, %v3460, %v3454
    %s3463 = scalar_lea.vmem %s6, 32
    %v3464 = vld [vmem:[%s3463] sm:$0xff]
    %v3465 = vld [vmem:[%s3463 + $0x8] sm:$0xff]
    %v3466 = vld [vmem:[%s3463 + $0x10] sm:$0xff]
    %v3467 = vld [vmem:[%s3463 + $0x18] sm:$0xff]
    %v3468 = vlaneseq
    %v3469 = vshrl.u32 %v3468, 7
    %v3470 = vsub.s32 0, %v3469
    %v3471 = vrot.slane %v86, %v3470
    %v3473 = vsel %vm182, %v3461, 0
    %v3476 = vsel %vm182, %v3462, 0
    %3478 = vmatprep.subr.mxu0 0.0
    %3479 = vmatpush1.msra.mxu0 %v3464
    %3480 = vmatprep.subr.mxu0 0.0
    %3481 = vmatpush1.msra.mxu0 %v3465
    %3482 = vmatprep.subr.mxu0 0.0
    %3483 = vmatpush1.msra.mxu0 %v3466
    %3484 = vmatprep.subr.mxu0 0.0
    %3485 = vmatpush1.msra.mxu0 %v3467
    %3486 = vmatprep.subr.mxu0 0.0
    %3487 = vmatpush1.msra.mxu0 0.0
    %3488 = vmatprep.subr.mxu0 0.0
    %3489 = vmatpush1.msra.mxu0 0.0
    %3490 = vmatprep.subr.mxu0 0.0
    %3491 = vmatpush1.msra.mxu0 0.0
    %3492 = vmatprep.subr.mxu0 0.0
    %3493 = vmatpush1.msra.mxu0 0.0
    %3494 = vmatprep.subr.mxu0 0.0
    %3495 = vmatpush1.msra.mxu0 0.0
    %3496 = vmatprep.subr.mxu0 0.0
    %3497 = vmatpush1.msra.mxu0 0.0
    %3498 = vmatprep.subr.mxu0 0.0
    %3499 = vmatpush1.msra.mxu0 0.0
    %3500 = vmatprep.subr.mxu0 0.0
    %3501 = vmatpush1.msra.mxu0 0.0
    %3502 = vmatprep.subr.mxu0 0.0
    %3503 = vmatpush1.msra.mxu0 0.0
    %3504 = vmatprep.subr.mxu0 0.0
    %3505 = vmatpush1.msra.mxu0 0.0
    %3506 = vmatprep.subr.mxu0 0.0
    %3507 = vmatpush1.msra.mxu0 0.0
    %3508 = vmatprep.subr.mxu0 0.0
    %3509 = vmatpush1.msra.mxu0 0.0
    %3510 = vmatprep.subr.mxu0 0.0
    %3511 = vmatpush1.msra.mxu0 0.0
    %3512 = vmatprep.subr.mxu0 0.0
    %3513 = vmatpush1.msra.mxu0 0.0
    %3514 = vmatprep.subr.mxu0 0.0
    %3515 = vmatpush1.msra.mxu0 0.0
    %3516 = vmatprep.subr.mxu0 0.0
    %3517 = vmatpush1.msra.mxu0 0.0
    %3518 = vmatprep.subr.mxu0 0.0
    %3519 = vmatpush1.msra.mxu0 0.0
    %3520 = vmatprep.subr.mxu0 0.0
    %3521 = vmatpush1.msra.mxu0 0.0
    %3522 = vmatprep.subr.mxu0 0.0
    %3523 = vmatpush1.msra.mxu0 0.0
    %3524 = vmatprep.subr.mxu0 0.0
    %3525 = vmatpush1.msra.mxu0 0.0
    %3526 = vmatprep.subr.mxu0 0.0
    %3527 = vmatpush1.msra.mxu0 0.0
    %3528 = vmatprep.subr.mxu0 0.0
    %3529 = vmatpush1.msra.mxu0 0.0
    %3530 = vmatprep.subr.mxu0 0.0
    %3531 = vmatpush1.msra.mxu0 0.0
    %3532 = vmatprep.subr.mxu0 0.0
    %3533 = vmatpush1.msra.mxu0 0.0
    %3534 = vmatprep.subr.mxu0 0.0
    %3535 = vmatpush1.msra.mxu0 0.0
    %3536 = vmatprep.subr.mxu0 0.0
    %3537 = vmatpush1.msra.mxu0 0.0
    %3538 = vmatprep.subr.mxu0 0.0
    %3539 = vmatpush1.msra.mxu0 0.0
    %3540 = vmatprep.subr.mxu0 0.0
    %3541 = vmatpush1.msra.mxu0 0.0
    %3542 = vmatprep.mubr.f32.mxu0 0.0
    %3543 = vmatmul.mubr.f32.gmra.mrb[0].mxu0 %v3473
    %v3544 = vpop.f32.mrb[0].mxu0
    %v3545 = vadd.f32 %v3471, %v3544
    %v3546 = vpop.f32.mrb[0].mxu0
    %3547 = vmatprep.mubr.f32.mxu0 0.0
    %3548 = vmatmul.mubr.f32.gmra.mrb[0].mxu0 %v3476
    %v3549 = vpop.f32.mrb[0].mxu0
    %v3550 = vadd.f32 %v3471, %v3549
    %v3551 = vpop.f32.mrb[0].mxu0
    %3552 = vdwg.mxu0
    %v3553 = vadd.f32 %v2019, %v3545
    %v3554 = vadd.f32 %v2020, %v3550
    %v3555 = vsel %vm182, %v3553, 0.0
    %3556 = vadd.xlane.f32.xlu0 %v3555
    %v3557 = vpop.xlane.xlu0 %3556
    %v3558 = vsel %vm182, %v3554, 0.0
    %3559 = vadd.xlane.f32.xlu0 %v3558
    %v3560 = vpop.xlane.xlu0 %3559
    %v3561 = vmul.f32 %v3557, %v189
    %v3562 = vmul.f32 %v3560, %v189
    %v3563 = vsub.f32 %v3553, %v3561
    %v3564 = vsub.f32 %v3554, %v3562
    %v3565 = vmul.f32 %v3563, %v3563
    %v3566 = vmul.f32 %v3564, %v3564
    %v3567 = vsel %vm182, %v3565, 0.0
    %3568 = vadd.xlane.f32.xlu0 %v3567
    %v3569 = vpop.xlane.xlu0 %3568
    %v3570 = vsel %vm182, %v3566, 0.0
    %3571 = vadd.xlane.f32.xlu0 %v3570
    %v3572 = vpop.xlane.xlu0 %3571
    %v3573 = vmul.f32 %v3569, %v189
    %v3574 = vmul.f32 %v3572, %v189
    %v3575 = vadd.f32 %v3573, 1e-05
    %v3576 = vadd.f32 %v3574, 1e-05
    %v3577 = vrsqrt.pop %v3575
    %v3578 = vrsqrt.pop %v3576
    %v3579 = vmul.f32 %v3563, %v3577
    %v3580 = vmul.f32 %v3564, %v3578
    %v3581 = vlaneseq
    %v3582 = vshrl.u32 %v3581, 7
    %v3583 = vsub.s32 1, %v3582
    %v3584 = vrot.slane %v86, %v3583
    %v3585 = vmul.f32 %v3579, %v3584
    %v3586 = vmul.f32 %v3580, %v3584
    %v3587 = vlaneseq
    %v3588 = vshrl.u32 %v3587, 7
    %v3589 = vsub.s32 2, %v3588
    %v3590 = vrot.slane %v86, %v3589
    %v3591 = vadd.f32 %v3585, %v3590
    %v3592 = vadd.f32 %v3586, %v3590
    %s3593 = scalar_lea.vmem %s8, 32
    %v3594 = vld [vmem:[%s3593] sm:$0xff]
    %v3595 = vld [vmem:[%s3593 + $0x8] sm:$0xff]
    %v3596 = vld [vmem:[%s3593 + $0x10] sm:$0xff]
    %v3597 = vld [vmem:[%s3593 + $0x18] sm:$0xff]
    %s3598 = scalar_lea.vmem [#allocation7], 1
    %v3599 = vld [vmem:[%s3598] sm:$0x1]
    %v3601 = vlaneseq
    %v3602 = vshrl.u32 %v3601, 7
    %v3603 = vsub.s32 0, %v3602
    %v3604 = vrot.slane %v3599, %v3603
    %v3607 = vsel %vm182, %v3591, 0
    %v3610 = vsel %vm182, %v3592, 0
    %3612 = vmatprep.subr.mxu0 0.0
    %3613 = vmatpush1.msra.mxu0 %v3594
    %3614 = vmatprep.subr.mxu0 0.0
    %3615 = vmatpush1.msra.mxu0 %v3595
    %3616 = vmatprep.subr.mxu0 0.0
    %3617 = vmatpush1.msra.mxu0 %v3596
    %3618 = vmatprep.subr.mxu0 0.0
    %3619 = vmatpush1.msra.mxu0 %v3597
    %3620 = vmatprep.subr.mxu0 0.0
    %3621 = vmatpush1.msra.mxu0 0.0
    %3622 = vmatprep.subr.mxu0 0.0
    %3623 = vmatpush1.msra.mxu0 0.0
    %3624 = vmatprep.subr.mxu0 0.0
    %3625 = vmatpush1.msra.mxu0 0.0
    %3626 = vmatprep.subr.mxu0 0.0
    %3627 = vmatpush1.msra.mxu0 0.0
    %3628 = vmatprep.subr.mxu0 0.0
    %3629 = vmatpush1.msra.mxu0 0.0
    %3630 = vmatprep.subr.mxu0 0.0
    %3631 = vmatpush1.msra.mxu0 0.0
    %3632 = vmatprep.subr.mxu0 0.0
    %3633 = vmatpush1.msra.mxu0 0.0
    %3634 = vmatprep.subr.mxu0 0.0
    %3635 = vmatpush1.msra.mxu0 0.0
    %3636 = vmatprep.subr.mxu0 0.0
    %3637 = vmatpush1.msra.mxu0 0.0
    %3638 = vmatprep.subr.mxu0 0.0
    %3639 = vmatpush1.msra.mxu0 0.0
    %3640 = vmatprep.subr.mxu0 0.0
    %3641 = vmatpush1.msra.mxu0 0.0
    %3642 = vmatprep.subr.mxu0 0.0
    %3643 = vmatpush1.msra.mxu0 0.0
    %3644 = vmatprep.subr.mxu0 0.0
    %3645 = vmatpush1.msra.mxu0 0.0
    %3646 = vmatprep.subr.mxu0 0.0
    %3647 = vmatpush1.msra.mxu0 0.0
    %3648 = vmatprep.subr.mxu0 0.0
    %3649 = vmatpush1.msra.mxu0 0.0
    %3650 = vmatprep.subr.mxu0 0.0
    %3651 = vmatpush1.msra.mxu0 0.0
    %3652 = vmatprep.subr.mxu0 0.0
    %3653 = vmatpush1.msra.mxu0 0.0
    %3654 = vmatprep.subr.mxu0 0.0
    %3655 = vmatpush1.msra.mxu0 0.0
    %3656 = vmatprep.subr.mxu0 0.0
    %3657 = vmatpush1.msra.mxu0 0.0
    %3658 = vmatprep.subr.mxu0 0.0
    %3659 = vmatpush1.msra.mxu0 0.0
    %3660 = vmatprep.subr.mxu0 0.0
    %3661 = vmatpush1.msra.mxu0 0.0
    %3662 = vmatprep.subr.mxu0 0.0
    %3663 = vmatpush1.msra.mxu0 0.0
    %3664 = vmatprep.subr.mxu0 0.0
    %3665 = vmatpush1.msra.mxu0 0.0
    %3666 = vmatprep.subr.mxu0 0.0
    %3667 = vmatpush1.msra.mxu0 0.0
    %3668 = vmatprep.subr.mxu0 0.0
    %3669 = vmatpush1.msra.mxu0 0.0
    %3670 = vmatprep.subr.mxu0 0.0
    %3671 = vmatpush1.msra.mxu0 0.0
    %3672 = vmatprep.subr.mxu0 0.0
    %3673 = vmatpush1.msra.mxu0 0.0
    %3674 = vmatprep.subr.mxu0 0.0
    %3675 = vmatpush1.msra.mxu0 0.0
    %3676 = vmatprep.mubr.f32.mxu0 0.0
    %3677 = vmatmul.mubr.f32.gmra.mrb[0].mxu0 %v3607
    %v3678 = vpop.f32.mrb[0].mxu0
    %v3679 = vadd.f32 %v3604, %v3678
    %v3680 = vpop.f32.mrb[0].mxu0
    %3681 = vmatprep.mubr.f32.mxu0 0.0
    %3682 = vmatmul.mubr.f32.gmra.mrb[0].mxu0 %v3610
    %v3683 = vpop.f32.mrb[0].mxu0
    %v3684 = vadd.f32 %v3604, %v3683
    %v3685 = vpop.f32.mrb[0].mxu0
    %3686 = vdwg.mxu0
    %v3687 = vmax.f32 %v3679, 0.0
    %v3688 = vmax.f32 %v3684, 0.0
    %s3689 = scalar_lea.vmem %s10, 64
    %v3690 = vld [vmem:[%s3689] sm:$0xff]
    %v3691 = vld [vmem:[%s3689 + $0x8] sm:$0xff]
    %v3692 = vld [vmem:[%s3689 + $0x10] sm:$0xff]
    %v3693 = vld [vmem:[%s3689 + $0x18] sm:$0xff]
    %v3694 = vld [vmem:[%s3689 + $0x20] sm:$0xff]
    %v3695 = vld [vmem:[%s3689 + $0x28] sm:$0xff]
    %v3696 = vld [vmem:[%s3689 + $0x30] sm:$0xff]
    %v3697 = vld [vmem:[%s3689 + $0x38] sm:$0xff]
    %v3698 = vlaneseq
    %v3699 = vshrl.u32 %v3698, 7
    %v3700 = vsub.s32 3, %v3699
    %v3701 = vrot.slane %v86, %v3700
    %v3703 = vsel %vm1899, %v3687, 0
    %v3706 = vsel %vm1899, %v3688, 0
    %3708 = vmatprep.subr.mxu0 0.0
    %3709 = vmatpush1.msra.mxu0 %v3690
    %3710 = vmatprep.subr.mxu0 0.0
    %3711 = vmatpush1.msra.mxu0 %v3691
    %3712 = vmatprep.subr.mxu0 0.0
    %3713 = vmatpush1.msra.mxu0 %v3692
    %3714 = vmatprep.subr.mxu0 0.0
    %3715 = vmatpush1.msra.mxu0 %v3693
    %3716 = vmatprep.subr.mxu0 0.0
    %3717 = vmatpush1.msra.mxu0 %v3694
    %3718 = vmatprep.subr.mxu0 0.0
    %3719 = vmatpush1.msra.mxu0 %v3695
    %3720 = vmatprep.subr.mxu0 0.0
    %3721 = vmatpush1.msra.mxu0 %v3696
    %3722 = vmatprep.subr.mxu0 0.0
    %3723 = vmatpush1.msra.mxu0 %v3697
    %3724 = vmatprep.subr.mxu0 0.0
    %3725 = vmatpush1.msra.mxu0 0.0
    %3726 = vmatprep.subr.mxu0 0.0
    %3727 = vmatpush1.msra.mxu0 0.0
    %3728 = vmatprep.subr.mxu0 0.0
    %3729 = vmatpush1.msra.mxu0 0.0
    %3730 = vmatprep.subr.mxu0 0.0
    %3731 = vmatpush1.msra.mxu0 0.0
    %3732 = vmatprep.subr.mxu0 0.0
    %3733 = vmatpush1.msra.mxu0 0.0
    %3734 = vmatprep.subr.mxu0 0.0
    %3735 = vmatpush1.msra.mxu0 0.0
    %3736 = vmatprep.subr.mxu0 0.0
    %3737 = vmatpush1.msra.mxu0 0.0
    %3738 = vmatprep.subr.mxu0 0.0
    %3739 = vmatpush1.msra.mxu0 0.0
    %3740 = vmatprep.subr.mxu0 0.0
    %3741 = vmatpush1.msra.mxu0 0.0
    %3742 = vmatprep.subr.mxu0 0.0
    %3743 = vmatpush1.msra.mxu0 0.0
    %3744 = vmatprep.subr.mxu0 0.0
    %3745 = vmatpush1.msra.mxu0 0.0
    %3746 = vmatprep.subr.mxu0 0.0
    %3747 = vmatpush1.msra.mxu0 0.0
    %3748 = vmatprep.subr.mxu0 0.0
    %3749 = vmatpush1.msra.mxu0 0.0
    %3750 = vmatprep.subr.mxu0 0.0
    %3751 = vmatpush1.msra.mxu0 0.0
    %3752 = vmatprep.subr.mxu0 0.0
    %3753 = vmatpush1.msra.mxu0 0.0
    %3754 = vmatprep.subr.mxu0 0.0
    %3755 = vmatpush1.msra.mxu0 0.0
    %3756 = vmatprep.subr.mxu0 0.0
    %3757 = vmatpush1.msra.mxu0 0.0
    %3758 = vmatprep.subr.mxu0 0.0
    %3759 = vmatpush1.msra.mxu0 0.0
    %3760 = vmatprep.subr.mxu0 0.0
    %3761 = vmatpush1.msra.mxu0 0.0
    %3762 = vmatprep.subr.mxu0 0.0
    %3763 = vmatpush1.msra.mxu0 0.0
    %3764 = vmatprep.subr.mxu0 0.0
    %3765 = vmatpush1.msra.mxu0 0.0
    %3766 = vmatprep.subr.mxu0 0.0
    %3767 = vmatpush1.msra.mxu0 0.0
    %3768 = vmatprep.subr.mxu0 0.0
    %3769 = vmatpush1.msra.mxu0 0.0
    %3770 = vmatprep.subr.mxu0 0.0
    %3771 = vmatpush1.msra.mxu0 0.0
    %3772 = vmatprep.mubr.f32.mxu0 0.0
    %3773 = vmatmul.mubr.f32.gmra.mrb[0].mxu0 %v3703
    %v3774 = vpop.f32.mrb[0].mxu0
    %v3775 = vadd.f32 %v3701, %v3774
    %v3776 = vpop.f32.mrb[0].mxu0
    %3777 = vmatprep.mubr.f32.mxu0 0.0
    %3778 = vmatmul.mubr.f32.gmra.mrb[0].mxu0 %v3706
    %v3779 = vpop.f32.mrb[0].mxu0
    %v3780 = vadd.f32 %v3701, %v3779
    %v3781 = vpop.f32.mrb[0].mxu0
    %3782 = vdwg.mxu0
    %v3783 = vadd.f32 %v3591, %v3775
    %v3784 = vadd.f32 %v3592, %v3780
    %v3785 = vsel %vm182, %v3783, 0.0
    %3786 = vadd.xlane.f32.xlu0 %v3785
    %v3787 = vpop.xlane.xlu0 %3786
    %v3788 = vsel %vm182, %v3784, 0.0
    %3789 = vadd.xlane.f32.xlu0 %v3788
    %v3790 = vpop.xlane.xlu0 %3789
    %v3791 = vmul.f32 %v3787, %v189
    %v3792 = vmul.f32 %v3790, %v189
    %v3793 = vsub.f32 %v3783, %v3791
    %v3794 = vsub.f32 %v3784, %v3792
    %v3795 = vmul.f32 %v3793, %v3793
    %v3796 = vmul.f32 %v3794, %v3794
    %v3797 = vsel %vm182, %v3795, 0.0
    %3798 = vadd.xlane.f32.xlu0 %v3797
    %v3799 = vpop.xlane.xlu0 %3798
    %v3800 = vsel %vm182, %v3796, 0.0
    %3801 = vadd.xlane.f32.xlu0 %v3800
    %v3802 = vpop.xlane.xlu0 %3801
    %v3803 = vmul.f32 %v3799, %v189
    %v3804 = vmul.f32 %v3802, %v189
    %v3805 = vadd.f32 %v3803, 1e-05
    %v3806 = vadd.f32 %v3804, 1e-05
    %v3807 = vrsqrt.pop %v3805
    %v3808 = vrsqrt.pop %v3806
    %v3809 = vmul.f32 %v3793, %v3807
    %v3810 = vmul.f32 %v3794, %v3808
    %v3811 = vlaneseq
    %v3812 = vshrl.u32 %v3811, 7
    %v3813 = vsub.s32 4, %v3812
    %v3814 = vrot.slane %v86, %v3813
    %v3815 = vmul.f32 %v3809, %v3814
    %v3816 = vmul.f32 %v3810, %v3814
    %v3817 = vlaneseq
    %v3818 = vshrl.u32 %v3817, 7
    %v3819 = vsub.s32 5, %v3818
    %v3820 = vrot.slane %v86, %v3819
    %v3821 = vadd.f32 %v3815, %v3820
    %v3822 = vadd.f32 %v3816, %v3820
    %v3825 = vrot.slane %v3822, 7
    %vm3828 = vcmask 261127
    %v3829 = vsel %vm3828, %v3821, 0.0
    %3830 = vadd.xlane.f32.xlu0 %v3829
    %v3831 = vpop.xlane.xlu0 %3830
    %vm3832 = vcmask 253952
    %v3833 = vsel %vm3832, %v3825, 0.0
    %3834 = vadd.xlane.f32.xlu0 %v3833
    %v3835 = vpop.xlane.xlu0 %3834
    %v3836 = vmul.f32 %v3831, %v189
    %v3837 = vmul.f32 %v3835, %v189
    %v3840 = vrot.slane %v3837, 1
    %v3843 = vsub.f32 %v3821, %v3836
    %v3844 = vsub.f32 %v3822, %v3840
    %v3845 = vmul.f32 %v3843, %v3843
    %v3846 = vmul.f32 %v3844, %v3844
    %v3849 = vrot.slane %v3846, 7
    %v3852 = vsel %vm3828, %v3845, 0.0
    %3853 = vadd.xlane.f32.xlu0 %v3852
    %v3854 = vpop.xlane.xlu0 %3853
    %v3855 = vsel %vm3832, %v3849, 0.0
    %3856 = vadd.xlane.f32.xlu0 %v3855
    %v3857 = vpop.xlane.xlu0 %3856
    %v3858 = vmul.f32 %v3854, %v189
    %v3859 = vmul.f32 %v3857, %v189
    %v3860 = vadd.f32 %v3858, 1e-05
    %v3861 = vadd.f32 %v3859, 1e-05
    %v3862 = vrsqrt.pop %v3860
    %v3863 = vrsqrt.pop %v3861
    %v3866 = vrot.slane %v3863, 1
    %v3869 = vmul.f32 %v3843, %v3862
    %v3870 = vmul.f32 %v3844, %v3866
    %v3871 = vlaneseq
    %v3872 = vshrl.u32 %v3871, 7
    %v3873 = vsub.s32 3, %v3872
    %v3874 = vrot.slane %v84, %v3873
    %v3875 = vmul.f32 %v3869, %v3874
    %v3876 = vmul.f32 %v3870, %v3874
    %v3877 = vlaneseq
    %v3878 = vshrl.u32 %v3877, 7
    %v3879 = vsub.s32 4, %v3878
    %v3880 = vrot.slane %v84, %v3879
    %v3881 = vadd.f32 %v3875, %v3880
    %v3882 = vadd.f32 %v3876, %v3880
    %v3883 = vld [vmem:[%s11] sm:$0xff]
    %v3884 = vld [vmem:[%s11 + $0x8] sm:$0xff]
    %v3885 = vld [vmem:[%s11 + $0x10] sm:$0xff]
    %v3886 = vld [vmem:[%s11 + $0x18] sm:$0xff]
    %v3887 = vlaneseq
    %v3888 = vshrl.u32 %v3887, 7
    %v3889 = vsub.s32 0, %v3888
    %v3890 = vrot.slane %v87, %v3889
    %v3893 = vrot.slane %v3881, 7
    %v3894 = vrot.slane %v3882, 6
    %vm3895 = vcmask 1041409
    %v3896 = vsel %vm3895, %v3894, %v3893
    %v3897 = vsel %vm182, %v3896, 0
    %3899 = vmatprep.subr.mxu0 0.0
    %3900 = vmatpush1.msra.mxu0 %v3883
    %3901 = vmatprep.subr.mxu0 0.0
    %3902 = vmatpush1.msra.mxu0 %v3884
    %3903 = vmatprep.subr.mxu0 0.0
    %3904 = vmatpush1.msra.mxu0 %v3885
    %3905 = vmatprep.subr.mxu0 0.0
    %3906 = vmatpush1.msra.mxu0 %v3886
    %3907 = vmatprep.subr.mxu0 0.0
    %3908 = vmatpush1.msra.mxu0 0.0
    %3909 = vmatprep.subr.mxu0 0.0
    %3910 = vmatpush1.msra.mxu0 0.0
    %3911 = vmatprep.subr.mxu0 0.0
    %3912 = vmatpush1.msra.mxu0 0.0
    %3913 = vmatprep.subr.mxu0 0.0
    %3914 = vmatpush1.msra.mxu0 0.0
    %3915 = vmatprep.subr.mxu0 0.0
    %3916 = vmatpush1.msra.mxu0 0.0
    %3917 = vmatprep.subr.mxu0 0.0
    %3918 = vmatpush1.msra.mxu0 0.0
    %3919 = vmatprep.subr.mxu0 0.0
    %3920 = vmatpush1.msra.mxu0 0.0
    %3921 = vmatprep.subr.mxu0 0.0
    %3922 = vmatpush1.msra.mxu0 0.0
    %3923 = vmatprep.subr.mxu0 0.0
    %3924 = vmatpush1.msra.mxu0 0.0
    %3925 = vmatprep.subr.mxu0 0.0
    %3926 = vmatpush1.msra.mxu0 0.0
    %3927 = vmatprep.subr.mxu0 0.0
    %3928 = vmatpush1.msra.mxu0 0.0
    %3929 = vmatprep.subr.mxu0 0.0
    %3930 = vmatpush1.msra.mxu0 0.0
    %3931 = vmatprep.subr.mxu0 0.0
    %3932 = vmatpush1.msra.mxu0 0.0
    %3933 = vmatprep.subr.mxu0 0.0
    %3934 = vmatpush1.msra.mxu0 0.0
    %3935 = vmatprep.subr.mxu0 0.0
    %3936 = vmatpush1.msra.mxu0 0.0
    %3937 = vmatprep.subr.mxu0 0.0
    %3938 = vmatpush1.msra.mxu0 0.0
    %3939 = vmatprep.subr.mxu0 0.0
    %3940 = vmatpush1.msra.mxu0 0.0
    %3941 = vmatprep.subr.mxu0 0.0
    %3942 = vmatpush1.msra.mxu0 0.0
    %3943 = vmatprep.subr.mxu0 0.0
    %3944 = vmatpush1.msra.mxu0 0.0
    %3945 = vmatprep.subr.mxu0 0.0
    %3946 = vmatpush1.msra.mxu0 0.0
    %3947 = vmatprep.subr.mxu0 0.0
    %3948 = vmatpush1.msra.mxu0 0.0
    %3949 = vmatprep.subr.mxu0 0.0
    %3950 = vmatpush1.msra.mxu0 0.0
    %3951 = vmatprep.subr.mxu0 0.0
    %3952 = vmatpush1.msra.mxu0 0.0
    %3953 = vmatprep.subr.mxu0 0.0
    %3954 = vmatpush1.msra.mxu0 0.0
    %3955 = vmatprep.subr.mxu0 0.0
    %3956 = vmatpush1.msra.mxu0 0.0
    %3957 = vmatprep.subr.mxu0 0.0
    %3958 = vmatpush1.msra.mxu0 0.0
    %3959 = vmatprep.subr.mxu0 0.0
    %3960 = vmatpush1.msra.mxu0 0.0
    %3961 = vmatprep.subr.mxu0 0.0
    %3962 = vmatpush1.msra.mxu0 0.0
    %3963 = vmatprep.mubr.f32.mxu0 0.0
    %3964 = vmatmul.mubr.f32.gmra.mrb[0].mxu0 %v3897
    %v3965 = vpop.f32.mrb[0].mxu0
    %v3966 = vadd.f32 %v3890, %v3965
    %v3967 = vpop.f32.mrb[0].mxu0
    %3968 = vdwg.mxu0
    %v3969 = vlaneseq
    %v3970 = vshrl.u32 %v3969, 7
    %v3971 = vsub.s32 1, %v3970
    %v3972 = vrot.slane %v87, %v3971
    %v3973 = vmul.f32 %v3966, %v3972
    %v3974 = vlaneseq
    %v3975 = vshrl.u32 %v3974, 7
    %v3976 = vsub.s32 2, %v3975
    %v3977 = vrot.slane %v87, %v3976
    %v3978 = vadd.f32 %v3973, %v3977
    %vm3979 = vcmask 123904
    %3980 = vst.msk [vmem:[#allocation8] sm:$0x3] %vm3979, %v3978
    // Predicated region
    $region66: #{tpu_custom_call.1} parent=1 // pred_check
      _
    $region67: #{tpu_custom_call.1} parent=1 // pred_check_branch
      %3982 = sbr.rel (0) target = $region69
    $region68: #{tpu_custom_call.1} parent=1 // pred_region
      %s3984 = ssub.s32 32, 32
      %3985 = vsyncadd [#allocation4], %s3984
      %s3987 = sshll.u32 [#allocation8], 4
      %s3988 = int_to_ptr.vmem [resolvable:$true] %s3987
      %3990 = dma.vmem_to_hbm [thread:$0]  %s3988, 32, %s13, [#allocation4]
    $region69: #{tpu_custom_call.1} parent=1 // pred_fallthru
      _
    // Predicated region
    $region70: #{tpu_custom_call.1} parent=1 // pred_check
      _
    $region71: #{tpu_custom_call.1} parent=1 // pred_check_branch
      %3992 = sbr.rel (0) target = $region73
    $region72: #{tpu_custom_call.1} parent=1 // pred_region
      %3993 = dma.done [#allocation4], 32
    $region73: #{tpu_custom_call.1} parent=1 // pred_fallthru
      _
    %3994 = vsyncpa [#allocation3], 1
    %3995 = vsyncpa [#allocation6], 1
    %3996 = vsyncpa [#allocation4], 1

</llo_original>
